<compile_context>
chip_gen: v7x
topology: tpu7x:2x2x1
jax: 0.10.0
libtpu: 0.0.40
codegen_flags: <defaults>
</compile_context>

<pallas_src>
import math
import functools

import jax
import jax.numpy as jnp
from jax.experimental import pallas as pl
from jax.experimental.pallas import tpu as pltpu

EPS = 1e-5  # PyTorch LayerNorm default eps

# Opt-in performance flags (both perturb numerics vs. the PyTorch reference).
MATMUL_IN_BF16 = False     # cast matmul operands to bf16 (f32 accumulate)
GELU_TANH_APPROX = False   # tanh GELU (EUP) instead of exact erf GELU


def _matmul(a, b):
    if MATMUL_IN_BF16:
        a = a.astype(jnp.bfloat16)
        b = b.astype(jnp.bfloat16)
    return jnp.dot(a, b, preferred_element_type=jnp.float32)


def _gelu(x):
    if GELU_TANH_APPROX:
        return jax.nn.gelu(x, approximate=True)
    # exact (erf-based) GELU, matching torch.nn.GELU() default
    return 0.5 * x * (1.0 + jax.lax.erf(x * (1.0 / math.sqrt(2.0))))


def _layernorm(x, g, b):
    # single-sweep stats: var = E[x^2] - mu^2 (clamped), halves dependent
    # XLU reduction chains vs. the two-pass centered form.
    mu = jnp.mean(x, axis=-1, keepdims=True)
    ex2 = jnp.mean(x * x, axis=-1, keepdims=True)
    var = jnp.maximum(ex2 - mu * mu, 0.0)
    return (x - mu) * jax.lax.rsqrt(var + EPS) * g + b


def rowwise_transformer_kernel(
    # inputs -------------------------------------------------------------
    x_ref,          # (TB, F)
    gate_ref,       # (3, F)  rows: [ln_gain, ln_bias, gate_bias]
    feH_ref,        # (4, H)  rows: [fe_w1, fe_b1, fe_ln1_g, fe_ln1_b]
    feD_ref,        # (5, D)  rows: [fe_b2, fe_ln2_g, fe_ln2_b, fin_g, fin_b]
    fe_w2_ref,      # (H, D)
    pos_ref,        # (F, D)
    lvec_ref,       # (L, 6, D) rows: [ln1_g, ln1_b, b_out, ln2_g, ln2_b, ffb2]
    ffb1_ref,       # (L, 1, M)
    wqkv_ref,       # (L, D, 3D)  (softmax scale folded into the q block)
    wo_ref,         # (L, D, D)
    ffw1_ref,       # (L, D, M)
    ffw2_ref,       # (L, M, D)
    head_ref,       # (3, F, D) rows: [out_ln_g, out_ln_b, out_w]
    out_bias_ref,   # (1, 1) in SMEM
    # outputs ------------------------------------------------------------
    o_ref,          # (TB, 1)
    *, depth, heads):
    x = x_ref[...]                                    # (TB, F)
    TB, F = x.shape

    # ---- FeatureProbabilityGate -----------------------------------------
    gate = gate_ref[...]                              # (3, F)
    xn = _layernorm(x, gate[0:1, :], gate[1:2, :]) * (1.0 / 3.0)
    probs = jax.nn.sigmoid(xn + gate[2:3, :])
    xg = x * probs                                    # (TB, F)

    # ---- feature_embed: Linear(1->H) -> GELU -> LN -> Linear(H->D) -> LN -
    feH = feH_ref[...]                                # (4, H)
    H = feH.shape[-1]
    w1 = feH[0:1, :].reshape(1, 1, H)
    b1 = feH[1:2, :].reshape(1, 1, H)
    h = _gelu(xg[..., None] * w1 + b1)                # (TB, F, H)
    h = _layernorm(h, feH[2:3, :], feH[3:4, :])

    feD = feD_ref[...]                                # (5, D)
    w2 = fe_w2_ref[...]                               # (H, D)
    D = w2.shape[-1]
    t = _matmul(h.reshape(TB * F, H), w2) + feD[0:1, :]
    t = _layernorm(t, feD[1:2, :], feD[2:3, :])       # (TB*F, D)

    # ---- add positional embedding ----------------------------------------
    t = (t.reshape(TB, F, D) + pos_ref[...]).reshape(TB * F, D)

    # ---- transformer blocks (residual stream kept flat (TB*F, D)) ---------
    hd = D // heads
    for l in range(depth):
        lv = lvec_ref[l]                              # (6, D)
        wqkv = wqkv_ref[l]                            # (D, 3D)
        wo = wo_ref[l]                                # (D, D)
        ffw1 = ffw1_ref[l]                            # (D, M)
        ffb1 = ffb1_ref[l]                            # (1, M)
        ffw2 = ffw2_ref[l]                            # (M, D)

        # --- multi-head self-attention (fused QKV projection) ---
        y = _layernorm(t, lv[0:1, :], lv[1:2, :])     # (TB*F, D)
        qkv = _matmul(y, wqkv)                        # (TB*F, 3D)
        q = qkv[:, 0 * D:1 * D].reshape(TB, F, D)     # already scaled by 1/sqrt(hd)
        k = qkv[:, 1 * D:2 * D].reshape(TB, F, D)
        v = qkv[:, 2 * D:3 * D].reshape(TB, F, D)

        attn = jnp.zeros((TB * F, D), jnp.float32)
        for hi in range(heads):
            sl = slice(hi * hd, (hi + 1) * hd)
            s = jnp.einsum('bqc,bkc->bqk', q[:, :, sl], k[:, :, sl],
                           preferred_element_type=jnp.float32)
            s = s - jnp.max(s, axis=-1, keepdims=True)
            e = jnp.exp(s)
            a = e * (1.0 / jnp.sum(e, axis=-1, keepdims=True))
            ctx = jnp.einsum('bqk,bkc->bqc', a, v[:, :, sl],
                             preferred_element_type=jnp.float32)   # (TB, F, hd)
            # fold w_out row-slice into the per-head projection: no lane concat
            attn = attn + _matmul(ctx.reshape(TB * F, hd), wo[sl, :])
        t = t + attn + lv[2:3, :]

        # --- feed-forward ---
        y = _layernorm(t, lv[3:4, :], lv[4:5, :])
        hff = _gelu(_matmul(y, ffw1) + ffb1)
        t = t + _matmul(hff, ffw2) + lv[5:6, :]

    # ---- final per-token LayerNorm ----------------------------------------
    t = _layernorm(t, feD[3:4, :], feD[4:5, :])       # (TB*F, D)
    t3 = t.reshape(TB, F, D)

    # ---- Flatten + LayerNorm(F*D): single-pass stats over (F, D) ----------
    head = head_ref[...]                              # (3, F, D)
    n = float(F * D)
    s1 = jnp.sum(jnp.sum(t3, axis=-1, keepdims=True), axis=-2, keepdims=True)
    s2 = jnp.sum(jnp.sum(t3 * t3, axis=-1, keepdims=True), axis=-2, keepdims=True)
    mu = s1 * (1.0 / n)
    var = jnp.maximum(s2 * (1.0 / n) - mu * mu, 0.0)
    tn = (t3 - mu) * jax.lax.rsqrt(var + EPS) * head[0] + head[1]

    # ---- Linear(F*D -> 1) as VPU multiply + reduce -------------------------
    res = jnp.sum(jnp.sum(tn * head[2], axis=-1), axis=-1, keepdims=True)  # (TB, 1)
    o_ref[...] = res + out_bias_ref[0, 0]


# --------------------------------------------------------------------------
# parameter construction / packing
# --------------------------------------------------------------------------
def init_params(key, num_features, dim, depth, heads, mlp_dim, hidden_dim):
    F, D, H, M, L = num_features, dim, hidden_dim, mlp_dim, depth
    ks = jax.random.split(key, 12)

    def nrm(k, shape, scale):
        return jax.random.normal(k, shape, jnp.float32) * scale

    return dict(
        # feature gate
        gate_ln_g=jnp.ones((F,), jnp.float32),
        gate_ln_b=jnp.zeros((F,), jnp.float32),
        gate_bias=jnp.zeros((F,), jnp.float32),
        # feature embed
        fe_w1=nrm(ks[0], (H,), 0.5),
        fe_b1=nrm(ks[1], (H,), 0.1),
        fe_ln1_g=jnp.ones((H,), jnp.float32),
        fe_ln1_b=jnp.zeros((H,), jnp.float32),
        fe_w2=nrm(ks[2], (H, D), 0.1),
        fe_b2=nrm(ks[3], (D,), 0.1),
        fe_ln2_g=jnp.ones((D,), jnp.float32),
        fe_ln2_b=jnp.zeros((D,), jnp.float32),
        # positional embedding
        pos=nrm(ks[4], (F, D), 0.01),
        # transformer layers (stacked along leading depth axis)
        ln1_g=jnp.ones((L, D), jnp.float32),
        ln1_b=jnp.zeros((L, D), jnp.float32),
        wq=nrm(ks[5], (L, D, D), 0.05),
        wk=nrm(ks[6], (L, D, D), 0.05),
        wv=nrm(ks[7], (L, D, D), 0.05),
        wo=nrm(ks[8], (L, D, D), 0.05),
        bo=jnp.zeros((L, D), jnp.float32),
        ln2_g=jnp.ones((L, D), jnp.float32),
        ln2_b=jnp.zeros((L, D), jnp.float32),
        ffw1=nrm(ks[9], (L, D, M), 0.05),
        ffb1=jnp.zeros((L, M), jnp.float32),
        ffw2=nrm(ks[10], (L, M, D), 0.05),
        ffb2=jnp.zeros((L, D), jnp.float32),
        # final norm
        fin_g=jnp.ones((D,), jnp.float32),
        fin_b=jnp.zeros((D,), jnp.float32),
        # output head (Flatten order: row-major (F, D) view of F*D)
        out_g=jnp.ones((F, D), jnp.float32),
        out_b=jnp.zeros((F, D), jnp.float32),
        out_w=nrm(ks[11], (F * D, 1), 0.05).reshape(F, D),
        out_bias=jnp.zeros((1, 1), jnp.float32),
    )


def _pack_params(p, heads):
    """Trace-time packing: fuse QKV (with folded scale) and group small vectors."""
    D = p['fe_w2'].shape[-1]
    hd = D // heads
    scale = 1.0 / math.sqrt(hd)
    gate = jnp.stack([p['gate_ln_g'], p['gate_ln_b'], p['gate_bias']], axis=0)    # (3, F)
    feH = jnp.stack([p['fe_w1'], p['fe_b1'], p['fe_ln1_g'], p['fe_ln1_b']], axis=0)  # (4, H)
    feD = jnp.stack([p['fe_b2'], p['fe_ln2_g'], p['fe_ln2_b'],
                     p['fin_g'], p['fin_b']], axis=0)                             # (5, D)
    wqkv = jnp.concatenate([p['wq'] * scale, p['wk'], p['wv']], axis=-1)          # (L, D, 3D)
    lvec = jnp.stack([p['ln1_g'], p['ln1_b'], p['bo'],
                      p['ln2_g'], p['ln2_b'], p['ffb2']], axis=1)                 # (L, 6, D)
    ffb1 = p['ffb1'][:, None, :]                                                  # (L, 1, M)
    head = jnp.stack([p['out_g'], p['out_b'], p['out_w']], axis=0)                # (3, F, D)
    vmem_params = (gate, feH, feD, p['fe_w2'], p['pos'], lvec, ffb1,
                   wqkv, p['wo'], p['ffw1'], p['ffw2'], head)
    return vmem_params, p['out_bias'].reshape(1, 1)


# --------------------------------------------------------------------------
# wrapper
# --------------------------------------------------------------------------
def _const_index_map(nd, i):
    return (0,) * nd


def _round_up(v, m):
    return ((v + m - 1) // m) * m


def _pick_batch_tile(B, F, D, H, M, heads, vmem_limit):
    if B <= 8:
        return B
    # rough per-row f32 activation footprint (residual, qkv, ffn hidden,
    # feature-embed hidden, per-head scores), x2 for compiler temporaries
    row_bytes = 4 * (F * (H + 8 * D + M) + heads * F * F) * 2
    fit = max(8, int((vmem_limit // 2) // row_bytes))   # half the limit for activations
    tb = min(fit, 1024)
    # guarantee >=2 grid tiles so ("parallel",) shards the batch across both
    # TensorCores on megacore parts (v7x); negligible overhead elsewhere.
    tb = min(tb, _round_up(pl.cdiv(B, 2), 8))
    return max(8, (tb // 8) * 8)


def rowwise_transformers(x, params, *, depth, heads):
    B, F = x.shape
    H, D = params['fe_w2'].shape
    M = params['ffw1'].shape[-1]

    # ---- VMEM budget / batch-tile selection (generation aware) ------------
    try:
        info = pltpu.get_tpu_info()
        vmem_cap = int(getattr(info, "vmem_capacity_bytes", 64 << 20))
    except Exception:
        vmem_cap = 64 << 20
    vmem_limit = min(int(vmem_cap * 0.75), 100 << 20)   # ~25% headroom

    tb = _pick_batch_tile(B, F, D, H, M, heads, vmem_limit)
    n_tiles = pl.cdiv(B, tb)
    b_pad = n_tiles * tb
    xp = x if b_pad == B else jnp.pad(x, ((0, b_pad - B), (0, 0)))

    vmem_params, out_bias = _pack_params(params, heads)

    # ---- BlockSpecs --------------------------------------------------------
    x_spec = pl.BlockSpec((tb, F), lambda i: (i, 0))
    param_specs = [pl.BlockSpec(p.shape, functools.partial(_const_index_map, p.ndim))
                   for p in vmem_params]                 # VMEM-resident params
    smem_spec = pl.BlockSpec(memory_space=pltpu.MemorySpace.SMEM)
    out_spec = pl.BlockSpec((tb, 1), lambda i: (i, 0))

    out = pl.pallas_call(
        functools.partial(rowwise_transformer_kernel, depth=depth, heads=heads),
        grid=(n_tiles,),
        out_shape=jax.ShapeDtypeStruct((b_pad, 1), jnp.float32),
        in_specs=[x_spec] + param_specs + [smem_spec],
        out_specs=out_spec,
        compiler_params=pltpu.CompilerParams(
            dimension_semantics=("parallel",),           # megacore sharding
            vmem_limit_bytes=vmem_limit),
    )(xp, *vmem_params, out_bias)
    return out[:B, 0]   # matches out.squeeze(-1) -> (B,)


if __name__ == "__main__":
    # small config consistent with the module: num_features=8, dim=32,
    # depth=2, heads=4, mlp_dim=64, dropout=0.0 (eval mode), hidden_dim=32
    B, F, D, DEPTH, HEADS, MLP, HID = 2, 8, 32, 2, 4, 64, 32

    key = jax.random.PRNGKey(0)
    kx, kp = jax.random.split(key)
    x = jax.random.normal(kx, (B, F), jnp.float32)
    params = init_params(kp, F, D, DEPTH, HEADS, MLP, HID)

    y = rowwise_transformers(x, params, depth=DEPTH, heads=HEADS)
    jax.block_until_ready(y)
    assert y.shape == (B,)
    print("KERNEL_OK")
</pallas_src>

<mosaic_0001>
module attributes {stable_mosaic.version = 11 : i64} {
  func.func @rowwise_transformer_kernel(%arg0: i32, %arg1: memref<2x8xf32, #tpu.memory_space<vmem>>, %arg2: memref<3x8xf32, #tpu.memory_space<vmem>>, %arg3: memref<4x32xf32, #tpu.memory_space<vmem>>, %arg4: memref<5x32xf32, #tpu.memory_space<vmem>>, %arg5: memref<32x32xf32, #tpu.memory_space<vmem>>, %arg6: memref<8x32xf32, #tpu.memory_space<vmem>>, %arg7: memref<2x6x32xf32, #tpu.memory_space<vmem>>, %arg8: memref<2x1x64xf32, #tpu.memory_space<vmem>>, %arg9: memref<2x32x96xf32, #tpu.memory_space<vmem>>, %arg10: memref<2x32x32xf32, #tpu.memory_space<vmem>>, %arg11: memref<2x32x64xf32, #tpu.memory_space<vmem>>, %arg12: memref<2x64x32xf32, #tpu.memory_space<vmem>>, %arg13: memref<3x8x32xf32, #tpu.memory_space<vmem>>, %arg14: memref<1x1xf32, #tpu.memory_space<smem>>, %arg15: memref<2x1xf32, #tpu.memory_space<vmem>>) attributes {dimension_semantics = [#tpu.dimension_semantics<parallel>], iteration_bounds = array<i64: 1>, scalar_prefetch = 0 : i64, scratch_operands = 0 : i64, tpu.core_type = #tpu.core_type<tc>, window_params = [{transform_indices = @transform_0, window_bounds = array<i64: 2, 8>}, {pipeline_mode = #tpu.pipeline_mode<synchronous>, transform_indices = @transform_1, window_bounds = array<i64: 3, 8>}, {pipeline_mode = #tpu.pipeline_mode<synchronous>, transform_indices = @transform_2, window_bounds = array<i64: 4, 32>}, {pipeline_mode = #tpu.pipeline_mode<synchronous>, transform_indices = @transform_3, window_bounds = array<i64: 5, 32>}, {pipeline_mode = #tpu.pipeline_mode<synchronous>, transform_indices = @transform_4, window_bounds = array<i64: 32, 32>}, {pipeline_mode = #tpu.pipeline_mode<synchronous>, transform_indices = @transform_5, window_bounds = array<i64: 8, 32>}, {pipeline_mode = #tpu.pipeline_mode<synchronous>, transform_indices = @transform_6, window_bounds = array<i64: 2, 6, 32>}, {pipeline_mode = #tpu.pipeline_mode<synchronous>, transform_indices = @transform_7, window_bounds = array<i64: 2, 1, 64>}, {pipeline_mode = #tpu.pipeline_mode<synchronous>, transform_indices = @transform_8, window_bounds = array<i64: 2, 32, 96>}, {pipeline_mode = #tpu.pipeline_mode<synchronous>, transform_indices = @transform_9, window_bounds = array<i64: 2, 32, 32>}, {pipeline_mode = #tpu.pipeline_mode<synchronous>, transform_indices = @transform_10, window_bounds = array<i64: 2, 32, 64>}, {pipeline_mode = #tpu.pipeline_mode<synchronous>, transform_indices = @transform_11, window_bounds = array<i64: 2, 64, 32>}, {pipeline_mode = #tpu.pipeline_mode<synchronous>, transform_indices = @transform_12, window_bounds = array<i64: 3, 8, 32>}, {transform_indices = @transform_13, window_bounds = array<i64: 1, 1>}, {transform_indices = @transform_14, window_bounds = array<i64: 2, 1>}]} {
    %c0 = arith.constant 0 : index
    %c0_0 = arith.constant 0 : index
    %0 = vector.load %arg1[%c0, %c0_0] : memref<2x8xf32, #tpu.memory_space<vmem>>, vector<2x8xf32>
    %c0_1 = arith.constant 0 : index
    %c0_2 = arith.constant 0 : index
    %1 = vector.load %arg2[%c0_1, %c0_2] : memref<3x8xf32, #tpu.memory_space<vmem>>, vector<3x8xf32>
    %2 = vector.extract_strided_slice %1 {offsets = [0, 0], sizes = [1, 8], strides = [1, 1]} : vector<3x8xf32> to vector<1x8xf32>
    %3 = vector.extract_strided_slice %1 {offsets = [1, 0], sizes = [1, 8], strides = [1, 1]} : vector<3x8xf32> to vector<1x8xf32>
    %cst = arith.constant dense<0.000000e+00> : vector<2xf32>
    %4 = vector.multi_reduction <add>, %0, %cst [1] : vector<2x8xf32> to vector<2xf32>
    %5 = vector.shape_cast %4 : vector<2xf32> to vector<2x1xf32>
    %cst_3 = arith.constant 8.000000e+00 : f32
    %6 = vector.broadcast %cst_3 : f32 to vector<2x1xf32>
    %7 = arith.divf %5, %6 : vector<2x1xf32>
    %8 = arith.mulf %0, %0 : vector<2x8xf32>
    %cst_4 = arith.constant dense<0.000000e+00> : vector<2xf32>
    %9 = vector.multi_reduction <add>, %8, %cst_4 [1] : vector<2x8xf32> to vector<2xf32>
    %10 = vector.shape_cast %9 : vector<2xf32> to vector<2x1xf32>
    %cst_5 = arith.constant 8.000000e+00 : f32
    %11 = vector.broadcast %cst_5 : f32 to vector<2x1xf32>
    %12 = arith.divf %10, %11 : vector<2x1xf32>
    %13 = arith.mulf %7, %7 : vector<2x1xf32>
    %14 = arith.subf %12, %13 : vector<2x1xf32>
    %cst_6 = arith.constant 0.000000e+00 : f32
    %15 = vector.broadcast %cst_6 : f32 to vector<2x1xf32>
    %16 = arith.maximumf %14, %15 : vector<2x1xf32>
    %17 = vector.broadcast %7 : vector<2x1xf32> to vector<2x8xf32>
    %18 = arith.subf %0, %17 : vector<2x8xf32>
    %cst_7 = arith.constant 9.99999974E-6 : f32
    %19 = vector.broadcast %cst_7 : f32 to vector<2x1xf32>
    %20 = arith.addf %16, %19 : vector<2x1xf32>
    %21 = math.rsqrt %20 : vector<2x1xf32>
    %22 = vector.broadcast %21 : vector<2x1xf32> to vector<2x8xf32>
    %23 = arith.mulf %18, %22 : vector<2x8xf32>
    %24 = vector.broadcast %2 : vector<1x8xf32> to vector<2x8xf32>
    %25 = arith.mulf %23, %24 : vector<2x8xf32>
    %26 = vector.broadcast %3 : vector<1x8xf32> to vector<2x8xf32>
    %27 = arith.addf %25, %26 : vector<2x8xf32>
    %cst_8 = arith.constant 0.333333343 : f32
    %28 = vector.broadcast %cst_8 : f32 to vector<2x8xf32>
    %29 = arith.mulf %27, %28 : vector<2x8xf32>
    %30 = vector.extract_strided_slice %1 {offsets = [2, 0], sizes = [1, 8], strides = [1, 1]} : vector<3x8xf32> to vector<1x8xf32>
    %31 = vector.broadcast %30 : vector<1x8xf32> to vector<2x8xf32>
    %32 = arith.addf %29, %31 : vector<2x8xf32>
    %33 = arith.negf %32 : vector<2x8xf32>
    %34 = math.exp %33 : vector<2x8xf32>
    %cst_9 = arith.constant 1.000000e+00 : f32
    %35 = vector.broadcast %cst_9 : f32 to vector<2x8xf32>
    %36 = arith.addf %35, %34 : vector<2x8xf32>
    %37 = arith.divf %35, %36 : vector<2x8xf32>
    %38 = arith.mulf %0, %37 : vector<2x8xf32>
    %c0_10 = arith.constant 0 : index
    %c0_11 = arith.constant 0 : index
    %39 = vector.load %arg3[%c0_10, %c0_11] : memref<4x32xf32, #tpu.memory_space<vmem>>, vector<4x32xf32>
    %40 = vector.extract_strided_slice %39 {offsets = [0, 0], sizes = [1, 32], strides = [1, 1]} : vector<4x32xf32> to vector<1x32xf32>
    %41 = vector.shape_cast %40 : vector<1x32xf32> to vector<1x1x32xf32>
    %42 = vector.extract_strided_slice %39 {offsets = [1, 0], sizes = [1, 32], strides = [1, 1]} : vector<4x32xf32> to vector<1x32xf32>
    %43 = vector.shape_cast %42 : vector<1x32xf32> to vector<1x1x32xf32>
    %44 = vector.shape_cast %38 : vector<2x8xf32> to vector<2x8x1xf32>
    %45 = vector.broadcast %44 : vector<2x8x1xf32> to vector<2x8x32xf32>
    %46 = vector.broadcast %41 : vector<1x1x32xf32> to vector<2x8x32xf32>
    %47 = arith.mulf %45, %46 : vector<2x8x32xf32>
    %48 = vector.broadcast %43 : vector<1x1x32xf32> to vector<2x8x32xf32>
    %49 = arith.addf %47, %48 : vector<2x8x32xf32>
    %cst_12 = arith.constant 5.000000e-01 : f32
    %50 = vector.broadcast %cst_12 : f32 to vector<2x8x32xf32>
    %51 = arith.mulf %50, %49 : vector<2x8x32xf32>
    %cst_13 = arith.constant 0.707106769 : f32
    %52 = vector.broadcast %cst_13 : f32 to vector<2x8x32xf32>
    %53 = arith.mulf %49, %52 : vector<2x8x32xf32>
    %54 = math.erf %53 : vector<2x8x32xf32>
    %cst_14 = arith.constant 1.000000e+00 : f32
    %55 = vector.broadcast %cst_14 : f32 to vector<2x8x32xf32>
    %56 = arith.addf %55, %54 : vector<2x8x32xf32>
    %57 = arith.mulf %51, %56 : vector<2x8x32xf32>
    %58 = vector.extract_strided_slice %39 {offsets = [2, 0], sizes = [1, 32], strides = [1, 1]} : vector<4x32xf32> to vector<1x32xf32>
    %59 = vector.extract_strided_slice %39 {offsets = [3, 0], sizes = [1, 32], strides = [1, 1]} : vector<4x32xf32> to vector<1x32xf32>
    %cst_15 = arith.constant dense<0.000000e+00> : vector<2x8xf32>
    %60 = vector.multi_reduction <add>, %57, %cst_15 [2] : vector<2x8x32xf32> to vector<2x8xf32>
    %61 = vector.shape_cast %60 : vector<2x8xf32> to vector<2x8x1xf32>
    %cst_16 = arith.constant 3.200000e+01 : f32
    %62 = vector.broadcast %cst_16 : f32 to vector<2x8x1xf32>
    %63 = arith.divf %61, %62 : vector<2x8x1xf32>
    %64 = arith.mulf %57, %57 : vector<2x8x32xf32>
    %cst_17 = arith.constant dense<0.000000e+00> : vector<2x8xf32>
    %65 = vector.multi_reduction <add>, %64, %cst_17 [2] : vector<2x8x32xf32> to vector<2x8xf32>
    %66 = vector.shape_cast %65 : vector<2x8xf32> to vector<2x8x1xf32>
    %cst_18 = arith.constant 3.200000e+01 : f32
    %67 = vector.broadcast %cst_18 : f32 to vector<2x8x1xf32>
    %68 = arith.divf %66, %67 : vector<2x8x1xf32>
    %69 = arith.mulf %63, %63 : vector<2x8x1xf32>
    %70 = arith.subf %68, %69 : vector<2x8x1xf32>
    %cst_19 = arith.constant 0.000000e+00 : f32
    %71 = vector.broadcast %cst_19 : f32 to vector<2x8x1xf32>
    %72 = arith.maximumf %70, %71 : vector<2x8x1xf32>
    %73 = vector.broadcast %63 : vector<2x8x1xf32> to vector<2x8x32xf32>
    %74 = arith.subf %57, %73 : vector<2x8x32xf32>
    %cst_20 = arith.constant 9.99999974E-6 : f32
    %75 = vector.broadcast %cst_20 : f32 to vector<2x8x1xf32>
    %76 = arith.addf %72, %75 : vector<2x8x1xf32>
    %77 = math.rsqrt %76 : vector<2x8x1xf32>
    %78 = vector.broadcast %77 : vector<2x8x1xf32> to vector<2x8x32xf32>
    %79 = arith.mulf %74, %78 : vector<2x8x32xf32>
    %80 = vector.shape_cast %58 : vector<1x32xf32> to vector<1x1x32xf32>
    %81 = vector.broadcast %80 : vector<1x1x32xf32> to vector<2x8x32xf32>
    %82 = arith.mulf %79, %81 : vector<2x8x32xf32>
    %83 = vector.shape_cast %59 : vector<1x32xf32> to vector<1x1x32xf32>
    %84 = vector.broadcast %83 : vector<1x1x32xf32> to vector<2x8x32xf32>
    %85 = arith.addf %82, %84 : vector<2x8x32xf32>
    %c0_21 = arith.constant 0 : index
    %c0_22 = arith.constant 0 : index
    %86 = vector.load %arg4[%c0_21, %c0_22] : memref<5x32xf32, #tpu.memory_space<vmem>>, vector<5x32xf32>
    %c0_23 = arith.constant 0 : index
    %c0_24 = arith.constant 0 : index
    %87 = vector.load %arg5[%c0_23, %c0_24] : memref<32x32xf32, #tpu.memory_space<vmem>>, vector<32x32xf32>
    %88 = vector.shape_cast %85 : vector<2x8x32xf32> to vector<16x32xf32>
    %cst_25 = arith.constant dense<0.000000e+00> : vector<16x32xf32>
    %89 = tpu.matmul %88, %87, %cst_25 {dimension_numbers = #tpu.dot_dimension_numbers<[1], [0], [0], [1], [0, 0, 1, 1], [], []>} : vector<16x32xf32>, vector<32x32xf32>, vector<16x32xf32> -> vector<16x32xf32>
    %90 = vector.extract_strided_slice %86 {offsets = [0, 0], sizes = [1, 32], strides = [1, 1]} : vector<5x32xf32> to vector<1x32xf32>
    %91 = vector.broadcast %90 : vector<1x32xf32> to vector<16x32xf32>
    %92 = arith.addf %89, %91 : vector<16x32xf32>
    %93 = vector.extract_strided_slice %86 {offsets = [1, 0], sizes = [1, 32], strides = [1, 1]} : vector<5x32xf32> to vector<1x32xf32>
    %94 = vector.extract_strided_slice %86 {offsets = [2, 0], sizes = [1, 32], strides = [1, 1]} : vector<5x32xf32> to vector<1x32xf32>
    %cst_26 = arith.constant dense<0.000000e+00> : vector<16xf32>
    %95 = vector.multi_reduction <add>, %92, %cst_26 [1] : vector<16x32xf32> to vector<16xf32>
    %96 = vector.shape_cast %95 : vector<16xf32> to vector<16x1xf32>
    %cst_27 = arith.constant 3.200000e+01 : f32
    %97 = vector.broadcast %cst_27 : f32 to vector<16x1xf32>
    %98 = arith.divf %96, %97 : vector<16x1xf32>
    %99 = arith.mulf %92, %92 : vector<16x32xf32>
    %cst_28 = arith.constant dense<0.000000e+00> : vector<16xf32>
    %100 = vector.multi_reduction <add>, %99, %cst_28 [1] : vector<16x32xf32> to vector<16xf32>
    %101 = vector.shape_cast %100 : vector<16xf32> to vector<16x1xf32>
    %cst_29 = arith.constant 3.200000e+01 : f32
    %102 = vector.broadcast %cst_29 : f32 to vector<16x1xf32>
    %103 = arith.divf %101, %102 : vector<16x1xf32>
    %104 = arith.mulf %98, %98 : vector<16x1xf32>
    %105 = arith.subf %103, %104 : vector<16x1xf32>
    %cst_30 = arith.constant 0.000000e+00 : f32
    %106 = vector.broadcast %cst_30 : f32 to vector<16x1xf32>
    %107 = arith.maximumf %105, %106 : vector<16x1xf32>
    %108 = vector.broadcast %98 : vector<16x1xf32> to vector<16x32xf32>
    %109 = arith.subf %92, %108 : vector<16x32xf32>
    %cst_31 = arith.constant 9.99999974E-6 : f32
    %110 = vector.broadcast %cst_31 : f32 to vector<16x1xf32>
    %111 = arith.addf %107, %110 : vector<16x1xf32>
    %112 = math.rsqrt %111 : vector<16x1xf32>
    %113 = vector.broadcast %112 : vector<16x1xf32> to vector<16x32xf32>
    %114 = arith.mulf %109, %113 : vector<16x32xf32>
    %115 = vector.broadcast %93 : vector<1x32xf32> to vector<16x32xf32>
    %116 = arith.mulf %114, %115 : vector<16x32xf32>
    %117 = vector.broadcast %94 : vector<1x32xf32> to vector<16x32xf32>
    %118 = arith.addf %116, %117 : vector<16x32xf32>
    %119 = vector.shape_cast %118 : vector<16x32xf32> to vector<2x8x32xf32>
    %c0_32 = arith.constant 0 : index
    %c0_33 = arith.constant 0 : index
    %120 = vector.load %arg6[%c0_32, %c0_33] : memref<8x32xf32, #tpu.memory_space<vmem>>, vector<8x32xf32>
    %121 = vector.shape_cast %120 : vector<8x32xf32> to vector<1x8x32xf32>
    %122 = vector.broadcast %121 : vector<1x8x32xf32> to vector<2x8x32xf32>
    %123 = arith.addf %119, %122 : vector<2x8x32xf32>
    %124 = vector.shape_cast %123 : vector<2x8x32xf32> to vector<16x32xf32>
    %c0_34 = arith.constant 0 : index
    %c0_35 = arith.constant 0 : index
    %c0_36 = arith.constant 0 : index
    %125 = vector.load %arg7[%c0_34, %c0_35, %c0_36] : memref<2x6x32xf32, #tpu.memory_space<vmem>>, vector<1x6x32xf32>
    %126 = vector.shape_cast %125 : vector<1x6x32xf32> to vector<6x32xf32>
    %c0_37 = arith.constant 0 : index
    %c0_38 = arith.constant 0 : index
    %c0_39 = arith.constant 0 : index
    %127 = vector.load %arg9[%c0_37, %c0_38, %c0_39] : memref<2x32x96xf32, #tpu.memory_space<vmem>>, vector<1x32x96xf32>
    %128 = vector.shape_cast %127 : vector<1x32x96xf32> to vector<32x96xf32>
    %c0_40 = arith.constant 0 : index
    %c0_41 = arith.constant 0 : index
    %c0_42 = arith.constant 0 : index
    %129 = vector.load %arg10[%c0_40, %c0_41, %c0_42] : memref<2x32x32xf32, #tpu.memory_space<vmem>>, vector<1x32x32xf32>
    %130 = vector.shape_cast %129 : vector<1x32x32xf32> to vector<32x32xf32>
    %c0_43 = arith.constant 0 : index
    %c0_44 = arith.constant 0 : index
    %c0_45 = arith.constant 0 : index
    %131 = vector.load %arg11[%c0_43, %c0_44, %c0_45] : memref<2x32x64xf32, #tpu.memory_space<vmem>>, vector<1x32x64xf32>
    %132 = vector.shape_cast %131 : vector<1x32x64xf32> to vector<32x64xf32>
    %c0_46 = arith.constant 0 : index
    %c0_47 = arith.constant 0 : index
    %c0_48 = arith.constant 0 : index
    %133 = vector.load %arg8[%c0_46, %c0_47, %c0_48] : memref<2x1x64xf32, #tpu.memory_space<vmem>>, vector<1x1x64xf32>
    %134 = vector.shape_cast %133 : vector<1x1x64xf32> to vector<1x64xf32>
    %c0_49 = arith.constant 0 : index
    %c0_50 = arith.constant 0 : index
    %c0_51 = arith.constant 0 : index
    %135 = vector.load %arg12[%c0_49, %c0_50, %c0_51] : memref<2x64x32xf32, #tpu.memory_space<vmem>>, vector<1x64x32xf32>
    %136 = vector.shape_cast %135 : vector<1x64x32xf32> to vector<64x32xf32>
    %137 = vector.extract_strided_slice %126 {offsets = [0, 0], sizes = [1, 32], strides = [1, 1]} : vector<6x32xf32> to vector<1x32xf32>
    %138 = vector.extract_strided_slice %126 {offsets = [1, 0], sizes = [1, 32], strides = [1, 1]} : vector<6x32xf32> to vector<1x32xf32>
    %cst_52 = arith.constant dense<0.000000e+00> : vector<16xf32>
    %139 = vector.multi_reduction <add>, %124, %cst_52 [1] : vector<16x32xf32> to vector<16xf32>
    %140 = vector.shape_cast %139 : vector<16xf32> to vector<16x1xf32>
    %cst_53 = arith.constant 3.200000e+01 : f32
    %141 = vector.broadcast %cst_53 : f32 to vector<16x1xf32>
    %142 = arith.divf %140, %141 : vector<16x1xf32>
    %143 = arith.mulf %124, %124 : vector<16x32xf32>
    %cst_54 = arith.constant dense<0.000000e+00> : vector<16xf32>
    %144 = vector.multi_reduction <add>, %143, %cst_54 [1] : vector<16x32xf32> to vector<16xf32>
    %145 = vector.shape_cast %144 : vector<16xf32> to vector<16x1xf32>
    %cst_55 = arith.constant 3.200000e+01 : f32
    %146 = vector.broadcast %cst_55 : f32 to vector<16x1xf32>
    %147 = arith.divf %145, %146 : vector<16x1xf32>
    %148 = arith.mulf %142, %142 : vector<16x1xf32>
    %149 = arith.subf %147, %148 : vector<16x1xf32>
    %cst_56 = arith.constant 0.000000e+00 : f32
    %150 = vector.broadcast %cst_56 : f32 to vector<16x1xf32>
    %151 = arith.maximumf %149, %150 : vector<16x1xf32>
    %152 = vector.broadcast %142 : vector<16x1xf32> to vector<16x32xf32>
    %153 = arith.subf %124, %152 : vector<16x32xf32>
    %cst_57 = arith.constant 9.99999974E-6 : f32
    %154 = vector.broadcast %cst_57 : f32 to vector<16x1xf32>
    %155 = arith.addf %151, %154 : vector<16x1xf32>
    %156 = math.rsqrt %155 : vector<16x1xf32>
    %157 = vector.broadcast %156 : vector<16x1xf32> to vector<16x32xf32>
    %158 = arith.mulf %153, %157 : vector<16x32xf32>
    %159 = vector.broadcast %137 : vector<1x32xf32> to vector<16x32xf32>
    %160 = arith.mulf %158, %159 : vector<16x32xf32>
    %161 = vector.broadcast %138 : vector<1x32xf32> to vector<16x32xf32>
    %162 = arith.addf %160, %161 : vector<16x32xf32>
    %cst_58 = arith.constant dense<0.000000e+00> : vector<16x96xf32>
    %163 = tpu.matmul %162, %128, %cst_58 {dimension_numbers = #tpu.dot_dimension_numbers<[1], [0], [0], [1], [0, 0, 1, 1], [], []>} : vector<16x32xf32>, vector<32x96xf32>, vector<16x96xf32> -> vector<16x96xf32>
    %164 = vector.extract_strided_slice %163 {offsets = [0, 0], sizes = [16, 32], strides = [1, 1]} : vector<16x96xf32> to vector<16x32xf32>
    %165 = vector.shape_cast %164 : vector<16x32xf32> to vector<2x8x32xf32>
    %166 = vector.extract_strided_slice %163 {offsets = [0, 32], sizes = [16, 32], strides = [1, 1]} : vector<16x96xf32> to vector<16x32xf32>
    %167 = vector.shape_cast %166 : vector<16x32xf32> to vector<2x8x32xf32>
    %168 = vector.extract_strided_slice %163 {offsets = [0, 64], sizes = [16, 32], strides = [1, 1]} : vector<16x96xf32> to vector<16x32xf32>
    %169 = vector.shape_cast %168 : vector<16x32xf32> to vector<2x8x32xf32>
    %cst_59 = arith.constant 0.000000e+00 : f32
    %170 = vector.broadcast %cst_59 : f32 to vector<16x32xf32>
    %171 = vector.extract_strided_slice %165 {offsets = [0, 0, 0], sizes = [2, 8, 8], strides = [1, 1, 1]} : vector<2x8x32xf32> to vector<2x8x8xf32>
    %172 = vector.extract_strided_slice %167 {offsets = [0, 0, 0], sizes = [2, 8, 8], strides = [1, 1, 1]} : vector<2x8x32xf32> to vector<2x8x8xf32>
    "tpu.trace_start"() <{level = 10 : i32, message = "bqc,bkc->bqk"}> : () -> ()
    %cst_60 = arith.constant dense<0.000000e+00> : vector<2x8x8xf32>
    %173 = tpu.matmul %171, %172, %cst_60 {dimension_numbers = #tpu.dot_dimension_numbers<[2], [2], [1], [1], [0, 0, 0, 1, 1, 1], [0], [0]>} : vector<2x8x8xf32>, vector<2x8x8xf32>, vector<2x8x8xf32> -> vector<2x8x8xf32>
    "tpu.trace_stop"() : () -> ()
    %cst_61 = arith.constant dense<0xFF800000> : vector<2x8xf32>
    %174 = vector.multi_reduction <maximumf>, %173, %cst_61 [2] : vector<2x8x8xf32> to vector<2x8xf32>
    %175 = vector.shape_cast %174 : vector<2x8xf32> to vector<2x8x1xf32>
    %176 = vector.broadcast %175 : vector<2x8x1xf32> to vector<2x8x8xf32>
    %177 = arith.subf %173, %176 : vector<2x8x8xf32>
    %178 = math.exp %177 : vector<2x8x8xf32>
    %cst_62 = arith.constant dense<0.000000e+00> : vector<2x8xf32>
    %179 = vector.multi_reduction <add>, %178, %cst_62 [2] : vector<2x8x8xf32> to vector<2x8xf32>
    %180 = vector.shape_cast %179 : vector<2x8xf32> to vector<2x8x1xf32>
    %cst_63 = arith.constant 1.000000e+00 : f32
    %181 = vector.broadcast %cst_63 : f32 to vector<2x8x1xf32>
    %182 = arith.divf %181, %180 : vector<2x8x1xf32>
    %183 = vector.broadcast %182 : vector<2x8x1xf32> to vector<2x8x8xf32>
    %184 = arith.mulf %178, %183 : vector<2x8x8xf32>
    %185 = vector.extract_strided_slice %169 {offsets = [0, 0, 0], sizes = [2, 8, 8], strides = [1, 1, 1]} : vector<2x8x32xf32> to vector<2x8x8xf32>
    "tpu.trace_start"() <{level = 10 : i32, message = "bqk,bkc->bqc"}> : () -> ()
    %cst_64 = arith.constant dense<0.000000e+00> : vector<2x8x8xf32>
    %186 = tpu.matmul %184, %185, %cst_64 {dimension_numbers = #tpu.dot_dimension_numbers<[2], [1], [1], [2], [0, 0, 0, 1, 1, 2], [0], [0]>} : vector<2x8x8xf32>, vector<2x8x8xf32>, vector<2x8x8xf32> -> vector<2x8x8xf32>
    "tpu.trace_stop"() : () -> ()
    %187 = vector.shape_cast %186 : vector<2x8x8xf32> to vector<16x8xf32>
    %188 = vector.extract_strided_slice %130 {offsets = [0, 0], sizes = [8, 32], strides = [1, 1]} : vector<32x32xf32> to vector<8x32xf32>
    %cst_65 = arith.constant dense<0.000000e+00> : vector<16x32xf32>
    %189 = tpu.matmul %187, %188, %cst_65 {dimension_numbers = #tpu.dot_dimension_numbers<[1], [0], [0], [1], [0, 0, 1, 1], [], []>} : vector<16x8xf32>, vector<8x32xf32>, vector<16x32xf32> -> vector<16x32xf32>
    %190 = arith.addf %170, %189 : vector<16x32xf32>
    %191 = vector.extract_strided_slice %165 {offsets = [0, 0, 8], sizes = [2, 8, 8], strides = [1, 1, 1]} : vector<2x8x32xf32> to vector<2x8x8xf32>
    %192 = vector.extract_strided_slice %167 {offsets = [0, 0, 8], sizes = [2, 8, 8], strides = [1, 1, 1]} : vector<2x8x32xf32> to vector<2x8x8xf32>
    "tpu.trace_start"() <{level = 10 : i32, message = "bqc,bkc->bqk"}> : () -> ()
    %cst_66 = arith.constant dense<0.000000e+00> : vector<2x8x8xf32>
    %193 = tpu.matmul %191, %192, %cst_66 {dimension_numbers = #tpu.dot_dimension_numbers<[2], [2], [1], [1], [0, 0, 0, 1, 1, 1], [0], [0]>} : vector<2x8x8xf32>, vector<2x8x8xf32>, vector<2x8x8xf32> -> vector<2x8x8xf32>
    "tpu.trace_stop"() : () -> ()
    %cst_67 = arith.constant dense<0xFF800000> : vector<2x8xf32>
    %194 = vector.multi_reduction <maximumf>, %193, %cst_67 [2] : vector<2x8x8xf32> to vector<2x8xf32>
    %195 = vector.shape_cast %194 : vector<2x8xf32> to vector<2x8x1xf32>
    %196 = vector.broadcast %195 : vector<2x8x1xf32> to vector<2x8x8xf32>
    %197 = arith.subf %193, %196 : vector<2x8x8xf32>
    %198 = math.exp %197 : vector<2x8x8xf32>
    %cst_68 = arith.constant dense<0.000000e+00> : vector<2x8xf32>
    %199 = vector.multi_reduction <add>, %198, %cst_68 [2] : vector<2x8x8xf32> to vector<2x8xf32>
    %200 = vector.shape_cast %199 : vector<2x8xf32> to vector<2x8x1xf32>
    %cst_69 = arith.constant 1.000000e+00 : f32
    %201 = vector.broadcast %cst_69 : f32 to vector<2x8x1xf32>
    %202 = arith.divf %201, %200 : vector<2x8x1xf32>
    %203 = vector.broadcast %202 : vector<2x8x1xf32> to vector<2x8x8xf32>
    %204 = arith.mulf %198, %203 : vector<2x8x8xf32>
    %205 = vector.extract_strided_slice %169 {offsets = [0, 0, 8], sizes = [2, 8, 8], strides = [1, 1, 1]} : vector<2x8x32xf32> to vector<2x8x8xf32>
    "tpu.trace_start"() <{level = 10 : i32, message = "bqk,bkc->bqc"}> : () -> ()
    %cst_70 = arith.constant dense<0.000000e+00> : vector<2x8x8xf32>
    %206 = tpu.matmul %204, %205, %cst_70 {dimension_numbers = #tpu.dot_dimension_numbers<[2], [1], [1], [2], [0, 0, 0, 1, 1, 2], [0], [0]>} : vector<2x8x8xf32>, vector<2x8x8xf32>, vector<2x8x8xf32> -> vector<2x8x8xf32>
    "tpu.trace_stop"() : () -> ()
    %207 = vector.shape_cast %206 : vector<2x8x8xf32> to vector<16x8xf32>
    %208 = vector.extract_strided_slice %130 {offsets = [8, 0], sizes = [8, 32], strides = [1, 1]} : vector<32x32xf32> to vector<8x32xf32>
    %cst_71 = arith.constant dense<0.000000e+00> : vector<16x32xf32>
    %209 = tpu.matmul %207, %208, %cst_71 {dimension_numbers = #tpu.dot_dimension_numbers<[1], [0], [0], [1], [0, 0, 1, 1], [], []>} : vector<16x8xf32>, vector<8x32xf32>, vector<16x32xf32> -> vector<16x32xf32>
    %210 = arith.addf %190, %209 : vector<16x32xf32>
    %211 = vector.extract_strided_slice %165 {offsets = [0, 0, 16], sizes = [2, 8, 8], strides = [1, 1, 1]} : vector<2x8x32xf32> to vector<2x8x8xf32>
    %212 = vector.extract_strided_slice %167 {offsets = [0, 0, 16], sizes = [2, 8, 8], strides = [1, 1, 1]} : vector<2x8x32xf32> to vector<2x8x8xf32>
    "tpu.trace_start"() <{level = 10 : i32, message = "bqc,bkc->bqk"}> : () -> ()
    %cst_72 = arith.constant dense<0.000000e+00> : vector<2x8x8xf32>
    %213 = tpu.matmul %211, %212, %cst_72 {dimension_numbers = #tpu.dot_dimension_numbers<[2], [2], [1], [1], [0, 0, 0, 1, 1, 1], [0], [0]>} : vector<2x8x8xf32>, vector<2x8x8xf32>, vector<2x8x8xf32> -> vector<2x8x8xf32>
    "tpu.trace_stop"() : () -> ()
    %cst_73 = arith.constant dense<0xFF800000> : vector<2x8xf32>
    %214 = vector.multi_reduction <maximumf>, %213, %cst_73 [2] : vector<2x8x8xf32> to vector<2x8xf32>
    %215 = vector.shape_cast %214 : vector<2x8xf32> to vector<2x8x1xf32>
    %216 = vector.broadcast %215 : vector<2x8x1xf32> to vector<2x8x8xf32>
    %217 = arith.subf %213, %216 : vector<2x8x8xf32>
    %218 = math.exp %217 : vector<2x8x8xf32>
    %cst_74 = arith.constant dense<0.000000e+00> : vector<2x8xf32>
    %219 = vector.multi_reduction <add>, %218, %cst_74 [2] : vector<2x8x8xf32> to vector<2x8xf32>
    %220 = vector.shape_cast %219 : vector<2x8xf32> to vector<2x8x1xf32>
    %cst_75 = arith.constant 1.000000e+00 : f32
    %221 = vector.broadcast %cst_75 : f32 to vector<2x8x1xf32>
    %222 = arith.divf %221, %220 : vector<2x8x1xf32>
    %223 = vector.broadcast %222 : vector<2x8x1xf32> to vector<2x8x8xf32>
    %224 = arith.mulf %218, %223 : vector<2x8x8xf32>
    %225 = vector.extract_strided_slice %169 {offsets = [0, 0, 16], sizes = [2, 8, 8], strides = [1, 1, 1]} : vector<2x8x32xf32> to vector<2x8x8xf32>
    "tpu.trace_start"() <{level = 10 : i32, message = "bqk,bkc->bqc"}> : () -> ()
    %cst_76 = arith.constant dense<0.000000e+00> : vector<2x8x8xf32>
    %226 = tpu.matmul %224, %225, %cst_76 {dimension_numbers = #tpu.dot_dimension_numbers<[2], [1], [1], [2], [0, 0, 0, 1, 1, 2], [0], [0]>} : vector<2x8x8xf32>, vector<2x8x8xf32>, vector<2x8x8xf32> -> vector<2x8x8xf32>
    "tpu.trace_stop"() : () -> ()
    %227 = vector.shape_cast %226 : vector<2x8x8xf32> to vector<16x8xf32>
    %228 = vector.extract_strided_slice %130 {offsets = [16, 0], sizes = [8, 32], strides = [1, 1]} : vector<32x32xf32> to vector<8x32xf32>
    %cst_77 = arith.constant dense<0.000000e+00> : vector<16x32xf32>
    %229 = tpu.matmul %227, %228, %cst_77 {dimension_numbers = #tpu.dot_dimension_numbers<[1], [0], [0], [1], [0, 0, 1, 1], [], []>} : vector<16x8xf32>, vector<8x32xf32>, vector<16x32xf32> -> vector<16x32xf32>
    %230 = arith.addf %210, %229 : vector<16x32xf32>
    %231 = vector.extract_strided_slice %165 {offsets = [0, 0, 24], sizes = [2, 8, 8], strides = [1, 1, 1]} : vector<2x8x32xf32> to vector<2x8x8xf32>
    %232 = vector.extract_strided_slice %167 {offsets = [0, 0, 24], sizes = [2, 8, 8], strides = [1, 1, 1]} : vector<2x8x32xf32> to vector<2x8x8xf32>
    "tpu.trace_start"() <{level = 10 : i32, message = "bqc,bkc->bqk"}> : () -> ()
    %cst_78 = arith.constant dense<0.000000e+00> : vector<2x8x8xf32>
    %233 = tpu.matmul %231, %232, %cst_78 {dimension_numbers = #tpu.dot_dimension_numbers<[2], [2], [1], [1], [0, 0, 0, 1, 1, 1], [0], [0]>} : vector<2x8x8xf32>, vector<2x8x8xf32>, vector<2x8x8xf32> -> vector<2x8x8xf32>
    "tpu.trace_stop"() : () -> ()
    %cst_79 = arith.constant dense<0xFF800000> : vector<2x8xf32>
    %234 = vector.multi_reduction <maximumf>, %233, %cst_79 [2] : vector<2x8x8xf32> to vector<2x8xf32>
    %235 = vector.shape_cast %234 : vector<2x8xf32> to vector<2x8x1xf32>
    %236 = vector.broadcast %235 : vector<2x8x1xf32> to vector<2x8x8xf32>
    %237 = arith.subf %233, %236 : vector<2x8x8xf32>
    %238 = math.exp %237 : vector<2x8x8xf32>
    %cst_80 = arith.constant dense<0.000000e+00> : vector<2x8xf32>
    %239 = vector.multi_reduction <add>, %238, %cst_80 [2] : vector<2x8x8xf32> to vector<2x8xf32>
    %240 = vector.shape_cast %239 : vector<2x8xf32> to vector<2x8x1xf32>
    %cst_81 = arith.constant 1.000000e+00 : f32
    %241 = vector.broadcast %cst_81 : f32 to vector<2x8x1xf32>
    %242 = arith.divf %241, %240 : vector<2x8x1xf32>
    %243 = vector.broadcast %242 : vector<2x8x1xf32> to vector<2x8x8xf32>
    %244 = arith.mulf %238, %243 : vector<2x8x8xf32>
    %245 = vector.extract_strided_slice %169 {offsets = [0, 0, 24], sizes = [2, 8, 8], strides = [1, 1, 1]} : vector<2x8x32xf32> to vector<2x8x8xf32>
    "tpu.trace_start"() <{level = 10 : i32, message = "bqk,bkc->bqc"}> : () -> ()
    %cst_82 = arith.constant dense<0.000000e+00> : vector<2x8x8xf32>
    %246 = tpu.matmul %244, %245, %cst_82 {dimension_numbers = #tpu.dot_dimension_numbers<[2], [1], [1], [2], [0, 0, 0, 1, 1, 2], [0], [0]>} : vector<2x8x8xf32>, vector<2x8x8xf32>, vector<2x8x8xf32> -> vector<2x8x8xf32>
    "tpu.trace_stop"() : () -> ()
    %247 = vector.shape_cast %246 : vector<2x8x8xf32> to vector<16x8xf32>
    %248 = vector.extract_strided_slice %130 {offsets = [24, 0], sizes = [8, 32], strides = [1, 1]} : vector<32x32xf32> to vector<8x32xf32>
    %cst_83 = arith.constant dense<0.000000e+00> : vector<16x32xf32>
    %249 = tpu.matmul %247, %248, %cst_83 {dimension_numbers = #tpu.dot_dimension_numbers<[1], [0], [0], [1], [0, 0, 1, 1], [], []>} : vector<16x8xf32>, vector<8x32xf32>, vector<16x32xf32> -> vector<16x32xf32>
    %250 = arith.addf %230, %249 : vector<16x32xf32>
    %251 = arith.addf %124, %250 : vector<16x32xf32>
    %252 = vector.extract_strided_slice %126 {offsets = [2, 0], sizes = [1, 32], strides = [1, 1]} : vector<6x32xf32> to vector<1x32xf32>
    %253 = vector.broadcast %252 : vector<1x32xf32> to vector<16x32xf32>
    %254 = arith.addf %251, %253 : vector<16x32xf32>
    %255 = vector.extract_strided_slice %126 {offsets = [3, 0], sizes = [1, 32], strides = [1, 1]} : vector<6x32xf32> to vector<1x32xf32>
    %256 = vector.extract_strided_slice %126 {offsets = [4, 0], sizes = [1, 32], strides = [1, 1]} : vector<6x32xf32> to vector<1x32xf32>
    %cst_84 = arith.constant dense<0.000000e+00> : vector<16xf32>
    %257 = vector.multi_reduction <add>, %254, %cst_84 [1] : vector<16x32xf32> to vector<16xf32>
    %258 = vector.shape_cast %257 : vector<16xf32> to vector<16x1xf32>
    %cst_85 = arith.constant 3.200000e+01 : f32
    %259 = vector.broadcast %cst_85 : f32 to vector<16x1xf32>
    %260 = arith.divf %258, %259 : vector<16x1xf32>
    %261 = arith.mulf %254, %254 : vector<16x32xf32>
    %cst_86 = arith.constant dense<0.000000e+00> : vector<16xf32>
    %262 = vector.multi_reduction <add>, %261, %cst_86 [1] : vector<16x32xf32> to vector<16xf32>
    %263 = vector.shape_cast %262 : vector<16xf32> to vector<16x1xf32>
    %cst_87 = arith.constant 3.200000e+01 : f32
    %264 = vector.broadcast %cst_87 : f32 to vector<16x1xf32>
    %265 = arith.divf %263, %264 : vector<16x1xf32>
    %266 = arith.mulf %260, %260 : vector<16x1xf32>
    %267 = arith.subf %265, %266 : vector<16x1xf32>
    %cst_88 = arith.constant 0.000000e+00 : f32
    %268 = vector.broadcast %cst_88 : f32 to vector<16x1xf32>
    %269 = arith.maximumf %267, %268 : vector<16x1xf32>
    %270 = vector.broadcast %260 : vector<16x1xf32> to vector<16x32xf32>
    %271 = arith.subf %254, %270 : vector<16x32xf32>
    %cst_89 = arith.constant 9.99999974E-6 : f32
    %272 = vector.broadcast %cst_89 : f32 to vector<16x1xf32>
    %273 = arith.addf %269, %272 : vector<16x1xf32>
    %274 = math.rsqrt %273 : vector<16x1xf32>
    %275 = vector.broadcast %274 : vector<16x1xf32> to vector<16x32xf32>
    %276 = arith.mulf %271, %275 : vector<16x32xf32>
    %277 = vector.broadcast %255 : vector<1x32xf32> to vector<16x32xf32>
    %278 = arith.mulf %276, %277 : vector<16x32xf32>
    %279 = vector.broadcast %256 : vector<1x32xf32> to vector<16x32xf32>
    %280 = arith.addf %278, %279 : vector<16x32xf32>
    %cst_90 = arith.constant dense<0.000000e+00> : vector<16x64xf32>
    %281 = tpu.matmul %280, %132, %cst_90 {dimension_numbers = #tpu.dot_dimension_numbers<[1], [0], [0], [1], [0, 0, 1, 1], [], []>} : vector<16x32xf32>, vector<32x64xf32>, vector<16x64xf32> -> vector<16x64xf32>
    %282 = vector.broadcast %134 : vector<1x64xf32> to vector<16x64xf32>
    %283 = arith.addf %281, %282 : vector<16x64xf32>
    %cst_91 = arith.constant 5.000000e-01 : f32
    %284 = vector.broadcast %cst_91 : f32 to vector<16x64xf32>
    %285 = arith.mulf %284, %283 : vector<16x64xf32>
    %cst_92 = arith.constant 0.707106769 : f32
    %286 = vector.broadcast %cst_92 : f32 to vector<16x64xf32>
    %287 = arith.mulf %283, %286 : vector<16x64xf32>
    %288 = math.erf %287 : vector<16x64xf32>
    %cst_93 = arith.constant 1.000000e+00 : f32
    %289 = vector.broadcast %cst_93 : f32 to vector<16x64xf32>
    %290 = arith.addf %289, %288 : vector<16x64xf32>
    %291 = arith.mulf %285, %290 : vector<16x64xf32>
    %cst_94 = arith.constant dense<0.000000e+00> : vector<16x32xf32>
    %292 = tpu.matmul %291, %136, %cst_94 {dimension_numbers = #tpu.dot_dimension_numbers<[1], [0], [0], [1], [0, 0, 1, 1], [], []>} : vector<16x64xf32>, vector<64x32xf32>, vector<16x32xf32> -> vector<16x32xf32>
    %293 = arith.addf %254, %292 : vector<16x32xf32>
    %294 = vector.extract_strided_slice %126 {offsets = [5, 0], sizes = [1, 32], strides = [1, 1]} : vector<6x32xf32> to vector<1x32xf32>
    %295 = vector.broadcast %294 : vector<1x32xf32> to vector<16x32xf32>
    %296 = arith.addf %293, %295 : vector<16x32xf32>
    %c1 = arith.constant 1 : index
    %c0_95 = arith.constant 0 : index
    %c0_96 = arith.constant 0 : index
    %297 = vector.load %arg7[%c1, %c0_95, %c0_96] : memref<2x6x32xf32, #tpu.memory_space<vmem>>, vector<1x6x32xf32>
    %298 = vector.shape_cast %297 : vector<1x6x32xf32> to vector<6x32xf32>
    %c1_97 = arith.constant 1 : index
    %c0_98 = arith.constant 0 : index
    %c0_99 = arith.constant 0 : index
    %299 = vector.load %arg9[%c1_97, %c0_98, %c0_99] : memref<2x32x96xf32, #tpu.memory_space<vmem>>, vector<1x32x96xf32>
    %300 = vector.shape_cast %299 : vector<1x32x96xf32> to vector<32x96xf32>
    %c1_100 = arith.constant 1 : index
    %c0_101 = arith.constant 0 : index
    %c0_102 = arith.constant 0 : index
    %301 = vector.load %arg10[%c1_100, %c0_101, %c0_102] : memref<2x32x32xf32, #tpu.memory_space<vmem>>, vector<1x32x32xf32>
    %302 = vector.shape_cast %301 : vector<1x32x32xf32> to vector<32x32xf32>
    %c1_103 = arith.constant 1 : index
    %c0_104 = arith.constant 0 : index
    %c0_105 = arith.constant 0 : index
    %303 = vector.load %arg11[%c1_103, %c0_104, %c0_105] : memref<2x32x64xf32, #tpu.memory_space<vmem>>, vector<1x32x64xf32>
    %304 = vector.shape_cast %303 : vector<1x32x64xf32> to vector<32x64xf32>
    %c1_106 = arith.constant 1 : index
    %c0_107 = arith.constant 0 : index
    %c0_108 = arith.constant 0 : index
    %305 = vector.load %arg8[%c1_106, %c0_107, %c0_108] : memref<2x1x64xf32, #tpu.memory_space<vmem>>, vector<1x1x64xf32>
    %306 = vector.shape_cast %305 : vector<1x1x64xf32> to vector<1x64xf32>
    %c1_109 = arith.constant 1 : index
    %c0_110 = arith.constant 0 : index
    %c0_111 = arith.constant 0 : index
    %307 = vector.load %arg12[%c1_109, %c0_110, %c0_111] : memref<2x64x32xf32, #tpu.memory_space<vmem>>, vector<1x64x32xf32>
    %308 = vector.shape_cast %307 : vector<1x64x32xf32> to vector<64x32xf32>
    %309 = vector.extract_strided_slice %298 {offsets = [0, 0], sizes = [1, 32], strides = [1, 1]} : vector<6x32xf32> to vector<1x32xf32>
    %310 = vector.extract_strided_slice %298 {offsets = [1, 0], sizes = [1, 32], strides = [1, 1]} : vector<6x32xf32> to vector<1x32xf32>
    %cst_112 = arith.constant dense<0.000000e+00> : vector<16xf32>
    %311 = vector.multi_reduction <add>, %296, %cst_112 [1] : vector<16x32xf32> to vector<16xf32>
    %312 = vector.shape_cast %311 : vector<16xf32> to vector<16x1xf32>
    %cst_113 = arith.constant 3.200000e+01 : f32
    %313 = vector.broadcast %cst_113 : f32 to vector<16x1xf32>
    %314 = arith.divf %312, %313 : vector<16x1xf32>
    %315 = arith.mulf %296, %296 : vector<16x32xf32>
    %cst_114 = arith.constant dense<0.000000e+00> : vector<16xf32>
    %316 = vector.multi_reduction <add>, %315, %cst_114 [1] : vector<16x32xf32> to vector<16xf32>
    %317 = vector.shape_cast %316 : vector<16xf32> to vector<16x1xf32>
    %cst_115 = arith.constant 3.200000e+01 : f32
    %318 = vector.broadcast %cst_115 : f32 to vector<16x1xf32>
    %319 = arith.divf %317, %318 : vector<16x1xf32>
    %320 = arith.mulf %314, %314 : vector<16x1xf32>
    %321 = arith.subf %319, %320 : vector<16x1xf32>
    %cst_116 = arith.constant 0.000000e+00 : f32
    %322 = vector.broadcast %cst_116 : f32 to vector<16x1xf32>
    %323 = arith.maximumf %321, %322 : vector<16x1xf32>
    %324 = vector.broadcast %314 : vector<16x1xf32> to vector<16x32xf32>
    %325 = arith.subf %296, %324 : vector<16x32xf32>
    %cst_117 = arith.constant 9.99999974E-6 : f32
    %326 = vector.broadcast %cst_117 : f32 to vector<16x1xf32>
    %327 = arith.addf %323, %326 : vector<16x1xf32>
    %328 = math.rsqrt %327 : vector<16x1xf32>
    %329 = vector.broadcast %328 : vector<16x1xf32> to vector<16x32xf32>
    %330 = arith.mulf %325, %329 : vector<16x32xf32>
    %331 = vector.broadcast %309 : vector<1x32xf32> to vector<16x32xf32>
    %332 = arith.mulf %330, %331 : vector<16x32xf32>
    %333 = vector.broadcast %310 : vector<1x32xf32> to vector<16x32xf32>
    %334 = arith.addf %332, %333 : vector<16x32xf32>
    %cst_118 = arith.constant dense<0.000000e+00> : vector<16x96xf32>
    %335 = tpu.matmul %334, %300, %cst_118 {dimension_numbers = #tpu.dot_dimension_numbers<[1], [0], [0], [1], [0, 0, 1, 1], [], []>} : vector<16x32xf32>, vector<32x96xf32>, vector<16x96xf32> -> vector<16x96xf32>
    %336 = vector.extract_strided_slice %335 {offsets = [0, 0], sizes = [16, 32], strides = [1, 1]} : vector<16x96xf32> to vector<16x32xf32>
    %337 = vector.shape_cast %336 : vector<16x32xf32> to vector<2x8x32xf32>
    %338 = vector.extract_strided_slice %335 {offsets = [0, 32], sizes = [16, 32], strides = [1, 1]} : vector<16x96xf32> to vector<16x32xf32>
    %339 = vector.shape_cast %338 : vector<16x32xf32> to vector<2x8x32xf32>
    %340 = vector.extract_strided_slice %335 {offsets = [0, 64], sizes = [16, 32], strides = [1, 1]} : vector<16x96xf32> to vector<16x32xf32>
    %341 = vector.shape_cast %340 : vector<16x32xf32> to vector<2x8x32xf32>
    %cst_119 = arith.constant 0.000000e+00 : f32
    %342 = vector.broadcast %cst_119 : f32 to vector<16x32xf32>
    %343 = vector.extract_strided_slice %337 {offsets = [0, 0, 0], sizes = [2, 8, 8], strides = [1, 1, 1]} : vector<2x8x32xf32> to vector<2x8x8xf32>
    %344 = vector.extract_strided_slice %339 {offsets = [0, 0, 0], sizes = [2, 8, 8], strides = [1, 1, 1]} : vector<2x8x32xf32> to vector<2x8x8xf32>
    "tpu.trace_start"() <{level = 10 : i32, message = "bqc,bkc->bqk"}> : () -> ()
    %cst_120 = arith.constant dense<0.000000e+00> : vector<2x8x8xf32>
    %345 = tpu.matmul %343, %344, %cst_120 {dimension_numbers = #tpu.dot_dimension_numbers<[2], [2], [1], [1], [0, 0, 0, 1, 1, 1], [0], [0]>} : vector<2x8x8xf32>, vector<2x8x8xf32>, vector<2x8x8xf32> -> vector<2x8x8xf32>
    "tpu.trace_stop"() : () -> ()
    %cst_121 = arith.constant dense<0xFF800000> : vector<2x8xf32>
    %346 = vector.multi_reduction <maximumf>, %345, %cst_121 [2] : vector<2x8x8xf32> to vector<2x8xf32>
    %347 = vector.shape_cast %346 : vector<2x8xf32> to vector<2x8x1xf32>
    %348 = vector.broadcast %347 : vector<2x8x1xf32> to vector<2x8x8xf32>
    %349 = arith.subf %345, %348 : vector<2x8x8xf32>
    %350 = math.exp %349 : vector<2x8x8xf32>
    %cst_122 = arith.constant dense<0.000000e+00> : vector<2x8xf32>
    %351 = vector.multi_reduction <add>, %350, %cst_122 [2] : vector<2x8x8xf32> to vector<2x8xf32>
    %352 = vector.shape_cast %351 : vector<2x8xf32> to vector<2x8x1xf32>
    %cst_123 = arith.constant 1.000000e+00 : f32
    %353 = vector.broadcast %cst_123 : f32 to vector<2x8x1xf32>
    %354 = arith.divf %353, %352 : vector<2x8x1xf32>
    %355 = vector.broadcast %354 : vector<2x8x1xf32> to vector<2x8x8xf32>
    %356 = arith.mulf %350, %355 : vector<2x8x8xf32>
    %357 = vector.extract_strided_slice %341 {offsets = [0, 0, 0], sizes = [2, 8, 8], strides = [1, 1, 1]} : vector<2x8x32xf32> to vector<2x8x8xf32>
    "tpu.trace_start"() <{level = 10 : i32, message = "bqk,bkc->bqc"}> : () -> ()
    %cst_124 = arith.constant dense<0.000000e+00> : vector<2x8x8xf32>
    %358 = tpu.matmul %356, %357, %cst_124 {dimension_numbers = #tpu.dot_dimension_numbers<[2], [1], [1], [2], [0, 0, 0, 1, 1, 2], [0], [0]>} : vector<2x8x8xf32>, vector<2x8x8xf32>, vector<2x8x8xf32> -> vector<2x8x8xf32>
    "tpu.trace_stop"() : () -> ()
    %359 = vector.shape_cast %358 : vector<2x8x8xf32> to vector<16x8xf32>
    %360 = vector.extract_strided_slice %302 {offsets = [0, 0], sizes = [8, 32], strides = [1, 1]} : vector<32x32xf32> to vector<8x32xf32>
    %cst_125 = arith.constant dense<0.000000e+00> : vector<16x32xf32>
    %361 = tpu.matmul %359, %360, %cst_125 {dimension_numbers = #tpu.dot_dimension_numbers<[1], [0], [0], [1], [0, 0, 1, 1], [], []>} : vector<16x8xf32>, vector<8x32xf32>, vector<16x32xf32> -> vector<16x32xf32>
    %362 = arith.addf %342, %361 : vector<16x32xf32>
    %363 = vector.extract_strided_slice %337 {offsets = [0, 0, 8], sizes = [2, 8, 8], strides = [1, 1, 1]} : vector<2x8x32xf32> to vector<2x8x8xf32>
    %364 = vector.extract_strided_slice %339 {offsets = [0, 0, 8], sizes = [2, 8, 8], strides = [1, 1, 1]} : vector<2x8x32xf32> to vector<2x8x8xf32>
    "tpu.trace_start"() <{level = 10 : i32, message = "bqc,bkc->bqk"}> : () -> ()
    %cst_126 = arith.constant dense<0.000000e+00> : vector<2x8x8xf32>
    %365 = tpu.matmul %363, %364, %cst_126 {dimension_numbers = #tpu.dot_dimension_numbers<[2], [2], [1], [1], [0, 0, 0, 1, 1, 1], [0], [0]>} : vector<2x8x8xf32>, vector<2x8x8xf32>, vector<2x8x8xf32> -> vector<2x8x8xf32>
    "tpu.trace_stop"() : () -> ()
    %cst_127 = arith.constant dense<0xFF800000> : vector<2x8xf32>
    %366 = vector.multi_reduction <maximumf>, %365, %cst_127 [2] : vector<2x8x8xf32> to vector<2x8xf32>
    %367 = vector.shape_cast %366 : vector<2x8xf32> to vector<2x8x1xf32>
    %368 = vector.broadcast %367 : vector<2x8x1xf32> to vector<2x8x8xf32>
    %369 = arith.subf %365, %368 : vector<2x8x8xf32>
    %370 = math.exp %369 : vector<2x8x8xf32>
    %cst_128 = arith.constant dense<0.000000e+00> : vector<2x8xf32>
    %371 = vector.multi_reduction <add>, %370, %cst_128 [2] : vector<2x8x8xf32> to vector<2x8xf32>
    %372 = vector.shape_cast %371 : vector<2x8xf32> to vector<2x8x1xf32>
    %cst_129 = arith.constant 1.000000e+00 : f32
    %373 = vector.broadcast %cst_129 : f32 to vector<2x8x1xf32>
    %374 = arith.divf %373, %372 : vector<2x8x1xf32>
    %375 = vector.broadcast %374 : vector<2x8x1xf32> to vector<2x8x8xf32>
    %376 = arith.mulf %370, %375 : vector<2x8x8xf32>
    %377 = vector.extract_strided_slice %341 {offsets = [0, 0, 8], sizes = [2, 8, 8], strides = [1, 1, 1]} : vector<2x8x32xf32> to vector<2x8x8xf32>
    "tpu.trace_start"() <{level = 10 : i32, message = "bqk,bkc->bqc"}> : () -> ()
    %cst_130 = arith.constant dense<0.000000e+00> : vector<2x8x8xf32>
    %378 = tpu.matmul %376, %377, %cst_130 {dimension_numbers = #tpu.dot_dimension_numbers<[2], [1], [1], [2], [0, 0, 0, 1, 1, 2], [0], [0]>} : vector<2x8x8xf32>, vector<2x8x8xf32>, vector<2x8x8xf32> -> vector<2x8x8xf32>
    "tpu.trace_stop"() : () -> ()
    %379 = vector.shape_cast %378 : vector<2x8x8xf32> to vector<16x8xf32>
    %380 = vector.extract_strided_slice %302 {offsets = [8, 0], sizes = [8, 32], strides = [1, 1]} : vector<32x32xf32> to vector<8x32xf32>
    %cst_131 = arith.constant dense<0.000000e+00> : vector<16x32xf32>
    %381 = tpu.matmul %379, %380, %cst_131 {dimension_numbers = #tpu.dot_dimension_numbers<[1], [0], [0], [1], [0, 0, 1, 1], [], []>} : vector<16x8xf32>, vector<8x32xf32>, vector<16x32xf32> -> vector<16x32xf32>
    %382 = arith.addf %362, %381 : vector<16x32xf32>
    %383 = vector.extract_strided_slice %337 {offsets = [0, 0, 16], sizes = [2, 8, 8], strides = [1, 1, 1]} : vector<2x8x32xf32> to vector<2x8x8xf32>
    %384 = vector.extract_strided_slice %339 {offsets = [0, 0, 16], sizes = [2, 8, 8], strides = [1, 1, 1]} : vector<2x8x32xf32> to vector<2x8x8xf32>
    "tpu.trace_start"() <{level = 10 : i32, message = "bqc,bkc->bqk"}> : () -> ()
    %cst_132 = arith.constant dense<0.000000e+00> : vector<2x8x8xf32>
    %385 = tpu.matmul %383, %384, %cst_132 {dimension_numbers = #tpu.dot_dimension_numbers<[2], [2], [1], [1], [0, 0, 0, 1, 1, 1], [0], [0]>} : vector<2x8x8xf32>, vector<2x8x8xf32>, vector<2x8x8xf32> -> vector<2x8x8xf32>
    "tpu.trace_stop"() : () -> ()
    %cst_133 = arith.constant dense<0xFF800000> : vector<2x8xf32>
    %386 = vector.multi_reduction <maximumf>, %385, %cst_133 [2] : vector<2x8x8xf32> to vector<2x8xf32>
    %387 = vector.shape_cast %386 : vector<2x8xf32> to vector<2x8x1xf32>
    %388 = vector.broadcast %387 : vector<2x8x1xf32> to vector<2x8x8xf32>
    %389 = arith.subf %385, %388 : vector<2x8x8xf32>
    %390 = math.exp %389 : vector<2x8x8xf32>
    %cst_134 = arith.constant dense<0.000000e+00> : vector<2x8xf32>
    %391 = vector.multi_reduction <add>, %390, %cst_134 [2] : vector<2x8x8xf32> to vector<2x8xf32>
    %392 = vector.shape_cast %391 : vector<2x8xf32> to vector<2x8x1xf32>
    %cst_135 = arith.constant 1.000000e+00 : f32
    %393 = vector.broadcast %cst_135 : f32 to vector<2x8x1xf32>
    %394 = arith.divf %393, %392 : vector<2x8x1xf32>
    %395 = vector.broadcast %394 : vector<2x8x1xf32> to vector<2x8x8xf32>
    %396 = arith.mulf %390, %395 : vector<2x8x8xf32>
    %397 = vector.extract_strided_slice %341 {offsets = [0, 0, 16], sizes = [2, 8, 8], strides = [1, 1, 1]} : vector<2x8x32xf32> to vector<2x8x8xf32>
    "tpu.trace_start"() <{level = 10 : i32, message = "bqk,bkc->bqc"}> : () -> ()
    %cst_136 = arith.constant dense<0.000000e+00> : vector<2x8x8xf32>
    %398 = tpu.matmul %396, %397, %cst_136 {dimension_numbers = #tpu.dot_dimension_numbers<[2], [1], [1], [2], [0, 0, 0, 1, 1, 2], [0], [0]>} : vector<2x8x8xf32>, vector<2x8x8xf32>, vector<2x8x8xf32> -> vector<2x8x8xf32>
    "tpu.trace_stop"() : () -> ()
    %399 = vector.shape_cast %398 : vector<2x8x8xf32> to vector<16x8xf32>
    %400 = vector.extract_strided_slice %302 {offsets = [16, 0], sizes = [8, 32], strides = [1, 1]} : vector<32x32xf32> to vector<8x32xf32>
    %cst_137 = arith.constant dense<0.000000e+00> : vector<16x32xf32>
    %401 = tpu.matmul %399, %400, %cst_137 {dimension_numbers = #tpu.dot_dimension_numbers<[1], [0], [0], [1], [0, 0, 1, 1], [], []>} : vector<16x8xf32>, vector<8x32xf32>, vector<16x32xf32> -> vector<16x32xf32>
    %402 = arith.addf %382, %401 : vector<16x32xf32>
    %403 = vector.extract_strided_slice %337 {offsets = [0, 0, 24], sizes = [2, 8, 8], strides = [1, 1, 1]} : vector<2x8x32xf32> to vector<2x8x8xf32>
    %404 = vector.extract_strided_slice %339 {offsets = [0, 0, 24], sizes = [2, 8, 8], strides = [1, 1, 1]} : vector<2x8x32xf32> to vector<2x8x8xf32>
    "tpu.trace_start"() <{level = 10 : i32, message = "bqc,bkc->bqk"}> : () -> ()
    %cst_138 = arith.constant dense<0.000000e+00> : vector<2x8x8xf32>
    %405 = tpu.matmul %403, %404, %cst_138 {dimension_numbers = #tpu.dot_dimension_numbers<[2], [2], [1], [1], [0, 0, 0, 1, 1, 1], [0], [0]>} : vector<2x8x8xf32>, vector<2x8x8xf32>, vector<2x8x8xf32> -> vector<2x8x8xf32>
    "tpu.trace_stop"() : () -> ()
    %cst_139 = arith.constant dense<0xFF800000> : vector<2x8xf32>
    %406 = vector.multi_reduction <maximumf>, %405, %cst_139 [2] : vector<2x8x8xf32> to vector<2x8xf32>
    %407 = vector.shape_cast %406 : vector<2x8xf32> to vector<2x8x1xf32>
    %408 = vector.broadcast %407 : vector<2x8x1xf32> to vector<2x8x8xf32>
    %409 = arith.subf %405, %408 : vector<2x8x8xf32>
    %410 = math.exp %409 : vector<2x8x8xf32>
    %cst_140 = arith.constant dense<0.000000e+00> : vector<2x8xf32>
    %411 = vector.multi_reduction <add>, %410, %cst_140 [2] : vector<2x8x8xf32> to vector<2x8xf32>
    %412 = vector.shape_cast %411 : vector<2x8xf32> to vector<2x8x1xf32>
    %cst_141 = arith.constant 1.000000e+00 : f32
    %413 = vector.broadcast %cst_141 : f32 to vector<2x8x1xf32>
    %414 = arith.divf %413, %412 : vector<2x8x1xf32>
    %415 = vector.broadcast %414 : vector<2x8x1xf32> to vector<2x8x8xf32>
    %416 = arith.mulf %410, %415 : vector<2x8x8xf32>
    %417 = vector.extract_strided_slice %341 {offsets = [0, 0, 24], sizes = [2, 8, 8], strides = [1, 1, 1]} : vector<2x8x32xf32> to vector<2x8x8xf32>
    "tpu.trace_start"() <{level = 10 : i32, message = "bqk,bkc->bqc"}> : () -> ()
    %cst_142 = arith.constant dense<0.000000e+00> : vector<2x8x8xf32>
    %418 = tpu.matmul %416, %417, %cst_142 {dimension_numbers = #tpu.dot_dimension_numbers<[2], [1], [1], [2], [0, 0, 0, 1, 1, 2], [0], [0]>} : vector<2x8x8xf32>, vector<2x8x8xf32>, vector<2x8x8xf32> -> vector<2x8x8xf32>
    "tpu.trace_stop"() : () -> ()
    %419 = vector.shape_cast %418 : vector<2x8x8xf32> to vector<16x8xf32>
    %420 = vector.extract_strided_slice %302 {offsets = [24, 0], sizes = [8, 32], strides = [1, 1]} : vector<32x32xf32> to vector<8x32xf32>
    %cst_143 = arith.constant dense<0.000000e+00> : vector<16x32xf32>
    %421 = tpu.matmul %419, %420, %cst_143 {dimension_numbers = #tpu.dot_dimension_numbers<[1], [0], [0], [1], [0, 0, 1, 1], [], []>} : vector<16x8xf32>, vector<8x32xf32>, vector<16x32xf32> -> vector<16x32xf32>
    %422 = arith.addf %402, %421 : vector<16x32xf32>
    %423 = arith.addf %296, %422 : vector<16x32xf32>
    %424 = vector.extract_strided_slice %298 {offsets = [2, 0], sizes = [1, 32], strides = [1, 1]} : vector<6x32xf32> to vector<1x32xf32>
    %425 = vector.broadcast %424 : vector<1x32xf32> to vector<16x32xf32>
    %426 = arith.addf %423, %425 : vector<16x32xf32>
    %427 = vector.extract_strided_slice %298 {offsets = [3, 0], sizes = [1, 32], strides = [1, 1]} : vector<6x32xf32> to vector<1x32xf32>
    %428 = vector.extract_strided_slice %298 {offsets = [4, 0], sizes = [1, 32], strides = [1, 1]} : vector<6x32xf32> to vector<1x32xf32>
    %cst_144 = arith.constant dense<0.000000e+00> : vector<16xf32>
    %429 = vector.multi_reduction <add>, %426, %cst_144 [1] : vector<16x32xf32> to vector<16xf32>
    %430 = vector.shape_cast %429 : vector<16xf32> to vector<16x1xf32>
    %cst_145 = arith.constant 3.200000e+01 : f32
    %431 = vector.broadcast %cst_145 : f32 to vector<16x1xf32>
    %432 = arith.divf %430, %431 : vector<16x1xf32>
    %433 = arith.mulf %426, %426 : vector<16x32xf32>
    %cst_146 = arith.constant dense<0.000000e+00> : vector<16xf32>
    %434 = vector.multi_reduction <add>, %433, %cst_146 [1] : vector<16x32xf32> to vector<16xf32>
    %435 = vector.shape_cast %434 : vector<16xf32> to vector<16x1xf32>
    %cst_147 = arith.constant 3.200000e+01 : f32
    %436 = vector.broadcast %cst_147 : f32 to vector<16x1xf32>
    %437 = arith.divf %435, %436 : vector<16x1xf32>
    %438 = arith.mulf %432, %432 : vector<16x1xf32>
    %439 = arith.subf %437, %438 : vector<16x1xf32>
    %cst_148 = arith.constant 0.000000e+00 : f32
    %440 = vector.broadcast %cst_148 : f32 to vector<16x1xf32>
    %441 = arith.maximumf %439, %440 : vector<16x1xf32>
    %442 = vector.broadcast %432 : vector<16x1xf32> to vector<16x32xf32>
    %443 = arith.subf %426, %442 : vector<16x32xf32>
    %cst_149 = arith.constant 9.99999974E-6 : f32
    %444 = vector.broadcast %cst_149 : f32 to vector<16x1xf32>
    %445 = arith.addf %441, %444 : vector<16x1xf32>
    %446 = math.rsqrt %445 : vector<16x1xf32>
    %447 = vector.broadcast %446 : vector<16x1xf32> to vector<16x32xf32>
    %448 = arith.mulf %443, %447 : vector<16x32xf32>
    %449 = vector.broadcast %427 : vector<1x32xf32> to vector<16x32xf32>
    %450 = arith.mulf %448, %449 : vector<16x32xf32>
    %451 = vector.broadcast %428 : vector<1x32xf32> to vector<16x32xf32>
    %452 = arith.addf %450, %451 : vector<16x32xf32>
    %cst_150 = arith.constant dense<0.000000e+00> : vector<16x64xf32>
    %453 = tpu.matmul %452, %304, %cst_150 {dimension_numbers = #tpu.dot_dimension_numbers<[1], [0], [0], [1], [0, 0, 1, 1], [], []>} : vector<16x32xf32>, vector<32x64xf32>, vector<16x64xf32> -> vector<16x64xf32>
    %454 = vector.broadcast %306 : vector<1x64xf32> to vector<16x64xf32>
    %455 = arith.addf %453, %454 : vector<16x64xf32>
    %cst_151 = arith.constant 5.000000e-01 : f32
    %456 = vector.broadcast %cst_151 : f32 to vector<16x64xf32>
    %457 = arith.mulf %456, %455 : vector<16x64xf32>
    %cst_152 = arith.constant 0.707106769 : f32
    %458 = vector.broadcast %cst_152 : f32 to vector<16x64xf32>
    %459 = arith.mulf %455, %458 : vector<16x64xf32>
    %460 = math.erf %459 : vector<16x64xf32>
    %cst_153 = arith.constant 1.000000e+00 : f32
    %461 = vector.broadcast %cst_153 : f32 to vector<16x64xf32>
    %462 = arith.addf %461, %460 : vector<16x64xf32>
    %463 = arith.mulf %457, %462 : vector<16x64xf32>
    %cst_154 = arith.constant dense<0.000000e+00> : vector<16x32xf32>
    %464 = tpu.matmul %463, %308, %cst_154 {dimension_numbers = #tpu.dot_dimension_numbers<[1], [0], [0], [1], [0, 0, 1, 1], [], []>} : vector<16x64xf32>, vector<64x32xf32>, vector<16x32xf32> -> vector<16x32xf32>
    %465 = arith.addf %426, %464 : vector<16x32xf32>
    %466 = vector.extract_strided_slice %298 {offsets = [5, 0], sizes = [1, 32], strides = [1, 1]} : vector<6x32xf32> to vector<1x32xf32>
    %467 = vector.broadcast %466 : vector<1x32xf32> to vector<16x32xf32>
    %468 = arith.addf %465, %467 : vector<16x32xf32>
    %469 = vector.extract_strided_slice %86 {offsets = [3, 0], sizes = [1, 32], strides = [1, 1]} : vector<5x32xf32> to vector<1x32xf32>
    %470 = vector.extract_strided_slice %86 {offsets = [4, 0], sizes = [1, 32], strides = [1, 1]} : vector<5x32xf32> to vector<1x32xf32>
    %cst_155 = arith.constant dense<0.000000e+00> : vector<16xf32>
    %471 = vector.multi_reduction <add>, %468, %cst_155 [1] : vector<16x32xf32> to vector<16xf32>
    %472 = vector.shape_cast %471 : vector<16xf32> to vector<16x1xf32>
    %cst_156 = arith.constant 3.200000e+01 : f32
    %473 = vector.broadcast %cst_156 : f32 to vector<16x1xf32>
    %474 = arith.divf %472, %473 : vector<16x1xf32>
    %475 = arith.mulf %468, %468 : vector<16x32xf32>
    %cst_157 = arith.constant dense<0.000000e+00> : vector<16xf32>
    %476 = vector.multi_reduction <add>, %475, %cst_157 [1] : vector<16x32xf32> to vector<16xf32>
    %477 = vector.shape_cast %476 : vector<16xf32> to vector<16x1xf32>
    %cst_158 = arith.constant 3.200000e+01 : f32
    %478 = vector.broadcast %cst_158 : f32 to vector<16x1xf32>
    %479 = arith.divf %477, %478 : vector<16x1xf32>
    %480 = arith.mulf %474, %474 : vector<16x1xf32>
    %481 = arith.subf %479, %480 : vector<16x1xf32>
    %cst_159 = arith.constant 0.000000e+00 : f32
    %482 = vector.broadcast %cst_159 : f32 to vector<16x1xf32>
    %483 = arith.maximumf %481, %482 : vector<16x1xf32>
    %484 = vector.broadcast %474 : vector<16x1xf32> to vector<16x32xf32>
    %485 = arith.subf %468, %484 : vector<16x32xf32>
    %cst_160 = arith.constant 9.99999974E-6 : f32
    %486 = vector.broadcast %cst_160 : f32 to vector<16x1xf32>
    %487 = arith.addf %483, %486 : vector<16x1xf32>
    %488 = math.rsqrt %487 : vector<16x1xf32>
    %489 = vector.broadcast %488 : vector<16x1xf32> to vector<16x32xf32>
    %490 = arith.mulf %485, %489 : vector<16x32xf32>
    %491 = vector.broadcast %469 : vector<1x32xf32> to vector<16x32xf32>
    %492 = arith.mulf %490, %491 : vector<16x32xf32>
    %493 = vector.broadcast %470 : vector<1x32xf32> to vector<16x32xf32>
    %494 = arith.addf %492, %493 : vector<16x32xf32>
    %495 = vector.shape_cast %494 : vector<16x32xf32> to vector<2x8x32xf32>
    %c0_161 = arith.constant 0 : index
    %c0_162 = arith.constant 0 : index
    %c0_163 = arith.constant 0 : index
    %496 = vector.load %arg13[%c0_161, %c0_162, %c0_163] : memref<3x8x32xf32, #tpu.memory_space<vmem>>, vector<3x8x32xf32>
    %cst_164 = arith.constant dense<0.000000e+00> : vector<2x8xf32>
    %497 = vector.multi_reduction <add>, %495, %cst_164 [2] : vector<2x8x32xf32> to vector<2x8xf32>
    %498 = vector.shape_cast %497 : vector<2x8xf32> to vector<2x8x1xf32>
    %cst_165 = arith.constant dense<0.000000e+00> : vector<2x1xf32>
    %499 = vector.multi_reduction <add>, %498, %cst_165 [1] : vector<2x8x1xf32> to vector<2x1xf32>
    %500 = vector.shape_cast %499 : vector<2x1xf32> to vector<2x1x1xf32>
    %501 = arith.mulf %495, %495 : vector<2x8x32xf32>
    %cst_166 = arith.constant dense<0.000000e+00> : vector<2x8xf32>
    %502 = vector.multi_reduction <add>, %501, %cst_166 [2] : vector<2x8x32xf32> to vector<2x8xf32>
    %503 = vector.shape_cast %502 : vector<2x8xf32> to vector<2x8x1xf32>
    %cst_167 = arith.constant dense<0.000000e+00> : vector<2x1xf32>
    %504 = vector.multi_reduction <add>, %503, %cst_167 [1] : vector<2x8x1xf32> to vector<2x1xf32>
    %505 = vector.shape_cast %504 : vector<2x1xf32> to vector<2x1x1xf32>
    %cst_168 = arith.constant 3.906250e-03 : f32
    %506 = vector.broadcast %cst_168 : f32 to vector<2x1x1xf32>
    %507 = arith.mulf %500, %506 : vector<2x1x1xf32>
    %cst_169 = arith.constant 3.906250e-03 : f32
    %508 = vector.broadcast %cst_169 : f32 to vector<2x1x1xf32>
    %509 = arith.mulf %505, %508 : vector<2x1x1xf32>
    %510 = arith.mulf %507, %507 : vector<2x1x1xf32>
    %511 = arith.subf %509, %510 : vector<2x1x1xf32>
    %cst_170 = arith.constant 0.000000e+00 : f32
    %512 = vector.broadcast %cst_170 : f32 to vector<2x1x1xf32>
    %513 = arith.maximumf %511, %512 : vector<2x1x1xf32>
    %514 = vector.broadcast %507 : vector<2x1x1xf32> to vector<2x8x32xf32>
    %515 = arith.subf %495, %514 : vector<2x8x32xf32>
    %cst_171 = arith.constant 9.99999974E-6 : f32
    %516 = vector.broadcast %cst_171 : f32 to vector<2x1x1xf32>
    %517 = arith.addf %513, %516 : vector<2x1x1xf32>
    %518 = math.rsqrt %517 : vector<2x1x1xf32>
    %519 = vector.broadcast %518 : vector<2x1x1xf32> to vector<2x8x32xf32>
    %520 = arith.mulf %515, %519 : vector<2x8x32xf32>
    %521 = vector.extract_strided_slice %496 {offsets = [0, 0, 0], sizes = [1, 8, 32], strides = [1, 1, 1]} : vector<3x8x32xf32> to vector<1x8x32xf32>
    %522 = vector.shape_cast %521 : vector<1x8x32xf32> to vector<8x32xf32>
    %523 = vector.shape_cast %522 : vector<8x32xf32> to vector<1x8x32xf32>
    %524 = vector.broadcast %523 : vector<1x8x32xf32> to vector<2x8x32xf32>
    %525 = arith.mulf %520, %524 : vector<2x8x32xf32>
    %526 = vector.extract_strided_slice %496 {offsets = [1, 0, 0], sizes = [1, 8, 32], strides = [1, 1, 1]} : vector<3x8x32xf32> to vector<1x8x32xf32>
    %527 = vector.shape_cast %526 : vector<1x8x32xf32> to vector<8x32xf32>
    %528 = vector.shape_cast %527 : vector<8x32xf32> to vector<1x8x32xf32>
    %529 = vector.broadcast %528 : vector<1x8x32xf32> to vector<2x8x32xf32>
    %530 = arith.addf %525, %529 : vector<2x8x32xf32>
    %531 = vector.extract_strided_slice %496 {offsets = [2, 0, 0], sizes = [1, 8, 32], strides = [1, 1, 1]} : vector<3x8x32xf32> to vector<1x8x32xf32>
    %532 = vector.shape_cast %531 : vector<1x8x32xf32> to vector<8x32xf32>
    %533 = vector.shape_cast %532 : vector<8x32xf32> to vector<1x8x32xf32>
    %534 = vector.broadcast %533 : vector<1x8x32xf32> to vector<2x8x32xf32>
    %535 = arith.mulf %530, %534 : vector<2x8x32xf32>
    %cst_172 = arith.constant dense<0.000000e+00> : vector<2x8xf32>
    %536 = vector.multi_reduction <add>, %535, %cst_172 [2] : vector<2x8x32xf32> to vector<2x8xf32>
    %cst_173 = arith.constant dense<0.000000e+00> : vector<2xf32>
    %537 = vector.multi_reduction <add>, %536, %cst_173 [1] : vector<2x8xf32> to vector<2xf32>
    %538 = vector.shape_cast %537 : vector<2xf32> to vector<2x1xf32>
    %c0_174 = arith.constant 0 : index
    %c0_175 = arith.constant 0 : index
    %539 = memref.load %arg14[%c0_174, %c0_175] : memref<1x1xf32, #tpu.memory_space<smem>>
    %540 = vector.broadcast %539 : f32 to vector<2x1xf32>
    %541 = arith.addf %538, %540 : vector<2x1xf32>
    %c0_176 = arith.constant 0 : index
    %c0_177 = arith.constant 0 : index
    %542 = vector.load %arg15[%c0_176, %c0_177] : memref<2x1xf32, #tpu.memory_space<vmem>>, vector<2x1xf32>
    tpu.vector_store %arg15[%c0_176, %c0_177], %541 {strides = array<i32>} : memref<2x1xf32, #tpu.memory_space<vmem>>, vector<2x1xf32>,
    return
  }
  func.func @transform_0(%arg0: i32) -> (i32, i32) {
    %c0_i32 = arith.constant 0 : i32
    %c0_i32_0 = arith.constant 0 : i32
    return %arg0, %c0_i32 : i32, i32
  }
  func.func @transform_1(%arg0: i32) -> (i32, i32) {
    %c0_i32 = arith.constant 0 : i32
    %c0_i32_0 = arith.constant 0 : i32
    %c0_i32_1 = arith.constant 0 : i32
    return %c0_i32, %c0_i32_0 : i32, i32
  }
  func.func @transform_2(%arg0: i32) -> (i32, i32) {
    %c0_i32 = arith.constant 0 : i32
    %c0_i32_0 = arith.constant 0 : i32
    %c0_i32_1 = arith.constant 0 : i32
    return %c0_i32, %c0_i32_0 : i32, i32
  }
  func.func @transform_3(%arg0: i32) -> (i32, i32) {
    %c0_i32 = arith.constant 0 : i32
    %c0_i32_0 = arith.constant 0 : i32
    %c0_i32_1 = arith.constant 0 : i32
    return %c0_i32, %c0_i32_0 : i32, i32
  }
  func.func @transform_4(%arg0: i32) -> (i32, i32) {
    %c0_i32 = arith.constant 0 : i32
    %c0_i32_0 = arith.constant 0 : i32
    %c0_i32_1 = arith.constant 0 : i32
    return %c0_i32, %c0_i32_0 : i32, i32
  }
  func.func @transform_5(%arg0: i32) -> (i32, i32) {
    %c0_i32 = arith.constant 0 : i32
    %c0_i32_0 = arith.constant 0 : i32
    %c0_i32_1 = arith.constant 0 : i32
    return %c0_i32, %c0_i32_0 : i32, i32
  }
  func.func @transform_6(%arg0: i32) -> (i32, i32, i32) {
    %c0_i32 = arith.constant 0 : i32
    %c0_i32_0 = arith.constant 0 : i32
    %c0_i32_1 = arith.constant 0 : i32
    %c0_i32_2 = arith.constant 0 : i32
    return %c0_i32, %c0_i32_0, %c0_i32_1 : i32, i32, i32
  }
  func.func @transform_7(%arg0: i32) -> (i32, i32, i32) {
    %c0_i32 = arith.constant 0 : i32
    %c0_i32_0 = arith.constant 0 : i32
    %c0_i32_1 = arith.constant 0 : i32
    %c0_i32_2 = arith.constant 0 : i32
    return %c0_i32, %c0_i32_0, %c0_i32_1 : i32, i32, i32
  }
  func.func @transform_8(%arg0: i32) -> (i32, i32, i32) {
    %c0_i32 = arith.constant 0 : i32
    %c0_i32_0 = arith.constant 0 : i32
    %c0_i32_1 = arith.constant 0 : i32
    %c0_i32_2 = arith.constant 0 : i32
    return %c0_i32, %c0_i32_0, %c0_i32_1 : i32, i32, i32
  }
  func.func @transform_9(%arg0: i32) -> (i32, i32, i32) {
    %c0_i32 = arith.constant 0 : i32
    %c0_i32_0 = arith.constant 0 : i32
    %c0_i32_1 = arith.constant 0 : i32
    %c0_i32_2 = arith.constant 0 : i32
    return %c0_i32, %c0_i32_0, %c0_i32_1 : i32, i32, i32
  }
  func.func @transform_10(%arg0: i32) -> (i32, i32, i32) {
    %c0_i32 = arith.constant 0 : i32
    %c0_i32_0 = arith.constant 0 : i32
    %c0_i32_1 = arith.constant 0 : i32
    %c0_i32_2 = arith.constant 0 : i32
    return %c0_i32, %c0_i32_0, %c0_i32_1 : i32, i32, i32
  }
  func.func @transform_11(%arg0: i32) -> (i32, i32, i32) {
    %c0_i32 = arith.constant 0 : i32
    %c0_i32_0 = arith.constant 0 : i32
    %c0_i32_1 = arith.constant 0 : i32
    %c0_i32_2 = arith.constant 0 : i32
    return %c0_i32, %c0_i32_0, %c0_i32_1 : i32, i32, i32
  }
  func.func @transform_12(%arg0: i32) -> (i32, i32, i32) {
    %c0_i32 = arith.constant 0 : i32
    %c0_i32_0 = arith.constant 0 : i32
    %c0_i32_1 = arith.constant 0 : i32
    %c0_i32_2 = arith.constant 0 : i32
    return %c0_i32, %c0_i32_0, %c0_i32_1 : i32, i32, i32
  }
  func.func @transform_13(%arg0: i32) -> (i32, i32) {
    %c0_i32 = arith.constant 0 : i32
    %c0_i32_0 = arith.constant 0 : i32
    %c0_i32_1 = arith.constant 0 : i32
    return %c0_i32, %c0_i32_0 : i32, i32
  }
  func.func @transform_14(%arg0: i32) -> (i32, i32) {
    %c0_i32 = arith.constant 0 : i32
    %c0_i32_0 = arith.constant 0 : i32
    return %arg0, %c0_i32 : i32, i32
  }
}

</mosaic_0001>

<llo_original>
// kernel: tpu_custom_call.1
$region0: #{tpu_custom_call.1}
  #allocation0 [shape = 'u32[]', space=smem, size = 0x4, offset = 0x4, fixed_abs, tag = 'smem constant byte address 0x4 - core index']
  #allocation1 [shape = 'u32[144,128]{1,0:T(1,128)}', space=vmem, size = 0x12000, scoped, tag = 'internal scratch']
  #allocation2 [shape = 'f32[1,1]{1,0:T(1,128)S(6)}', space=smem, size = 0x200, scoped, tag = 'scoped memory for tpu_custom_call.1']
  %s0 = inlined_call_operand.hbm [shape: f32[2,8], index: 0, kind: input, shape index: {}]
  %s1 = inlined_call_operand.hbm [shape: f32[3,8], index: 1, kind: input, shape index: {}]
  %s2 = inlined_call_operand.hbm [shape: f32[4,32], index: 2, kind: input, shape index: {}]
  %s3 = inlined_call_operand.vmem [shape: f32[5,32], index: 3, kind: input, shape index: {}]
  %s4 = inlined_call_operand.hbm [shape: f32[32,32], index: 4, kind: input, shape index: {}]
  %s5 = inlined_call_operand.hbm [shape: f32[8,32], index: 5, kind: input, shape index: {}]
  %s6 = inlined_call_operand.vmem [shape: f32[2,6,32], index: 6, kind: input, shape index: {}]
  %s7 = inlined_call_operand.hbm [shape: f32[2,1,64], index: 7, kind: input, shape index: {}]
  %s8 = inlined_call_operand.vmem [shape: f32[2,32,96], index: 8, kind: input, shape index: {}]
  %s9 = inlined_call_operand.vmem [shape: f32[2,32,32], index: 9, kind: input, shape index: {}]
  %s10 = inlined_call_operand.vmem [shape: f32[2,32,64], index: 10, kind: input, shape index: {}]
  %s11 = inlined_call_operand.vmem [shape: f32[2,64,32], index: 11, kind: input, shape index: {}]
  %s12 = inlined_call_operand.hbm [shape: f32[3,8,32], index: 12, kind: input, shape index: {}]
  %s13 = inlined_call_operand.<no memory space> [shape: f32[1,1], index: 13, kind: input, shape index: {}]
  %s14 = inlined_call_operand.vmem [shape: f32[2,1], index: 14, kind: output, shape index: {}]
  %s15 = sld [smem:[#allocation0]]
  $region94: #{tpu_custom_call.1} parent=0
    _
  %s17 = ssub.s32 1, %s15
  %s18 = scalar_select 0, %s17, %s15
  %19 = sst [smem:[#allocation2]] %s13
  $region1: #{tpu_custom_call.1} parent=0
    #allocation3 [shape = 'u8[1024]{0}', space=vmem, size = 0x400, scoped, tag = 'input window, operand 0, single buffered']
    #allocation4 [shape = 's32[1]{0}', space=sflag, size = 0x4, scoped, tag = 'scoped memory for tpu_custom_call.1']
    #allocation5 [shape = 'u8[2048]{0}', space=vmem, size = 0x800, scoped, tag = 'input window, operand 1, single buffered']
    #allocation6 [shape = 's32[1]{0}', space=sflag, size = 0x4, scoped, tag = 'scoped memory for tpu_custom_call.1']
    #allocation7 [shape = 'u8[2048]{0}', space=vmem, size = 0x800, scoped, tag = 'input window, operand 2, single buffered']
    #allocation8 [shape = 'u8[16384]{0}', space=vmem, size = 0x4000, scoped, tag = 'input window, operand 4, single buffered']
    #allocation9 [shape = 's32[1]{0}', space=sflag, size = 0x4, scoped, tag = 'scoped memory for tpu_custom_call.1']
    #allocation10 [shape = 'u8[4096]{0}', space=vmem, size = 0x1000, scoped, tag = 'input window, operand 5, single buffered']
    #allocation11 [shape = 'u8[1024]{0}', space=vmem, size = 0x400, scoped, tag = 'input window, operand 7, single buffered']
    #allocation12 [shape = 's32[1]{0}', space=sflag, size = 0x4, scoped, tag = 'scoped memory for tpu_custom_call.1']
    #allocation13 [shape = 'u8[12288]{0}', space=vmem, size = 0x3000, scoped, tag = 'input window, operand 12, single buffered']
    %20 = vsyncpa [#allocation4], 0
    %21 = vsyncpa [#allocation6], 0
    %22 = vsyncpa [#allocation9], 0
    %23 = vsyncpa [#allocation12], 0
    // Predicated region
    $region2: #{tpu_custom_call.1} parent=1 // pred_check
      _
    $region3: #{tpu_custom_call.1} parent=1 // pred_check_branch
      %25 = sbr.rel (0) target = $region5
    $region4: #{tpu_custom_call.1} parent=1 // pred_region
      %s27 = ssub.s32 32, 32
      %28 = vsyncadd [#allocation4], %s27
      %s30 = sshll.u32 [#allocation3], 4
      %s31 = int_to_ptr.vmem [resolvable:$true] %s30
      %33 = dma.hbm_to_vmem [thread:$0]  %s0, 32, %s31, [#allocation4]
    $region5: #{tpu_custom_call.1} parent=1 // pred_fallthru
      _
    // Predicated region
    $region6: #{tpu_custom_call.1} parent=1 // pred_check
      _
    $region7: #{tpu_custom_call.1} parent=1 // pred_check_branch
      %35 = sbr.rel (0) target = $region9
    $region8: #{tpu_custom_call.1} parent=1 // pred_region
      %s37 = ssub.s32 64, 64
      %38 = vsyncadd [#allocation6], %s37
      %s40 = sshll.u32 [#allocation5], 4
      %s41 = int_to_ptr.vmem [resolvable:$true] %s40
      %43 = dma.hbm_to_vmem [thread:$0]  %s1, 64, %s41, [#allocation6]
    $region9: #{tpu_custom_call.1} parent=1 // pred_fallthru
      _
    // Predicated region
    $region10: #{tpu_custom_call.1} parent=1 // pred_check
      _
    $region11: #{tpu_custom_call.1} parent=1 // pred_check_branch
      %45 = sbr.rel (0) target = $region13
    $region12: #{tpu_custom_call.1} parent=1 // pred_region
      %s47 = ssub.s32 64, 64
      %48 = vsyncadd [#allocation6], %s47
      %s50 = sshll.u32 [#allocation7], 4
      %s51 = int_to_ptr.vmem [resolvable:$true] %s50
      %53 = dma.hbm_to_vmem [thread:$0]  %s2, 64, %s51, [#allocation6]
    $region13: #{tpu_custom_call.1} parent=1 // pred_fallthru
      _
    // Predicated region
    $region14: #{tpu_custom_call.1} parent=1 // pred_check
      _
    $region15: #{tpu_custom_call.1} parent=1 // pred_check_branch
      %55 = sbr.rel (0) target = $region17
    $region16: #{tpu_custom_call.1} parent=1 // pred_region
      _
    $region17: #{tpu_custom_call.1} parent=1 // pred_fallthru
      _
    // Predicated region
    $region18: #{tpu_custom_call.1} parent=1 // pred_check
      _
    $region19: #{tpu_custom_call.1} parent=1 // pred_check_branch
      %57 = sbr.rel (0) target = $region21
    $region20: #{tpu_custom_call.1} parent=1 // pred_region
      %s59 = ssub.s32 512, 512
      %60 = vsyncadd [#allocation9], %s59
      %s61 = sshll.u32 [#allocation8], 4
      %s62 = int_to_ptr.vmem [resolvable:$true] %s61
      %67 = dma.hbm_to_vmem [thread:$0]  %s4, 512, %s62, [#allocation9], 128, 128, 8
    $region21: #{tpu_custom_call.1} parent=1 // pred_fallthru
      _
    // Predicated region
    $region22: #{tpu_custom_call.1} parent=1 // pred_check
      _
    $region23: #{tpu_custom_call.1} parent=1 // pred_check_branch
      %69 = sbr.rel (0) target = $region25
    $region24: #{tpu_custom_call.1} parent=1 // pred_region
      %s71 = ssub.s32 128, 128
      %72 = vsyncadd [#allocation9], %s71
      %s74 = sshll.u32 [#allocation10], 4
      %s75 = int_to_ptr.vmem [resolvable:$true] %s74
      %77 = dma.hbm_to_vmem [thread:$0]  %s5, 128, %s75, [#allocation9]
    $region25: #{tpu_custom_call.1} parent=1 // pred_fallthru
      _
    // Predicated region
    $region26: #{tpu_custom_call.1} parent=1 // pred_check
      _
    $region27: #{tpu_custom_call.1} parent=1 // pred_check_branch
      %79 = sbr.rel (0) target = $region29
    $region28: #{tpu_custom_call.1} parent=1 // pred_region
      _
    $region29: #{tpu_custom_call.1} parent=1 // pred_fallthru
      _
    // Predicated region
    $region30: #{tpu_custom_call.1} parent=1 // pred_check
      _
    $region31: #{tpu_custom_call.1} parent=1 // pred_check_branch
      %81 = sbr.rel (0) target = $region33
    $region32: #{tpu_custom_call.1} parent=1 // pred_region
      %s83 = ssub.s32 32, 32
      %84 = vsyncadd [#allocation12], %s83
      %s85 = sshll.u32 [#allocation11], 4
      %s86 = int_to_ptr.vmem [resolvable:$true] %s85
      %91 = dma.hbm_to_vmem [thread:$0]  %s7, 32, %s86, [#allocation12], 16, 16, 1
    $region33: #{tpu_custom_call.1} parent=1 // pred_fallthru
      _
    // Predicated region
    $region34: #{tpu_custom_call.1} parent=1 // pred_check
      _
    $region35: #{tpu_custom_call.1} parent=1 // pred_check_branch
      %93 = sbr.rel (0) target = $region37
    $region36: #{tpu_custom_call.1} parent=1 // pred_region
      _
    $region37: #{tpu_custom_call.1} parent=1 // pred_fallthru
      _
    // Predicated region
    $region38: #{tpu_custom_call.1} parent=1 // pred_check
      _
    $region39: #{tpu_custom_call.1} parent=1 // pred_check_branch
      %95 = sbr.rel (0) target = $region41
    $region40: #{tpu_custom_call.1} parent=1 // pred_region
      _
    $region41: #{tpu_custom_call.1} parent=1 // pred_fallthru
      _
    // Predicated region
    $region42: #{tpu_custom_call.1} parent=1 // pred_check
      _
    $region43: #{tpu_custom_call.1} parent=1 // pred_check_branch
      %97 = sbr.rel (0) target = $region45
    $region44: #{tpu_custom_call.1} parent=1 // pred_region
      _
    $region45: #{tpu_custom_call.1} parent=1 // pred_fallthru
      _
    // Predicated region
    $region46: #{tpu_custom_call.1} parent=1 // pred_check
      _
    $region47: #{tpu_custom_call.1} parent=1 // pred_check_branch
      %99 = sbr.rel (0) target = $region49
    $region48: #{tpu_custom_call.1} parent=1 // pred_region
      _
    $region49: #{tpu_custom_call.1} parent=1 // pred_fallthru
      _
    // Predicated region
    $region50: #{tpu_custom_call.1} parent=1 // pred_check
      _
    $region51: #{tpu_custom_call.1} parent=1 // pred_check_branch
      %101 = sbr.rel (0) target = $region53
    $region52: #{tpu_custom_call.1} parent=1 // pred_region
      %s103 = ssub.s32 384, 384
      %104 = vsyncadd [#allocation12], %s103
      %s105 = sshll.u32 [#allocation13], 4
      %s106 = int_to_ptr.vmem [resolvable:$true] %s105
      %111 = dma.hbm_to_vmem [thread:$0]  %s12, 384, %s106, [#allocation12], 128, 128, 8
    $region53: #{tpu_custom_call.1} parent=1 // pred_fallthru
      _
    // Predicated region
    $region54: #{tpu_custom_call.1} parent=1 // pred_check
      _
    $region55: #{tpu_custom_call.1} parent=1 // pred_check_branch
      %113 = sbr.rel (0) target = $region57
    $region56: #{tpu_custom_call.1} parent=1 // pred_region
      _
    $region57: #{tpu_custom_call.1} parent=1 // pred_fallthru
      _
    // Predicated region
    $region58: #{tpu_custom_call.1} parent=1 // pred_check
      _
    $region59: #{tpu_custom_call.1} parent=1 // pred_check_branch
      %115 = sbr.rel (0) target = $region61
    $region60: #{tpu_custom_call.1} parent=1 // pred_region
      %116 = dma.done [#allocation4], 32
    $region61: #{tpu_custom_call.1} parent=1 // pred_fallthru
      _
    // Predicated region
    $region62: #{tpu_custom_call.1} parent=1 // pred_check
      _
    $region63: #{tpu_custom_call.1} parent=1 // pred_check_branch
      %118 = sbr.rel (0) target = $region65
    $region64: #{tpu_custom_call.1} parent=1 // pred_region
      %119 = dma.done [#allocation6], 64
    $region65: #{tpu_custom_call.1} parent=1 // pred_fallthru
      _
    // Predicated region
    $region66: #{tpu_custom_call.1} parent=1 // pred_check
      _
    $region67: #{tpu_custom_call.1} parent=1 // pred_check_branch
      %121 = sbr.rel (0) target = $region69
    $region68: #{tpu_custom_call.1} parent=1 // pred_region
      %122 = dma.done [#allocation6], 64
    $region69: #{tpu_custom_call.1} parent=1 // pred_fallthru
      _
    // Predicated region
    $region70: #{tpu_custom_call.1} parent=1 // pred_check
      _
    $region71: #{tpu_custom_call.1} parent=1 // pred_check_branch
      %124 = sbr.rel (0) target = $region73
    $region72: #{tpu_custom_call.1} parent=1 // pred_region
      %125 = dma.done [#allocation9], 512
    $region73: #{tpu_custom_call.1} parent=1 // pred_fallthru
      _
    // Predicated region
    $region74: #{tpu_custom_call.1} parent=1 // pred_check
      _
    $region75: #{tpu_custom_call.1} parent=1 // pred_check_branch
      %127 = sbr.rel (0) target = $region77
    $region76: #{tpu_custom_call.1} parent=1 // pred_region
      %128 = dma.done [#allocation9], 128
    $region77: #{tpu_custom_call.1} parent=1 // pred_fallthru
      _
    // Predicated region
    $region78: #{tpu_custom_call.1} parent=1 // pred_check
      _
    $region79: #{tpu_custom_call.1} parent=1 // pred_check_branch
      %130 = sbr.rel (0) target = $region81
    $region80: #{tpu_custom_call.1} parent=1 // pred_region
      %131 = dma.done [#allocation12], 32
    $region81: #{tpu_custom_call.1} parent=1 // pred_fallthru
      _
    // Predicated region
    $region82: #{tpu_custom_call.1} parent=1 // pred_check
      _
    $region83: #{tpu_custom_call.1} parent=1 // pred_check_branch
      %133 = sbr.rel (0) target = $region85
    $region84: #{tpu_custom_call.1} parent=1 // pred_region
      %134 = dma.done [#allocation12], 384
    $region85: #{tpu_custom_call.1} parent=1 // pred_fallthru
      _
    %v135 = vld [vmem:[#allocation3] sm:$0x3]
    %v136 = vld [vmem:[#allocation5] sm:$0x7]
    %vm137 = vcmask 58368
    %v138 = vsel %vm137, %v135, 0.0
    %139 = vadd.xlane.f32.xlu0 %v138
    %v140 = vpop.xlane.xlu0 %139
    %v141 = vrcp.pop 8.0
    %v142 = vmul.f32 %v140, %v141
    %v143 = vmul.f32 %v135, %v135
    %v144 = vsel %vm137, %v143, 0.0
    %145 = vadd.xlane.f32.xlu0 %v144
    %v146 = vpop.xlane.xlu0 %145
    %v147 = vmul.f32 %v146, %v141
    %v148 = vmul.f32 %v142, %v142
    %v149 = vsub.f32 %v147, %v148
    %v150 = vmax.f32 %v149, 0.0
    %v151 = vsub.f32 %v135, %v142
    %v152 = vadd.f32 %v150, 1e-05
    %v153 = vrsqrt.pop %v152
    %v154 = vmul.f32 %v151, %v153
    %v155 = vlaneseq
    %v156 = vshrl.u32 %v155, 7
    %v157 = vsub.s32 0, %v156
    %v158 = vrot.slane %v136, %v157
    %v159 = vmul.f32 %v154, %v158
    %v160 = vlaneseq
    %v161 = vshrl.u32 %v160, 7
    %v162 = vsub.s32 1, %v161
    %v163 = vrot.slane %v136, %v162
    %v164 = vadd.f32 %v159, %v163
    %v165 = vmul.f32 %v164, 0.33333334
    %v166 = vlaneseq
    %v167 = vshrl.u32 %v166, 7
    %v168 = vsub.s32 2, %v167
    %v169 = vrot.slane %v136, %v168
    %v170 = vadd.f32 %v165, %v169
    %v171 = vxor.u32 %v170, 2147483648
    %v172 = vmul.f32 %v171, 1.442695
    %v173 = vpow.pop %v172
    %v174 = vadd.f32 %v173, 1.0
    %v175 = vrcp.pop %v174
    %v176 = vmul.f32 1.0, %v175
    %v177 = vmul.f32 %v135, %v176
    %v178 = vld [vmem:[#allocation7] sm:$0xf]
    %v179 = vlaneseq
    %v180 = vshrl.u32 %v179, 7
    %v181 = vsub.s32 0, %v180
    %v182 = vrot.slane %v177, %v181
    %184 = vbcast.lane.b32.xlu0 %v182, 256
    %v185 = vpop.permute.xlu0 %184
    %v186 = vlaneseq
    %v187 = vshrl.u32 %v186, 7
    %v188 = vsub.s32 1, %v187
    %v189 = vrot.slane %v177, %v188
    %191 = vbcast.lane.b32.xlu0 %v189, 256
    %v192 = vpop.permute.xlu0 %191
    %v193 = vlaneseq
    %v194 = vshrl.u32 %v193, 7
    %v195 = vsub.s32 0, %v194
    %v196 = vrot.slane %v178, %v195
    %v197 = vmul.f32 %v185, %v196
    %v198 = vmul.f32 %v192, %v196
    %v199 = vlaneseq
    %v200 = vshrl.u32 %v199, 7
    %v201 = vsub.s32 1, %v200
    %v202 = vrot.slane %v178, %v201
    %v203 = vadd.f32 %v197, %v202
    %v204 = vadd.f32 %v198, %v202
    %v205 = vmul.f32 %v203, 0.5
    %v206 = vmul.f32 %v204, 0.5
    %v207 = vmul.f32 %v203, 0.70710677
    %v208 = vmul.f32 %v204, 0.70710677
    %v209 = verf.f32.pop %v207
    %v210 = verf.f32.pop %v208
    %v211 = vadd.f32 %v209, 1.0
    %v212 = vadd.f32 %v210, 1.0
    %v213 = vmul.f32 %v205, %v211
    %v214 = vmul.f32 %v206, %v212
    %vm215 = vcmask 261120
    %v216 = vsel %vm215, %v213, 0.0
    %217 = vadd.xlane.f32.xlu0 %v216
    %v218 = vpop.xlane.xlu0 %217
    %v219 = vsel %vm215, %v214, 0.0
    %220 = vadd.xlane.f32.xlu0 %v219
    %v221 = vpop.xlane.xlu0 %220
    %v222 = vrcp.pop 32.0
    %v223 = vmul.f32 %v218, %v222
    %v224 = vmul.f32 %v221, %v222
    %v225 = vmul.f32 %v213, %v213
    %v226 = vmul.f32 %v214, %v214
    %v227 = vsel %vm215, %v225, 0.0
    %228 = vadd.xlane.f32.xlu0 %v227
    %v229 = vpop.xlane.xlu0 %228
    %v230 = vsel %vm215, %v226, 0.0
    %231 = vadd.xlane.f32.xlu0 %v230
    %v232 = vpop.xlane.xlu0 %231
    %v233 = vmul.f32 %v229, %v222
    %v234 = vmul.f32 %v232, %v222
    %v235 = vmul.f32 %v223, %v223
    %v236 = vmul.f32 %v224, %v224
    %v237 = vsub.f32 %v233, %v235
    %v238 = vsub.f32 %v234, %v236
    %v239 = vmax.f32 %v237, 0.0
    %v240 = vmax.f32 %v238, 0.0
    %v241 = vsub.f32 %v213, %v223
    %v242 = vsub.f32 %v214, %v224
    %v243 = vadd.f32 %v239, 1e-05
    %v244 = vadd.f32 %v240, 1e-05
    %v245 = vrsqrt.pop %v243
    %v246 = vrsqrt.pop %v244
    %v247 = vmul.f32 %v241, %v245
    %v248 = vmul.f32 %v242, %v246
    %v249 = vlaneseq
    %v250 = vshrl.u32 %v249, 7
    %v251 = vsub.s32 2, %v250
    %v252 = vrot.slane %v178, %v251
    %v253 = vmul.f32 %v247, %v252
    %v254 = vmul.f32 %v248, %v252
    %v255 = vlaneseq
    %v256 = vshrl.u32 %v255, 7
    %v257 = vsub.s32 3, %v256
    %v258 = vrot.slane %v178, %v257
    %v259 = vadd.f32 %v253, %v258
    %v260 = vadd.f32 %v254, %v258
    %v261 = vld [vmem:[%s3] sm:$0x1f]
    %v262 = vld [vmem:[#allocation8] sm:$0xff]
    %v263 = vld [vmem:[#allocation8 + $0x8] sm:$0xff]
    %v264 = vld [vmem:[#allocation8 + $0x10] sm:$0xff]
    %v265 = vld [vmem:[#allocation8 + $0x18] sm:$0xff]
    %v266 = vlaneseq
    %v267 = vshrl.u32 %v266, 7
    %v268 = vsub.s32 0, %v267
    %v269 = vrot.slane %v261, %v268
    %v271 = vsel %vm215, %v259, 0
    %v274 = vsel %vm215, %v260, 0
    %276 = vmatprep.subr.mxu0 0.0
    %277 = vmatpush1.msra.mxu0 %v262
    %278 = vmatprep.subr.mxu0 0.0
    %279 = vmatpush1.msra.mxu0 %v263
    %280 = vmatprep.subr.mxu0 0.0
    %281 = vmatpush1.msra.mxu0 %v264
    %282 = vmatprep.subr.mxu0 0.0
    %283 = vmatpush1.msra.mxu0 %v265
    %284 = vmatprep.subr.mxu0 0.0
    %285 = vmatpush1.msra.mxu0 0.0
    %286 = vmatprep.subr.mxu0 0.0
    %287 = vmatpush1.msra.mxu0 0.0
    %288 = vmatprep.subr.mxu0 0.0
    %289 = vmatpush1.msra.mxu0 0.0
    %290 = vmatprep.subr.mxu0 0.0
    %291 = vmatpush1.msra.mxu0 0.0
    %292 = vmatprep.subr.mxu0 0.0
    %293 = vmatpush1.msra.mxu0 0.0
    %294 = vmatprep.subr.mxu0 0.0
    %295 = vmatpush1.msra.mxu0 0.0
    %296 = vmatprep.subr.mxu0 0.0
    %297 = vmatpush1.msra.mxu0 0.0
    %298 = vmatprep.subr.mxu0 0.0
    %299 = vmatpush1.msra.mxu0 0.0
    %300 = vmatprep.subr.mxu0 0.0
    %301 = vmatpush1.msra.mxu0 0.0
    %302 = vmatprep.subr.mxu0 0.0
    %303 = vmatpush1.msra.mxu0 0.0
    %304 = vmatprep.subr.mxu0 0.0
    %305 = vmatpush1.msra.mxu0 0.0
    %306 = vmatprep.subr.mxu0 0.0
    %307 = vmatpush1.msra.mxu0 0.0
    %308 = vmatprep.subr.mxu0 0.0
    %309 = vmatpush1.msra.mxu0 0.0
    %310 = vmatprep.subr.mxu0 0.0
    %311 = vmatpush1.msra.mxu0 0.0
    %312 = vmatprep.subr.mxu0 0.0
    %313 = vmatpush1.msra.mxu0 0.0
    %314 = vmatprep.subr.mxu0 0.0
    %315 = vmatpush1.msra.mxu0 0.0
    %316 = vmatprep.subr.mxu0 0.0
    %317 = vmatpush1.msra.mxu0 0.0
    %318 = vmatprep.subr.mxu0 0.0
    %319 = vmatpush1.msra.mxu0 0.0
    %320 = vmatprep.subr.mxu0 0.0
    %321 = vmatpush1.msra.mxu0 0.0
    %322 = vmatprep.subr.mxu0 0.0
    %323 = vmatpush1.msra.mxu0 0.0
    %324 = vmatprep.subr.mxu0 0.0
    %325 = vmatpush1.msra.mxu0 0.0
    %326 = vmatprep.subr.mxu0 0.0
    %327 = vmatpush1.msra.mxu0 0.0
    %328 = vmatprep.subr.mxu0 0.0
    %329 = vmatpush1.msra.mxu0 0.0
    %330 = vmatprep.subr.mxu0 0.0
    %331 = vmatpush1.msra.mxu0 0.0
    %332 = vmatprep.subr.mxu0 0.0
    %333 = vmatpush1.msra.mxu0 0.0
    %334 = vmatprep.subr.mxu0 0.0
    %335 = vmatpush1.msra.mxu0 0.0
    %336 = vmatprep.subr.mxu0 0.0
    %337 = vmatpush1.msra.mxu0 0.0
    %338 = vmatprep.subr.mxu0 0.0
    %339 = vmatpush1.msra.mxu0 0.0
    %340 = vmatprep.mubr.f32.mxu0 0.0
    %341 = vmatmul.mubr.f32.gmra.mrb[0].mxu0 %v271
    %v342 = vpop.f32.mrb[0].mxu0
    %v343 = vadd.f32 %v269, %v342
    %v344 = vpop.f32.mrb[0].mxu0
    %345 = vmatprep.mubr.f32.mxu0 0.0
    %346 = vmatmul.mubr.f32.gmra.mrb[0].mxu0 %v274
    %v347 = vpop.f32.mrb[0].mxu0
    %v348 = vadd.f32 %v269, %v347
    %v349 = vpop.f32.mrb[0].mxu0
    %350 = vdwg.mxu0
    %v351 = vsel %vm215, %v343, 0.0
    %352 = vadd.xlane.f32.xlu0 %v351
    %v353 = vpop.xlane.xlu0 %352
    %v354 = vsel %vm215, %v348, 0.0
    %355 = vadd.xlane.f32.xlu0 %v354
    %v356 = vpop.xlane.xlu0 %355
    %v357 = vmul.f32 %v353, %v222
    %v358 = vmul.f32 %v356, %v222
    %v359 = vmul.f32 %v343, %v343
    %v360 = vmul.f32 %v348, %v348
    %v361 = vsel %vm215, %v359, 0.0
    %362 = vadd.xlane.f32.xlu0 %v361
    %v363 = vpop.xlane.xlu0 %362
    %v364 = vsel %vm215, %v360, 0.0
    %365 = vadd.xlane.f32.xlu0 %v364
    %v366 = vpop.xlane.xlu0 %365
    %v367 = vmul.f32 %v363, %v222
    %v368 = vmul.f32 %v366, %v222
    %v369 = vmul.f32 %v357, %v357
    %v370 = vmul.f32 %v358, %v358
    %v371 = vsub.f32 %v367, %v369
    %v372 = vsub.f32 %v368, %v370
    %v373 = vmax.f32 %v371, 0.0
    %v374 = vmax.f32 %v372, 0.0
    %v375 = vsub.f32 %v343, %v357
    %v376 = vsub.f32 %v348, %v358
    %v377 = vadd.f32 %v373, 1e-05
    %v378 = vadd.f32 %v374, 1e-05
    %v379 = vrsqrt.pop %v377
    %v380 = vrsqrt.pop %v378
    %v381 = vmul.f32 %v375, %v379
    %v382 = vmul.f32 %v376, %v380
    %v383 = vlaneseq
    %v384 = vshrl.u32 %v383, 7
    %v385 = vsub.s32 1, %v384
    %v386 = vrot.slane %v261, %v385
    %v387 = vmul.f32 %v381, %v386
    %v388 = vmul.f32 %v382, %v386
    %v389 = vlaneseq
    %v390 = vshrl.u32 %v389, 7
    %v391 = vsub.s32 2, %v390
    %v392 = vrot.slane %v261, %v391
    %v393 = vadd.f32 %v387, %v392
    %v394 = vadd.f32 %v388, %v392
    %v395 = vld [vmem:[#allocation10] sm:$0xff]
    %v396 = vadd.f32 %v393, %v395
    %v397 = vadd.f32 %v394, %v395
    %v398 = vld [vmem:[%s6] sm:$0x3f]
    %v399 = vld [vmem:[%s8] sm:$0xff]
    %v400 = vld [vmem:[%s8 + $0x8] sm:$0xff]
    %v401 = vld [vmem:[%s8 + $0x10] sm:$0xff]
    %v402 = vld [vmem:[%s8 + $0x18] sm:$0xff]
    %v403 = vld [vmem:[%s9] sm:$0xff]
    %v404 = vld [vmem:[%s9 + $0x8] sm:$0xff]
    %v405 = vld [vmem:[%s9 + $0x10] sm:$0xff]
    %v406 = vld [vmem:[%s9 + $0x18] sm:$0xff]
    %v407 = vld [vmem:[%s10] sm:$0xff]
    %v408 = vld [vmem:[%s10 + $0x8] sm:$0xff]
    %v409 = vld [vmem:[%s10 + $0x10] sm:$0xff]
    %v410 = vld [vmem:[%s10 + $0x18] sm:$0xff]
    %v411 = vld [vmem:[#allocation11] sm:$0x1]
    %v412 = vld [vmem:[%s11] sm:$0xff]
    %v413 = vld [vmem:[%s11 + $0x8] sm:$0xff]
    %v414 = vld [vmem:[%s11 + $0x10] sm:$0xff]
    %v415 = vld [vmem:[%s11 + $0x18] sm:$0xff]
    %v416 = vld [vmem:[%s11 + $0x20] sm:$0xff]
    %v417 = vld [vmem:[%s11 + $0x28] sm:$0xff]
    %v418 = vld [vmem:[%s11 + $0x30] sm:$0xff]
    %v419 = vld [vmem:[%s11 + $0x38] sm:$0xff]
    %v420 = vsel %vm215, %v396, 0.0
    %421 = vadd.xlane.f32.xlu0 %v420
    %v422 = vpop.xlane.xlu0 %421
    %v423 = vsel %vm215, %v397, 0.0
    %424 = vadd.xlane.f32.xlu0 %v423
    %v425 = vpop.xlane.xlu0 %424
    %v426 = vmul.f32 %v422, %v222
    %v427 = vmul.f32 %v425, %v222
    %v428 = vmul.f32 %v396, %v396
    %v429 = vmul.f32 %v397, %v397
    %v430 = vsel %vm215, %v428, 0.0
    %431 = vadd.xlane.f32.xlu0 %v430
    %v432 = vpop.xlane.xlu0 %431
    %v433 = vsel %vm215, %v429, 0.0
    %434 = vadd.xlane.f32.xlu0 %v433
    %v435 = vpop.xlane.xlu0 %434
    %v436 = vmul.f32 %v432, %v222
    %v437 = vmul.f32 %v435, %v222
    %v438 = vmul.f32 %v426, %v426
    %v439 = vmul.f32 %v427, %v427
    %v440 = vsub.f32 %v436, %v438
    %v441 = vsub.f32 %v437, %v439
    %v442 = vmax.f32 %v440, 0.0
    %v443 = vmax.f32 %v441, 0.0
    %v444 = vsub.f32 %v396, %v426
    %v445 = vsub.f32 %v397, %v427
    %v446 = vadd.f32 %v442, 1e-05
    %v447 = vadd.f32 %v443, 1e-05
    %v448 = vrsqrt.pop %v446
    %v449 = vrsqrt.pop %v447
    %v450 = vmul.f32 %v444, %v448
    %v451 = vmul.f32 %v445, %v449
    %v452 = vlaneseq
    %v453 = vshrl.u32 %v452, 7
    %v454 = vsub.s32 0, %v453
    %v455 = vrot.slane %v398, %v454
    %v456 = vmul.f32 %v450, %v455
    %v457 = vmul.f32 %v451, %v455
    %v458 = vlaneseq
    %v459 = vshrl.u32 %v458, 7
    %v460 = vsub.s32 1, %v459
    %v461 = vrot.slane %v398, %v460
    %v462 = vadd.f32 %v456, %v461
    %v463 = vadd.f32 %v457, %v461
    %v465 = vsel %vm215, %v462, 0
    %v468 = vsel %vm215, %v463, 0
    %470 = vmatprep.subr.mxu0 0.0
    %471 = vmatpush1.msra.mxu0 %v399
    %472 = vmatprep.subr.mxu0 0.0
    %473 = vmatpush1.msra.mxu0 %v400
    %474 = vmatprep.subr.mxu0 0.0
    %475 = vmatpush1.msra.mxu0 %v401
    %476 = vmatprep.subr.mxu0 0.0
    %477 = vmatpush1.msra.mxu0 %v402
    %478 = vmatprep.subr.mxu0 0.0
    %479 = vmatpush1.msra.mxu0 0.0
    %480 = vmatprep.subr.mxu0 0.0
    %481 = vmatpush1.msra.mxu0 0.0
    %482 = vmatprep.subr.mxu0 0.0
    %483 = vmatpush1.msra.mxu0 0.0
    %484 = vmatprep.subr.mxu0 0.0
    %485 = vmatpush1.msra.mxu0 0.0
    %486 = vmatprep.subr.mxu0 0.0
    %487 = vmatpush1.msra.mxu0 0.0
    %488 = vmatprep.subr.mxu0 0.0
    %489 = vmatpush1.msra.mxu0 0.0
    %490 = vmatprep.subr.mxu0 0.0
    %491 = vmatpush1.msra.mxu0 0.0
    %492 = vmatprep.subr.mxu0 0.0
    %493 = vmatpush1.msra.mxu0 0.0
    %494 = vmatprep.subr.mxu0 0.0
    %495 = vmatpush1.msra.mxu0 0.0
    %496 = vmatprep.subr.mxu0 0.0
    %497 = vmatpush1.msra.mxu0 0.0
    %498 = vmatprep.subr.mxu0 0.0
    %499 = vmatpush1.msra.mxu0 0.0
    %500 = vmatprep.subr.mxu0 0.0
    %501 = vmatpush1.msra.mxu0 0.0
    %502 = vmatprep.subr.mxu0 0.0
    %503 = vmatpush1.msra.mxu0 0.0
    %504 = vmatprep.subr.mxu0 0.0
    %505 = vmatpush1.msra.mxu0 0.0
    %506 = vmatprep.subr.mxu0 0.0
    %507 = vmatpush1.msra.mxu0 0.0
    %508 = vmatprep.subr.mxu0 0.0
    %509 = vmatpush1.msra.mxu0 0.0
    %510 = vmatprep.subr.mxu0 0.0
    %511 = vmatpush1.msra.mxu0 0.0
    %512 = vmatprep.subr.mxu0 0.0
    %513 = vmatpush1.msra.mxu0 0.0
    %514 = vmatprep.subr.mxu0 0.0
    %515 = vmatpush1.msra.mxu0 0.0
    %516 = vmatprep.subr.mxu0 0.0
    %517 = vmatpush1.msra.mxu0 0.0
    %518 = vmatprep.subr.mxu0 0.0
    %519 = vmatpush1.msra.mxu0 0.0
    %520 = vmatprep.subr.mxu0 0.0
    %521 = vmatpush1.msra.mxu0 0.0
    %522 = vmatprep.subr.mxu0 0.0
    %523 = vmatpush1.msra.mxu0 0.0
    %524 = vmatprep.subr.mxu0 0.0
    %525 = vmatpush1.msra.mxu0 0.0
    %526 = vmatprep.subr.mxu0 0.0
    %527 = vmatpush1.msra.mxu0 0.0
    %528 = vmatprep.subr.mxu0 0.0
    %529 = vmatpush1.msra.mxu0 0.0
    %530 = vmatprep.subr.mxu0 0.0
    %531 = vmatpush1.msra.mxu0 0.0
    %532 = vmatprep.subr.mxu0 0.0
    %533 = vmatpush1.msra.mxu0 0.0
    %534 = vmatprep.mubr.f32.mxu0 0.0
    %535 = vmatmul.mubr.f32.gmra.mrb[0].mxu0 %v465
    %v536 = vpop.f32.mrb[0].mxu0
    %v537 = vadd.f32 0.0, %v536
    %v538 = vpop.f32.mrb[0].mxu0
    %539 = vmatprep.mubr.f32.mxu0 0.0
    %540 = vmatmul.mubr.f32.gmra.mrb[0].mxu0 %v468
    %v541 = vpop.f32.mrb[0].mxu0
    %v542 = vadd.f32 0.0, %v541
    %v543 = vpop.f32.mrb[0].mxu0
    %544 = vdwg.mxu0
    %546 = vrot.lane.b32.xlu0 %v537, 96
    %v547 = vpop.permute.xlu0 %546
    %vm548 = vcmask 64512
    %v549 = vsel %vm548, %v537, 0
    %v551 = vsel %vm548, %v547, 0
    %553 = vmatprep.subr.mxu0 0.0
    %554 = vmatpush1.xpose.msra.mxu0 %v551
    %555 = vmatprep.subr.mxu0 0.0
    %556 = vmatpush1.xpose.msra.mxu0 0.0
    %557 = vmatprep.subr.mxu0 0.0
    %558 = vmatpush1.xpose.msra.mxu0 0.0
    %559 = vmatprep.subr.mxu0 0.0
    %560 = vmatpush1.xpose.msra.mxu0 0.0
    %561 = vmatprep.subr.mxu0 0.0
    %562 = vmatpush1.xpose.msra.mxu0 0.0
    %563 = vmatprep.subr.mxu0 0.0
    %564 = vmatpush1.xpose.msra.mxu0 0.0
    %565 = vmatprep.subr.mxu0 0.0
    %566 = vmatpush1.xpose.msra.mxu0 0.0
    %567 = vmatprep.subr.mxu0 0.0
    %568 = vmatpush1.xpose.msra.mxu0 0.0
    %569 = vmatprep.subr.mxu0 0.0
    %570 = vmatpush1.xpose.msra.mxu0 0.0
    %571 = vmatprep.subr.mxu0 0.0
    %572 = vmatpush1.xpose.msra.mxu0 0.0
    %573 = vmatprep.subr.mxu0 0.0
    %574 = vmatpush1.xpose.msra.mxu0 0.0
    %575 = vmatprep.subr.mxu0 0.0
    %576 = vmatpush1.xpose.msra.mxu0 0.0
    %577 = vmatprep.subr.mxu0 0.0
    %578 = vmatpush1.xpose.msra.mxu0 0.0
    %579 = vmatprep.subr.mxu0 0.0
    %580 = vmatpush1.xpose.msra.mxu0 0.0
    %581 = vmatprep.subr.mxu0 0.0
    %582 = vmatpush1.xpose.msra.mxu0 0.0
    %583 = vmatprep.subr.mxu0 0.0
    %584 = vmatpush1.xpose.msra.mxu0 0.0
    %585 = vmatprep.subr.mxu0 0.0
    %586 = vmatpush1.xpose.msra.mxu0 0.0
    %587 = vmatprep.subr.mxu0 0.0
    %588 = vmatpush1.xpose.msra.mxu0 0.0
    %589 = vmatprep.subr.mxu0 0.0
    %590 = vmatpush1.xpose.msra.mxu0 0.0
    %591 = vmatprep.subr.mxu0 0.0
    %592 = vmatpush1.xpose.msra.mxu0 0.0
    %593 = vmatprep.subr.mxu0 0.0
    %594 = vmatpush1.xpose.msra.mxu0 0.0
    %595 = vmatprep.subr.mxu0 0.0
    %596 = vmatpush1.xpose.msra.mxu0 0.0
    %597 = vmatprep.subr.mxu0 0.0
    %598 = vmatpush1.xpose.msra.mxu0 0.0
    %599 = vmatprep.subr.mxu0 0.0
    %600 = vmatpush1.xpose.msra.mxu0 0.0
    %601 = vmatprep.subr.mxu0 0.0
    %602 = vmatpush1.xpose.msra.mxu0 0.0
    %603 = vmatprep.subr.mxu0 0.0
    %604 = vmatpush1.xpose.msra.mxu0 0.0
    %605 = vmatprep.subr.mxu0 0.0
    %606 = vmatpush1.xpose.msra.mxu0 0.0
    %607 = vmatprep.subr.mxu0 0.0
    %608 = vmatpush1.xpose.msra.mxu0 0.0
    %609 = vmatprep.subr.mxu0 0.0
    %610 = vmatpush1.xpose.msra.mxu0 0.0
    %611 = vmatprep.subr.mxu0 0.0
    %612 = vmatpush1.xpose.msra.mxu0 0.0
    %613 = vmatprep.subr.mxu0 0.0
    %614 = vmatpush1.xpose.msra.mxu0 0.0
    %615 = vmatprep.subr.mxu0 0.0
    %616 = vmatpush1.xpose.msra.mxu0 0.0
    %617 = vmatprep.mubr.f32.mxu0 0.0
    %618 = vmatmul.mubr.f32.gmra.mrb[0].mxu0 %v549
    %v619 = vpop.f32.mrb[0].mxu0
    %v620 = vadd.f32 0.0, %v619
    %v621 = vpop.f32.mrb[0].mxu0
    %622 = vdwg.mxu0
    %624 = vrot.lane.b32.xlu0 %v542, 96
    %v625 = vpop.permute.xlu0 %624
    %v626 = vsel %vm548, %v542, 0
    %v628 = vsel %vm548, %v625, 0
    %630 = vmatprep.subr.mxu0 0.0
    %631 = vmatpush1.xpose.msra.mxu0 %v628
    %632 = vmatprep.subr.mxu0 0.0
    %633 = vmatpush1.xpose.msra.mxu0 0.0
    %634 = vmatprep.subr.mxu0 0.0
    %635 = vmatpush1.xpose.msra.mxu0 0.0
    %636 = vmatprep.subr.mxu0 0.0
    %637 = vmatpush1.xpose.msra.mxu0 0.0
    %638 = vmatprep.subr.mxu0 0.0
    %639 = vmatpush1.xpose.msra.mxu0 0.0
    %640 = vmatprep.subr.mxu0 0.0
    %641 = vmatpush1.xpose.msra.mxu0 0.0
    %642 = vmatprep.subr.mxu0 0.0
    %643 = vmatpush1.xpose.msra.mxu0 0.0
    %644 = vmatprep.subr.mxu0 0.0
    %645 = vmatpush1.xpose.msra.mxu0 0.0
    %646 = vmatprep.subr.mxu0 0.0
    %647 = vmatpush1.xpose.msra.mxu0 0.0
    %648 = vmatprep.subr.mxu0 0.0
    %649 = vmatpush1.xpose.msra.mxu0 0.0
    %650 = vmatprep.subr.mxu0 0.0
    %651 = vmatpush1.xpose.msra.mxu0 0.0
    %652 = vmatprep.subr.mxu0 0.0
    %653 = vmatpush1.xpose.msra.mxu0 0.0
    %654 = vmatprep.subr.mxu0 0.0
    %655 = vmatpush1.xpose.msra.mxu0 0.0
    %656 = vmatprep.subr.mxu0 0.0
    %657 = vmatpush1.xpose.msra.mxu0 0.0
    %658 = vmatprep.subr.mxu0 0.0
    %659 = vmatpush1.xpose.msra.mxu0 0.0
    %660 = vmatprep.subr.mxu0 0.0
    %661 = vmatpush1.xpose.msra.mxu0 0.0
    %662 = vmatprep.subr.mxu0 0.0
    %663 = vmatpush1.xpose.msra.mxu0 0.0
    %664 = vmatprep.subr.mxu0 0.0
    %665 = vmatpush1.xpose.msra.mxu0 0.0
    %666 = vmatprep.subr.mxu0 0.0
    %667 = vmatpush1.xpose.msra.mxu0 0.0
    %668 = vmatprep.subr.mxu0 0.0
    %669 = vmatpush1.xpose.msra.mxu0 0.0
    %670 = vmatprep.subr.mxu0 0.0
    %671 = vmatpush1.xpose.msra.mxu0 0.0
    %672 = vmatprep.subr.mxu0 0.0
    %673 = vmatpush1.xpose.msra.mxu0 0.0
    %674 = vmatprep.subr.mxu0 0.0
    %675 = vmatpush1.xpose.msra.mxu0 0.0
    %676 = vmatprep.subr.mxu0 0.0
    %677 = vmatpush1.xpose.msra.mxu0 0.0
    %678 = vmatprep.subr.mxu0 0.0
    %679 = vmatpush1.xpose.msra.mxu0 0.0
    %680 = vmatprep.subr.mxu0 0.0
    %681 = vmatpush1.xpose.msra.mxu0 0.0
    %682 = vmatprep.subr.mxu0 0.0
    %683 = vmatpush1.xpose.msra.mxu0 0.0
    %684 = vmatprep.subr.mxu0 0.0
    %685 = vmatpush1.xpose.msra.mxu0 0.0
    %686 = vmatprep.subr.mxu0 0.0
    %687 = vmatpush1.xpose.msra.mxu0 0.0
    %688 = vmatprep.subr.mxu0 0.0
    %689 = vmatpush1.xpose.msra.mxu0 0.0
    %690 = vmatprep.subr.mxu0 0.0
    %691 = vmatpush1.xpose.msra.mxu0 0.0
    %692 = vmatprep.subr.mxu0 0.0
    %693 = vmatpush1.xpose.msra.mxu0 0.0
    %694 = vmatprep.mubr.f32.mxu0 0.0
    %695 = vmatmul.mubr.f32.gmra.mrb[0].mxu0 %v626
    %v696 = vpop.f32.mrb[0].mxu0
    %v697 = vadd.f32 0.0, %v696
    %v698 = vpop.f32.mrb[0].mxu0
    %699 = vdwg.mxu0
    %v700 = vsel %vm548, %v620, -inf
    %701 = vmax.xlane.f32.xlu0 %v700
    %v702 = vpop.xlane.xlu0 %701
    %v703 = vsel %vm548, %v697, -inf
    %704 = vmax.xlane.f32.xlu0 %v703
    %v705 = vpop.xlane.xlu0 %704
    %v706 = vsub.f32 %v620, %v702
    %v707 = vsub.f32 %v697, %v705
    %v708 = vmul.f32 %v706, 1.442695
    %v709 = vpow.pop %v708
    %v710 = vmul.f32 %v707, 1.442695
    %v711 = vpow.pop %v710
    %v712 = vsel %vm548, %v709, 0.0
    %713 = vadd.xlane.f32.xlu0 %v712
    %v714 = vpop.xlane.xlu0 %713
    %v715 = vsel %vm548, %v711, 0.0
    %716 = vadd.xlane.f32.xlu0 %v715
    %v717 = vpop.xlane.xlu0 %716
    %v718 = vrcp.pop %v714
    %v719 = vmul.f32 1.0, %v718
    %v720 = vrcp.pop %v717
    %v721 = vmul.f32 1.0, %v720
    %v722 = vmul.f32 %v709, %v719
    %v723 = vmul.f32 %v711, %v721
    %724 = vrot.lane.b32.xlu0 %v537, 64
    %v725 = vpop.permute.xlu0 %724
    %v728 = vsel %vm548, %v722, 0
    %730 = vmatprep.subr.mxu0 0.0
    %731 = vmatpush1.msra.mxu0 %v725
    %732 = vmatprep.subr.mxu0 0.0
    %733 = vmatpush1.msra.mxu0 0.0
    %734 = vmatprep.subr.mxu0 0.0
    %735 = vmatpush1.msra.mxu0 0.0
    %736 = vmatprep.subr.mxu0 0.0
    %737 = vmatpush1.msra.mxu0 0.0
    %738 = vmatprep.subr.mxu0 0.0
    %739 = vmatpush1.msra.mxu0 0.0
    %740 = vmatprep.subr.mxu0 0.0
    %741 = vmatpush1.msra.mxu0 0.0
    %742 = vmatprep.subr.mxu0 0.0
    %743 = vmatpush1.msra.mxu0 0.0
    %744 = vmatprep.subr.mxu0 0.0
    %745 = vmatpush1.msra.mxu0 0.0
    %746 = vmatprep.subr.mxu0 0.0
    %747 = vmatpush1.msra.mxu0 0.0
    %748 = vmatprep.subr.mxu0 0.0
    %749 = vmatpush1.msra.mxu0 0.0
    %750 = vmatprep.subr.mxu0 0.0
    %751 = vmatpush1.msra.mxu0 0.0
    %752 = vmatprep.subr.mxu0 0.0
    %753 = vmatpush1.msra.mxu0 0.0
    %754 = vmatprep.subr.mxu0 0.0
    %755 = vmatpush1.msra.mxu0 0.0
    %756 = vmatprep.subr.mxu0 0.0
    %757 = vmatpush1.msra.mxu0 0.0
    %758 = vmatprep.subr.mxu0 0.0
    %759 = vmatpush1.msra.mxu0 0.0
    %760 = vmatprep.subr.mxu0 0.0
    %761 = vmatpush1.msra.mxu0 0.0
    %762 = vmatprep.subr.mxu0 0.0
    %763 = vmatpush1.msra.mxu0 0.0
    %764 = vmatprep.subr.mxu0 0.0
    %765 = vmatpush1.msra.mxu0 0.0
    %766 = vmatprep.subr.mxu0 0.0
    %767 = vmatpush1.msra.mxu0 0.0
    %768 = vmatprep.subr.mxu0 0.0
    %769 = vmatpush1.msra.mxu0 0.0
    %770 = vmatprep.subr.mxu0 0.0
    %771 = vmatpush1.msra.mxu0 0.0
    %772 = vmatprep.subr.mxu0 0.0
    %773 = vmatpush1.msra.mxu0 0.0
    %774 = vmatprep.subr.mxu0 0.0
    %775 = vmatpush1.msra.mxu0 0.0
    %776 = vmatprep.subr.mxu0 0.0
    %777 = vmatpush1.msra.mxu0 0.0
    %778 = vmatprep.subr.mxu0 0.0
    %779 = vmatpush1.msra.mxu0 0.0
    %780 = vmatprep.subr.mxu0 0.0
    %781 = vmatpush1.msra.mxu0 0.0
    %782 = vmatprep.subr.mxu0 0.0
    %783 = vmatpush1.msra.mxu0 0.0
    %784 = vmatprep.subr.mxu0 0.0
    %785 = vmatpush1.msra.mxu0 0.0
    %786 = vmatprep.subr.mxu0 0.0
    %787 = vmatpush1.msra.mxu0 0.0
    %788 = vmatprep.subr.mxu0 0.0
    %789 = vmatpush1.msra.mxu0 0.0
    %790 = vmatprep.subr.mxu0 0.0
    %791 = vmatpush1.msra.mxu0 0.0
    %792 = vmatprep.subr.mxu0 0.0
    %793 = vmatpush1.msra.mxu0 0.0
    %794 = vmatprep.mubr.f32.mxu0 0.0
    %795 = vmatmul.mubr.f32.gmra.mrb[0].mxu0 %v728
    %v796 = vpop.f32.mrb[0].mxu0
    %v797 = vadd.f32 0.0, %v796
    %v798 = vpop.f32.mrb[0].mxu0
    %799 = vdwg.mxu0
    %800 = vrot.lane.b32.xlu0 %v542, 64
    %v801 = vpop.permute.xlu0 %800
    %v804 = vsel %vm548, %v723, 0
    %806 = vmatprep.subr.mxu0 0.0
    %807 = vmatpush1.msra.mxu0 %v801
    %808 = vmatprep.subr.mxu0 0.0
    %809 = vmatpush1.msra.mxu0 0.0
    %810 = vmatprep.subr.mxu0 0.0
    %811 = vmatpush1.msra.mxu0 0.0
    %812 = vmatprep.subr.mxu0 0.0
    %813 = vmatpush1.msra.mxu0 0.0
    %814 = vmatprep.subr.mxu0 0.0
    %815 = vmatpush1.msra.mxu0 0.0
    %816 = vmatprep.subr.mxu0 0.0
    %817 = vmatpush1.msra.mxu0 0.0
    %818 = vmatprep.subr.mxu0 0.0
    %819 = vmatpush1.msra.mxu0 0.0
    %820 = vmatprep.subr.mxu0 0.0
    %821 = vmatpush1.msra.mxu0 0.0
    %822 = vmatprep.subr.mxu0 0.0
    %823 = vmatpush1.msra.mxu0 0.0
    %824 = vmatprep.subr.mxu0 0.0
    %825 = vmatpush1.msra.mxu0 0.0
    %826 = vmatprep.subr.mxu0 0.0
    %827 = vmatpush1.msra.mxu0 0.0
    %828 = vmatprep.subr.mxu0 0.0
    %829 = vmatpush1.msra.mxu0 0.0
    %830 = vmatprep.subr.mxu0 0.0
    %831 = vmatpush1.msra.mxu0 0.0
    %832 = vmatprep.subr.mxu0 0.0
    %833 = vmatpush1.msra.mxu0 0.0
    %834 = vmatprep.subr.mxu0 0.0
    %835 = vmatpush1.msra.mxu0 0.0
    %836 = vmatprep.subr.mxu0 0.0
    %837 = vmatpush1.msra.mxu0 0.0
    %838 = vmatprep.subr.mxu0 0.0
    %839 = vmatpush1.msra.mxu0 0.0
    %840 = vmatprep.subr.mxu0 0.0
    %841 = vmatpush1.msra.mxu0 0.0
    %842 = vmatprep.subr.mxu0 0.0
    %843 = vmatpush1.msra.mxu0 0.0
    %844 = vmatprep.subr.mxu0 0.0
    %845 = vmatpush1.msra.mxu0 0.0
    %846 = vmatprep.subr.mxu0 0.0
    %847 = vmatpush1.msra.mxu0 0.0
    %848 = vmatprep.subr.mxu0 0.0
    %849 = vmatpush1.msra.mxu0 0.0
    %850 = vmatprep.subr.mxu0 0.0
    %851 = vmatpush1.msra.mxu0 0.0
    %852 = vmatprep.subr.mxu0 0.0
    %853 = vmatpush1.msra.mxu0 0.0
    %854 = vmatprep.subr.mxu0 0.0
    %855 = vmatpush1.msra.mxu0 0.0
    %856 = vmatprep.subr.mxu0 0.0
    %857 = vmatpush1.msra.mxu0 0.0
    %858 = vmatprep.subr.mxu0 0.0
    %859 = vmatpush1.msra.mxu0 0.0
    %860 = vmatprep.subr.mxu0 0.0
    %861 = vmatpush1.msra.mxu0 0.0
    %862 = vmatprep.subr.mxu0 0.0
    %863 = vmatpush1.msra.mxu0 0.0
    %864 = vmatprep.subr.mxu0 0.0
    %865 = vmatpush1.msra.mxu0 0.0
    %866 = vmatprep.subr.mxu0 0.0
    %867 = vmatpush1.msra.mxu0 0.0
    %868 = vmatprep.subr.mxu0 0.0
    %869 = vmatpush1.msra.mxu0 0.0
    %870 = vmatprep.mubr.f32.mxu0 0.0
    %871 = vmatmul.mubr.f32.gmra.mrb[0].mxu0 %v804
    %v872 = vpop.f32.mrb[0].mxu0
    %v873 = vadd.f32 0.0, %v872
    %v874 = vpop.f32.mrb[0].mxu0
    %875 = vdwg.mxu0
    %876 = vrot.lane.b32.xlu0 %v537, 120
    %v877 = vpop.permute.xlu0 %876
    %878 = vrot.lane.b32.xlu0 %v537, 88
    %v879 = vpop.permute.xlu0 %878
    %v880 = vsel %vm548, %v877, 0
    %v882 = vsel %vm548, %v879, 0
    %884 = vmatprep.subr.mxu0 0.0
    %885 = vmatpush1.xpose.msra.mxu0 %v882
    %886 = vmatprep.subr.mxu0 0.0
    %887 = vmatpush1.xpose.msra.mxu0 0.0
    %888 = vmatprep.subr.mxu0 0.0
    %889 = vmatpush1.xpose.msra.mxu0 0.0
    %890 = vmatprep.subr.mxu0 0.0
    %891 = vmatpush1.xpose.msra.mxu0 0.0
    %892 = vmatprep.subr.mxu0 0.0
    %893 = vmatpush1.xpose.msra.mxu0 0.0
    %894 = vmatprep.subr.mxu0 0.0
    %895 = vmatpush1.xpose.msra.mxu0 0.0
    %896 = vmatprep.subr.mxu0 0.0
    %897 = vmatpush1.xpose.msra.mxu0 0.0
    %898 = vmatprep.subr.mxu0 0.0
    %899 = vmatpush1.xpose.msra.mxu0 0.0
    %900 = vmatprep.subr.mxu0 0.0
    %901 = vmatpush1.xpose.msra.mxu0 0.0
    %902 = vmatprep.subr.mxu0 0.0
    %903 = vmatpush1.xpose.msra.mxu0 0.0
    %904 = vmatprep.subr.mxu0 0.0
    %905 = vmatpush1.xpose.msra.mxu0 0.0
    %906 = vmatprep.subr.mxu0 0.0
    %907 = vmatpush1.xpose.msra.mxu0 0.0
    %908 = vmatprep.subr.mxu0 0.0
    %909 = vmatpush1.xpose.msra.mxu0 0.0
    %910 = vmatprep.subr.mxu0 0.0
    %911 = vmatpush1.xpose.msra.mxu0 0.0
    %912 = vmatprep.subr.mxu0 0.0
    %913 = vmatpush1.xpose.msra.mxu0 0.0
    %914 = vmatprep.subr.mxu0 0.0
    %915 = vmatpush1.xpose.msra.mxu0 0.0
    %916 = vmatprep.subr.mxu0 0.0
    %917 = vmatpush1.xpose.msra.mxu0 0.0
    %918 = vmatprep.subr.mxu0 0.0
    %919 = vmatpush1.xpose.msra.mxu0 0.0
    %920 = vmatprep.subr.mxu0 0.0
    %921 = vmatpush1.xpose.msra.mxu0 0.0
    %922 = vmatprep.subr.mxu0 0.0
    %923 = vmatpush1.xpose.msra.mxu0 0.0
    %924 = vmatprep.subr.mxu0 0.0
    %925 = vmatpush1.xpose.msra.mxu0 0.0
    %926 = vmatprep.subr.mxu0 0.0
    %927 = vmatpush1.xpose.msra.mxu0 0.0
    %928 = vmatprep.subr.mxu0 0.0
    %929 = vmatpush1.xpose.msra.mxu0 0.0
    %930 = vmatprep.subr.mxu0 0.0
    %931 = vmatpush1.xpose.msra.mxu0 0.0
    %932 = vmatprep.subr.mxu0 0.0
    %933 = vmatpush1.xpose.msra.mxu0 0.0
    %934 = vmatprep.subr.mxu0 0.0
    %935 = vmatpush1.xpose.msra.mxu0 0.0
    %936 = vmatprep.subr.mxu0 0.0
    %937 = vmatpush1.xpose.msra.mxu0 0.0
    %938 = vmatprep.subr.mxu0 0.0
    %939 = vmatpush1.xpose.msra.mxu0 0.0
    %940 = vmatprep.subr.mxu0 0.0
    %941 = vmatpush1.xpose.msra.mxu0 0.0
    %942 = vmatprep.subr.mxu0 0.0
    %943 = vmatpush1.xpose.msra.mxu0 0.0
    %944 = vmatprep.subr.mxu0 0.0
    %945 = vmatpush1.xpose.msra.mxu0 0.0
    %946 = vmatprep.subr.mxu0 0.0
    %947 = vmatpush1.xpose.msra.mxu0 0.0
    %948 = vmatprep.mubr.f32.mxu0 0.0
    %949 = vmatmul.mubr.f32.gmra.mrb[0].mxu0 %v880
    %v950 = vpop.f32.mrb[0].mxu0
    %v951 = vadd.f32 0.0, %v950
    %v952 = vpop.f32.mrb[0].mxu0
    %953 = vdwg.mxu0
    %954 = vrot.lane.b32.xlu0 %v542, 120
    %v955 = vpop.permute.xlu0 %954
    %956 = vrot.lane.b32.xlu0 %v542, 88
    %v957 = vpop.permute.xlu0 %956
    %v958 = vsel %vm548, %v955, 0
    %v960 = vsel %vm548, %v957, 0
    %962 = vmatprep.subr.mxu0 0.0
    %963 = vmatpush1.xpose.msra.mxu0 %v960
    %964 = vmatprep.subr.mxu0 0.0
    %965 = vmatpush1.xpose.msra.mxu0 0.0
    %966 = vmatprep.subr.mxu0 0.0
    %967 = vmatpush1.xpose.msra.mxu0 0.0
    %968 = vmatprep.subr.mxu0 0.0
    %969 = vmatpush1.xpose.msra.mxu0 0.0
    %970 = vmatprep.subr.mxu0 0.0
    %971 = vmatpush1.xpose.msra.mxu0 0.0
    %972 = vmatprep.subr.mxu0 0.0
    %973 = vmatpush1.xpose.msra.mxu0 0.0
    %974 = vmatprep.subr.mxu0 0.0
    %975 = vmatpush1.xpose.msra.mxu0 0.0
    %976 = vmatprep.subr.mxu0 0.0
    %977 = vmatpush1.xpose.msra.mxu0 0.0
    %978 = vmatprep.subr.mxu0 0.0
    %979 = vmatpush1.xpose.msra.mxu0 0.0
    %980 = vmatprep.subr.mxu0 0.0
    %981 = vmatpush1.xpose.msra.mxu0 0.0
    %982 = vmatprep.subr.mxu0 0.0
    %983 = vmatpush1.xpose.msra.mxu0 0.0
    %984 = vmatprep.subr.mxu0 0.0
    %985 = vmatpush1.xpose.msra.mxu0 0.0
    %986 = vmatprep.subr.mxu0 0.0
    %987 = vmatpush1.xpose.msra.mxu0 0.0
    %988 = vmatprep.subr.mxu0 0.0
    %989 = vmatpush1.xpose.msra.mxu0 0.0
    %990 = vmatprep.subr.mxu0 0.0
    %991 = vmatpush1.xpose.msra.mxu0 0.0
    %992 = vmatprep.subr.mxu0 0.0
    %993 = vmatpush1.xpose.msra.mxu0 0.0
    %994 = vmatprep.subr.mxu0 0.0
    %995 = vmatpush1.xpose.msra.mxu0 0.0
    %996 = vmatprep.subr.mxu0 0.0
    %997 = vmatpush1.xpose.msra.mxu0 0.0
    %998 = vmatprep.subr.mxu0 0.0
    %999 = vmatpush1.xpose.msra.mxu0 0.0
    %1000 = vmatprep.subr.mxu0 0.0
    %1001 = vmatpush1.xpose.msra.mxu0 0.0
    %1002 = vmatprep.subr.mxu0 0.0
    %1003 = vmatpush1.xpose.msra.mxu0 0.0
    %1004 = vmatprep.subr.mxu0 0.0
    %1005 = vmatpush1.xpose.msra.mxu0 0.0
    %1006 = vmatprep.subr.mxu0 0.0
    %1007 = vmatpush1.xpose.msra.mxu0 0.0
    %1008 = vmatprep.subr.mxu0 0.0
    %1009 = vmatpush1.xpose.msra.mxu0 0.0
    %1010 = vmatprep.subr.mxu0 0.0
    %1011 = vmatpush1.xpose.msra.mxu0 0.0
    %1012 = vmatprep.subr.mxu0 0.0
    %1013 = vmatpush1.xpose.msra.mxu0 0.0
    %1014 = vmatprep.subr.mxu0 0.0
    %1015 = vmatpush1.xpose.msra.mxu0 0.0
    %1016 = vmatprep.subr.mxu0 0.0
    %1017 = vmatpush1.xpose.msra.mxu0 0.0
    %1018 = vmatprep.subr.mxu0 0.0
    %1019 = vmatpush1.xpose.msra.mxu0 0.0
    %1020 = vmatprep.subr.mxu0 0.0
    %1021 = vmatpush1.xpose.msra.mxu0 0.0
    %1022 = vmatprep.subr.mxu0 0.0
    %1023 = vmatpush1.xpose.msra.mxu0 0.0
    %1024 = vmatprep.subr.mxu0 0.0
    %1025 = vmatpush1.xpose.msra.mxu0 0.0
    %1026 = vmatprep.mubr.f32.mxu0 0.0
    %1027 = vmatmul.mubr.f32.gmra.mrb[0].mxu0 %v958
    %v1028 = vpop.f32.mrb[0].mxu0
    %v1029 = vadd.f32 0.0, %v1028
    %v1030 = vpop.f32.mrb[0].mxu0
    %1031 = vdwg.mxu0
    %v1032 = vsel %vm548, %v951, -inf
    %1033 = vmax.xlane.f32.xlu0 %v1032
    %v1034 = vpop.xlane.xlu0 %1033
    %v1035 = vsel %vm548, %v1029, -inf
    %1036 = vmax.xlane.f32.xlu0 %v1035
    %v1037 = vpop.xlane.xlu0 %1036
    %v1038 = vsub.f32 %v951, %v1034
    %v1039 = vsub.f32 %v1029, %v1037
    %v1040 = vmul.f32 %v1038, 1.442695
    %v1041 = vpow.pop %v1040
    %v1042 = vmul.f32 %v1039, 1.442695
    %v1043 = vpow.pop %v1042
    %v1044 = vsel %vm548, %v1041, 0.0
    %1045 = vadd.xlane.f32.xlu0 %v1044
    %v1046 = vpop.xlane.xlu0 %1045
    %v1047 = vsel %vm548, %v1043, 0.0
    %1048 = vadd.xlane.f32.xlu0 %v1047
    %v1049 = vpop.xlane.xlu0 %1048
    %v1050 = vrcp.pop %v1046
    %v1051 = vmul.f32 1.0, %v1050
    %v1052 = vrcp.pop %v1049
    %v1053 = vmul.f32 1.0, %v1052
    %v1054 = vmul.f32 %v1041, %v1051
    %v1055 = vmul.f32 %v1043, %v1053
    %1056 = vrot.lane.b32.xlu0 %v537, 56
    %v1057 = vpop.permute.xlu0 %1056
    %v1060 = vsel %vm548, %v1054, 0
    %1062 = vmatprep.subr.mxu0 0.0
    %1063 = vmatpush1.msra.mxu0 %v1057
    %1064 = vmatprep.subr.mxu0 0.0
    %1065 = vmatpush1.msra.mxu0 0.0
    %1066 = vmatprep.subr.mxu0 0.0
    %1067 = vmatpush1.msra.mxu0 0.0
    %1068 = vmatprep.subr.mxu0 0.0
    %1069 = vmatpush1.msra.mxu0 0.0
    %1070 = vmatprep.subr.mxu0 0.0
    %1071 = vmatpush1.msra.mxu0 0.0
    %1072 = vmatprep.subr.mxu0 0.0
    %1073 = vmatpush1.msra.mxu0 0.0
    %1074 = vmatprep.subr.mxu0 0.0
    %1075 = vmatpush1.msra.mxu0 0.0
    %1076 = vmatprep.subr.mxu0 0.0
    %1077 = vmatpush1.msra.mxu0 0.0
    %1078 = vmatprep.subr.mxu0 0.0
    %1079 = vmatpush1.msra.mxu0 0.0
    %1080 = vmatprep.subr.mxu0 0.0
    %1081 = vmatpush1.msra.mxu0 0.0
    %1082 = vmatprep.subr.mxu0 0.0
    %1083 = vmatpush1.msra.mxu0 0.0
    %1084 = vmatprep.subr.mxu0 0.0
    %1085 = vmatpush1.msra.mxu0 0.0
    %1086 = vmatprep.subr.mxu0 0.0
    %1087 = vmatpush1.msra.mxu0 0.0
    %1088 = vmatprep.subr.mxu0 0.0
    %1089 = vmatpush1.msra.mxu0 0.0
    %1090 = vmatprep.subr.mxu0 0.0
    %1091 = vmatpush1.msra.mxu0 0.0
    %1092 = vmatprep.subr.mxu0 0.0
    %1093 = vmatpush1.msra.mxu0 0.0
    %1094 = vmatprep.subr.mxu0 0.0
    %1095 = vmatpush1.msra.mxu0 0.0
    %1096 = vmatprep.subr.mxu0 0.0
    %1097 = vmatpush1.msra.mxu0 0.0
    %1098 = vmatprep.subr.mxu0 0.0
    %1099 = vmatpush1.msra.mxu0 0.0
    %1100 = vmatprep.subr.mxu0 0.0
    %1101 = vmatpush1.msra.mxu0 0.0
    %1102 = vmatprep.subr.mxu0 0.0
    %1103 = vmatpush1.msra.mxu0 0.0
    %1104 = vmatprep.subr.mxu0 0.0
    %1105 = vmatpush1.msra.mxu0 0.0
    %1106 = vmatprep.subr.mxu0 0.0
    %1107 = vmatpush1.msra.mxu0 0.0
    %1108 = vmatprep.subr.mxu0 0.0
    %1109 = vmatpush1.msra.mxu0 0.0
    %1110 = vmatprep.subr.mxu0 0.0
    %1111 = vmatpush1.msra.mxu0 0.0
    %1112 = vmatprep.subr.mxu0 0.0
    %1113 = vmatpush1.msra.mxu0 0.0
    %1114 = vmatprep.subr.mxu0 0.0
    %1115 = vmatpush1.msra.mxu0 0.0
    %1116 = vmatprep.subr.mxu0 0.0
    %1117 = vmatpush1.msra.mxu0 0.0
    %1118 = vmatprep.subr.mxu0 0.0
    %1119 = vmatpush1.msra.mxu0 0.0
    %1120 = vmatprep.subr.mxu0 0.0
    %1121 = vmatpush1.msra.mxu0 0.0
    %1122 = vmatprep.subr.mxu0 0.0
    %1123 = vmatpush1.msra.mxu0 0.0
    %1124 = vmatprep.subr.mxu0 0.0
    %1125 = vmatpush1.msra.mxu0 0.0
    %1126 = vmatprep.mubr.f32.mxu0 0.0
    %1127 = vmatmul.mubr.f32.gmra.mrb[0].mxu0 %v1060
    %v1128 = vpop.f32.mrb[0].mxu0
    %v1129 = vadd.f32 0.0, %v1128
    %v1130 = vpop.f32.mrb[0].mxu0
    %1131 = vdwg.mxu0
    %1132 = vrot.lane.b32.xlu0 %v542, 56
    %v1133 = vpop.permute.xlu0 %1132
    %v1136 = vsel %vm548, %v1055, 0
    %1138 = vmatprep.subr.mxu0 0.0
    %1139 = vmatpush1.msra.mxu0 %v1133
    %1140 = vmatprep.subr.mxu0 0.0
    %1141 = vmatpush1.msra.mxu0 0.0
    %1142 = vmatprep.subr.mxu0 0.0
    %1143 = vmatpush1.msra.mxu0 0.0
    %1144 = vmatprep.subr.mxu0 0.0
    %1145 = vmatpush1.msra.mxu0 0.0
    %1146 = vmatprep.subr.mxu0 0.0
    %1147 = vmatpush1.msra.mxu0 0.0
    %1148 = vmatprep.subr.mxu0 0.0
    %1149 = vmatpush1.msra.mxu0 0.0
    %1150 = vmatprep.subr.mxu0 0.0
    %1151 = vmatpush1.msra.mxu0 0.0
    %1152 = vmatprep.subr.mxu0 0.0
    %1153 = vmatpush1.msra.mxu0 0.0
    %1154 = vmatprep.subr.mxu0 0.0
    %1155 = vmatpush1.msra.mxu0 0.0
    %1156 = vmatprep.subr.mxu0 0.0
    %1157 = vmatpush1.msra.mxu0 0.0
    %1158 = vmatprep.subr.mxu0 0.0
    %1159 = vmatpush1.msra.mxu0 0.0
    %1160 = vmatprep.subr.mxu0 0.0
    %1161 = vmatpush1.msra.mxu0 0.0
    %1162 = vmatprep.subr.mxu0 0.0
    %1163 = vmatpush1.msra.mxu0 0.0
    %1164 = vmatprep.subr.mxu0 0.0
    %1165 = vmatpush1.msra.mxu0 0.0
    %1166 = vmatprep.subr.mxu0 0.0
    %1167 = vmatpush1.msra.mxu0 0.0
    %1168 = vmatprep.subr.mxu0 0.0
    %1169 = vmatpush1.msra.mxu0 0.0
    %1170 = vmatprep.subr.mxu0 0.0
    %1171 = vmatpush1.msra.mxu0 0.0
    %1172 = vmatprep.subr.mxu0 0.0
    %1173 = vmatpush1.msra.mxu0 0.0
    %1174 = vmatprep.subr.mxu0 0.0
    %1175 = vmatpush1.msra.mxu0 0.0
    %1176 = vmatprep.subr.mxu0 0.0
    %1177 = vmatpush1.msra.mxu0 0.0
    %1178 = vmatprep.subr.mxu0 0.0
    %1179 = vmatpush1.msra.mxu0 0.0
    %1180 = vmatprep.subr.mxu0 0.0
    %1181 = vmatpush1.msra.mxu0 0.0
    %1182 = vmatprep.subr.mxu0 0.0
    %1183 = vmatpush1.msra.mxu0 0.0
    %1184 = vmatprep.subr.mxu0 0.0
    %1185 = vmatpush1.msra.mxu0 0.0
    %1186 = vmatprep.subr.mxu0 0.0
    %1187 = vmatpush1.msra.mxu0 0.0
    %1188 = vmatprep.subr.mxu0 0.0
    %1189 = vmatpush1.msra.mxu0 0.0
    %1190 = vmatprep.subr.mxu0 0.0
    %1191 = vmatpush1.msra.mxu0 0.0
    %1192 = vmatprep.subr.mxu0 0.0
    %1193 = vmatpush1.msra.mxu0 0.0
    %1194 = vmatprep.subr.mxu0 0.0
    %1195 = vmatpush1.msra.mxu0 0.0
    %1196 = vmatprep.subr.mxu0 0.0
    %1197 = vmatpush1.msra.mxu0 0.0
    %1198 = vmatprep.subr.mxu0 0.0
    %1199 = vmatpush1.msra.mxu0 0.0
    %1200 = vmatprep.subr.mxu0 0.0
    %1201 = vmatpush1.msra.mxu0 0.0
    %1202 = vmatprep.mubr.f32.mxu0 0.0
    %1203 = vmatmul.mubr.f32.gmra.mrb[0].mxu0 %v1136
    %v1204 = vpop.f32.mrb[0].mxu0
    %v1205 = vadd.f32 0.0, %v1204
    %v1206 = vpop.f32.mrb[0].mxu0
    %1207 = vdwg.mxu0
    %v1209 = vsel %vm548, %v1129, 0
    %v1212 = vsel %vm548, %v1205, 0
    %1214 = vmatprep.subr.mxu0 0.0
    %1215 = vmatpush1.msra.mxu0 %v404
    %1216 = vmatprep.subr.mxu0 0.0
    %1217 = vmatpush1.msra.mxu0 0.0
    %1218 = vmatprep.subr.mxu0 0.0
    %1219 = vmatpush1.msra.mxu0 0.0
    %1220 = vmatprep.subr.mxu0 0.0
    %1221 = vmatpush1.msra.mxu0 0.0
    %1222 = vmatprep.subr.mxu0 0.0
    %1223 = vmatpush1.msra.mxu0 0.0
    %1224 = vmatprep.subr.mxu0 0.0
    %1225 = vmatpush1.msra.mxu0 0.0
    %1226 = vmatprep.subr.mxu0 0.0
    %1227 = vmatpush1.msra.mxu0 0.0
    %1228 = vmatprep.subr.mxu0 0.0
    %1229 = vmatpush1.msra.mxu0 0.0
    %1230 = vmatprep.subr.mxu0 0.0
    %1231 = vmatpush1.msra.mxu0 0.0
    %1232 = vmatprep.subr.mxu0 0.0
    %1233 = vmatpush1.msra.mxu0 0.0
    %1234 = vmatprep.subr.mxu0 0.0
    %1235 = vmatpush1.msra.mxu0 0.0
    %1236 = vmatprep.subr.mxu0 0.0
    %1237 = vmatpush1.msra.mxu0 0.0
    %1238 = vmatprep.subr.mxu0 0.0
    %1239 = vmatpush1.msra.mxu0 0.0
    %1240 = vmatprep.subr.mxu0 0.0
    %1241 = vmatpush1.msra.mxu0 0.0
    %1242 = vmatprep.subr.mxu0 0.0
    %1243 = vmatpush1.msra.mxu0 0.0
    %1244 = vmatprep.subr.mxu0 0.0
    %1245 = vmatpush1.msra.mxu0 0.0
    %1246 = vmatprep.subr.mxu0 0.0
    %1247 = vmatpush1.msra.mxu0 0.0
    %1248 = vmatprep.subr.mxu0 0.0
    %1249 = vmatpush1.msra.mxu0 0.0
    %1250 = vmatprep.subr.mxu0 0.0
    %1251 = vmatpush1.msra.mxu0 0.0
    %1252 = vmatprep.subr.mxu0 0.0
    %1253 = vmatpush1.msra.mxu0 0.0
    %1254 = vmatprep.subr.mxu0 0.0
    %1255 = vmatpush1.msra.mxu0 0.0
    %1256 = vmatprep.subr.mxu0 0.0
    %1257 = vmatpush1.msra.mxu0 0.0
    %1258 = vmatprep.subr.mxu0 0.0
    %1259 = vmatpush1.msra.mxu0 0.0
    %1260 = vmatprep.subr.mxu0 0.0
    %1261 = vmatpush1.msra.mxu0 0.0
    %1262 = vmatprep.subr.mxu0 0.0
    %1263 = vmatpush1.msra.mxu0 0.0
    %1264 = vmatprep.subr.mxu0 0.0
    %1265 = vmatpush1.msra.mxu0 0.0
    %1266 = vmatprep.subr.mxu0 0.0
    %1267 = vmatpush1.msra.mxu0 0.0
    %1268 = vmatprep.subr.mxu0 0.0
    %1269 = vmatpush1.msra.mxu0 0.0
    %1270 = vmatprep.subr.mxu0 0.0
    %1271 = vmatpush1.msra.mxu0 0.0
    %1272 = vmatprep.subr.mxu0 0.0
    %1273 = vmatpush1.msra.mxu0 0.0
    %1274 = vmatprep.subr.mxu0 0.0
    %1275 = vmatpush1.msra.mxu0 0.0
    %1276 = vmatprep.subr.mxu0 0.0
    %1277 = vmatpush1.msra.mxu0 0.0
    %1278 = vmatprep.mubr.f32.mxu0 0.0
    %1279 = vmatmul.mubr.f32.gmra.mrb[0].mxu0 %v1209
    %v1280 = vpop.f32.mrb[0].mxu0
    %v1281 = vadd.f32 0.0, %v1280
    %v1282 = vpop.f32.mrb[0].mxu0
    %1283 = vmatprep.mubr.f32.mxu0 0.0
    %1284 = vmatmul.mubr.f32.gmra.mrb[0].mxu0 %v1212
    %v1285 = vpop.f32.mrb[0].mxu0
    %v1286 = vadd.f32 0.0, %v1285
    %v1287 = vpop.f32.mrb[0].mxu0
    %1288 = vdwg.mxu0
    %v1290 = vsel %vm548, %v797, 0
    %v1293 = vsel %vm548, %v873, 0
    %1295 = vmatprep.subr.mxu0 0.0
    %1296 = vmatpush1.msra.mxu0 %v403
    %1297 = vmatprep.subr.mxu0 0.0
    %1298 = vmatpush1.msra.mxu0 0.0
    %1299 = vmatprep.subr.mxu0 0.0
    %1300 = vmatpush1.msra.mxu0 0.0
    %1301 = vmatprep.subr.mxu0 0.0
    %1302 = vmatpush1.msra.mxu0 0.0
    %1303 = vmatprep.subr.mxu0 0.0
    %1304 = vmatpush1.msra.mxu0 0.0
    %1305 = vmatprep.subr.mxu0 0.0
    %1306 = vmatpush1.msra.mxu0 0.0
    %1307 = vmatprep.subr.mxu0 0.0
    %1308 = vmatpush1.msra.mxu0 0.0
    %1309 = vmatprep.subr.mxu0 0.0
    %1310 = vmatpush1.msra.mxu0 0.0
    %1311 = vmatprep.subr.mxu0 0.0
    %1312 = vmatpush1.msra.mxu0 0.0
    %1313 = vmatprep.subr.mxu0 0.0
    %1314 = vmatpush1.msra.mxu0 0.0
    %1315 = vmatprep.subr.mxu0 0.0
    %1316 = vmatpush1.msra.mxu0 0.0
    %1317 = vmatprep.subr.mxu0 0.0
    %1318 = vmatpush1.msra.mxu0 0.0
    %1319 = vmatprep.subr.mxu0 0.0
    %1320 = vmatpush1.msra.mxu0 0.0
    %1321 = vmatprep.subr.mxu0 0.0
    %1322 = vmatpush1.msra.mxu0 0.0
    %1323 = vmatprep.subr.mxu0 0.0
    %1324 = vmatpush1.msra.mxu0 0.0
    %1325 = vmatprep.subr.mxu0 0.0
    %1326 = vmatpush1.msra.mxu0 0.0
    %1327 = vmatprep.subr.mxu0 0.0
    %1328 = vmatpush1.msra.mxu0 0.0
    %1329 = vmatprep.subr.mxu0 0.0
    %1330 = vmatpush1.msra.mxu0 0.0
    %1331 = vmatprep.subr.mxu0 0.0
    %1332 = vmatpush1.msra.mxu0 0.0
    %1333 = vmatprep.subr.mxu0 0.0
    %1334 = vmatpush1.msra.mxu0 0.0
    %1335 = vmatprep.subr.mxu0 0.0
    %1336 = vmatpush1.msra.mxu0 0.0
    %1337 = vmatprep.subr.mxu0 0.0
    %1338 = vmatpush1.msra.mxu0 0.0
    %1339 = vmatprep.subr.mxu0 0.0
    %1340 = vmatpush1.msra.mxu0 0.0
    %1341 = vmatprep.subr.mxu0 0.0
    %1342 = vmatpush1.msra.mxu0 0.0
    %1343 = vmatprep.subr.mxu0 0.0
    %1344 = vmatpush1.msra.mxu0 0.0
    %1345 = vmatprep.subr.mxu0 0.0
    %1346 = vmatpush1.msra.mxu0 0.0
    %1347 = vmatprep.subr.mxu0 0.0
    %1348 = vmatpush1.msra.mxu0 0.0
    %1349 = vmatprep.subr.mxu0 0.0
    %1350 = vmatpush1.msra.mxu0 0.0
    %1351 = vmatprep.subr.mxu0 0.0
    %1352 = vmatpush1.msra.mxu0 0.0
    %1353 = vmatprep.subr.mxu0 0.0
    %1354 = vmatpush1.msra.mxu0 0.0
    %1355 = vmatprep.subr.mxu0 0.0
    %1356 = vmatpush1.msra.mxu0 0.0
    %1357 = vmatprep.subr.mxu0 0.0
    %1358 = vmatpush1.msra.mxu0 0.0
    %1359 = vmatprep.mubr.f32.mxu0 0.0
    %1360 = vmatmul.mubr.f32.gmra.mrb[0].mxu0 %v1290
    %v1361 = vpop.f32.mrb[0].mxu0
    %v1362 = vadd.f32 %v1281, %v1361
    %v1363 = vpop.f32.mrb[0].mxu0
    %1364 = vmatprep.mubr.f32.mxu0 0.0
    %1365 = vmatmul.mubr.f32.gmra.mrb[0].mxu0 %v1293
    %v1366 = vpop.f32.mrb[0].mxu0
    %v1367 = vadd.f32 %v1286, %v1366
    %v1368 = vpop.f32.mrb[0].mxu0
    %1369 = vdwg.mxu0
    %1370 = vrot.lane.b32.xlu0 %v537, 112
    %v1371 = vpop.permute.xlu0 %1370
    %1372 = vrot.lane.b32.xlu0 %v537, 80
    %v1373 = vpop.permute.xlu0 %1372
    %v1374 = vsel %vm548, %v1371, 0
    %v1376 = vsel %vm548, %v1373, 0
    %1378 = vmatprep.subr.mxu0 0.0
    %1379 = vmatpush1.xpose.msra.mxu0 %v1376
    %1380 = vmatprep.subr.mxu0 0.0
    %1381 = vmatpush1.xpose.msra.mxu0 0.0
    %1382 = vmatprep.subr.mxu0 0.0
    %1383 = vmatpush1.xpose.msra.mxu0 0.0
    %1384 = vmatprep.subr.mxu0 0.0
    %1385 = vmatpush1.xpose.msra.mxu0 0.0
    %1386 = vmatprep.subr.mxu0 0.0
    %1387 = vmatpush1.xpose.msra.mxu0 0.0
    %1388 = vmatprep.subr.mxu0 0.0
    %1389 = vmatpush1.xpose.msra.mxu0 0.0
    %1390 = vmatprep.subr.mxu0 0.0
    %1391 = vmatpush1.xpose.msra.mxu0 0.0
    %1392 = vmatprep.subr.mxu0 0.0
    %1393 = vmatpush1.xpose.msra.mxu0 0.0
    %1394 = vmatprep.subr.mxu0 0.0
    %1395 = vmatpush1.xpose.msra.mxu0 0.0
    %1396 = vmatprep.subr.mxu0 0.0
    %1397 = vmatpush1.xpose.msra.mxu0 0.0
    %1398 = vmatprep.subr.mxu0 0.0
    %1399 = vmatpush1.xpose.msra.mxu0 0.0
    %1400 = vmatprep.subr.mxu0 0.0
    %1401 = vmatpush1.xpose.msra.mxu0 0.0
    %1402 = vmatprep.subr.mxu0 0.0
    %1403 = vmatpush1.xpose.msra.mxu0 0.0
    %1404 = vmatprep.subr.mxu0 0.0
    %1405 = vmatpush1.xpose.msra.mxu0 0.0
    %1406 = vmatprep.subr.mxu0 0.0
    %1407 = vmatpush1.xpose.msra.mxu0 0.0
    %1408 = vmatprep.subr.mxu0 0.0
    %1409 = vmatpush1.xpose.msra.mxu0 0.0
    %1410 = vmatprep.subr.mxu0 0.0
    %1411 = vmatpush1.xpose.msra.mxu0 0.0
    %1412 = vmatprep.subr.mxu0 0.0
    %1413 = vmatpush1.xpose.msra.mxu0 0.0
    %1414 = vmatprep.subr.mxu0 0.0
    %1415 = vmatpush1.xpose.msra.mxu0 0.0
    %1416 = vmatprep.subr.mxu0 0.0
    %1417 = vmatpush1.xpose.msra.mxu0 0.0
    %1418 = vmatprep.subr.mxu0 0.0
    %1419 = vmatpush1.xpose.msra.mxu0 0.0
    %1420 = vmatprep.subr.mxu0 0.0
    %1421 = vmatpush1.xpose.msra.mxu0 0.0
    %1422 = vmatprep.subr.mxu0 0.0
    %1423 = vmatpush1.xpose.msra.mxu0 0.0
    %1424 = vmatprep.subr.mxu0 0.0
    %1425 = vmatpush1.xpose.msra.mxu0 0.0
    %1426 = vmatprep.subr.mxu0 0.0
    %1427 = vmatpush1.xpose.msra.mxu0 0.0
    %1428 = vmatprep.subr.mxu0 0.0
    %1429 = vmatpush1.xpose.msra.mxu0 0.0
    %1430 = vmatprep.subr.mxu0 0.0
    %1431 = vmatpush1.xpose.msra.mxu0 0.0
    %1432 = vmatprep.subr.mxu0 0.0
    %1433 = vmatpush1.xpose.msra.mxu0 0.0
    %1434 = vmatprep.subr.mxu0 0.0
    %1435 = vmatpush1.xpose.msra.mxu0 0.0
    %1436 = vmatprep.subr.mxu0 0.0
    %1437 = vmatpush1.xpose.msra.mxu0 0.0
    %1438 = vmatprep.subr.mxu0 0.0
    %1439 = vmatpush1.xpose.msra.mxu0 0.0
    %1440 = vmatprep.subr.mxu0 0.0
    %1441 = vmatpush1.xpose.msra.mxu0 0.0
    %1442 = vmatprep.mubr.f32.mxu0 0.0
    %1443 = vmatmul.mubr.f32.gmra.mrb[0].mxu0 %v1374
    %v1444 = vpop.f32.mrb[0].mxu0
    %v1445 = vadd.f32 0.0, %v1444
    %v1446 = vpop.f32.mrb[0].mxu0
    %1447 = vdwg.mxu0
    %1448 = vrot.lane.b32.xlu0 %v542, 112
    %v1449 = vpop.permute.xlu0 %1448
    %1450 = vrot.lane.b32.xlu0 %v542, 80
    %v1451 = vpop.permute.xlu0 %1450
    %v1452 = vsel %vm548, %v1449, 0
    %v1454 = vsel %vm548, %v1451, 0
    %1456 = vmatprep.subr.mxu0 0.0
    %1457 = vmatpush1.xpose.msra.mxu0 %v1454
    %1458 = vmatprep.subr.mxu0 0.0
    %1459 = vmatpush1.xpose.msra.mxu0 0.0
    %1460 = vmatprep.subr.mxu0 0.0
    %1461 = vmatpush1.xpose.msra.mxu0 0.0
    %1462 = vmatprep.subr.mxu0 0.0
    %1463 = vmatpush1.xpose.msra.mxu0 0.0
    %1464 = vmatprep.subr.mxu0 0.0
    %1465 = vmatpush1.xpose.msra.mxu0 0.0
    %1466 = vmatprep.subr.mxu0 0.0
    %1467 = vmatpush1.xpose.msra.mxu0 0.0
    %1468 = vmatprep.subr.mxu0 0.0
    %1469 = vmatpush1.xpose.msra.mxu0 0.0
    %1470 = vmatprep.subr.mxu0 0.0
    %1471 = vmatpush1.xpose.msra.mxu0 0.0
    %1472 = vmatprep.subr.mxu0 0.0
    %1473 = vmatpush1.xpose.msra.mxu0 0.0
    %1474 = vmatprep.subr.mxu0 0.0
    %1475 = vmatpush1.xpose.msra.mxu0 0.0
    %1476 = vmatprep.subr.mxu0 0.0
    %1477 = vmatpush1.xpose.msra.mxu0 0.0
    %1478 = vmatprep.subr.mxu0 0.0
    %1479 = vmatpush1.xpose.msra.mxu0 0.0
    %1480 = vmatprep.subr.mxu0 0.0
    %1481 = vmatpush1.xpose.msra.mxu0 0.0
    %1482 = vmatprep.subr.mxu0 0.0
    %1483 = vmatpush1.xpose.msra.mxu0 0.0
    %1484 = vmatprep.subr.mxu0 0.0
    %1485 = vmatpush1.xpose.msra.mxu0 0.0
    %1486 = vmatprep.subr.mxu0 0.0
    %1487 = vmatpush1.xpose.msra.mxu0 0.0
    %1488 = vmatprep.subr.mxu0 0.0
    %1489 = vmatpush1.xpose.msra.mxu0 0.0
    %1490 = vmatprep.subr.mxu0 0.0
    %1491 = vmatpush1.xpose.msra.mxu0 0.0
    %1492 = vmatprep.subr.mxu0 0.0
    %1493 = vmatpush1.xpose.msra.mxu0 0.0
    %1494 = vmatprep.subr.mxu0 0.0
    %1495 = vmatpush1.xpose.msra.mxu0 0.0
    %1496 = vmatprep.subr.mxu0 0.0
    %1497 = vmatpush1.xpose.msra.mxu0 0.0
    %1498 = vmatprep.subr.mxu0 0.0
    %1499 = vmatpush1.xpose.msra.mxu0 0.0
    %1500 = vmatprep.subr.mxu0 0.0
    %1501 = vmatpush1.xpose.msra.mxu0 0.0
    %1502 = vmatprep.subr.mxu0 0.0
    %1503 = vmatpush1.xpose.msra.mxu0 0.0
    %1504 = vmatprep.subr.mxu0 0.0
    %1505 = vmatpush1.xpose.msra.mxu0 0.0
    %1506 = vmatprep.subr.mxu0 0.0
    %1507 = vmatpush1.xpose.msra.mxu0 0.0
    %1508 = vmatprep.subr.mxu0 0.0
    %1509 = vmatpush1.xpose.msra.mxu0 0.0
    %1510 = vmatprep.subr.mxu0 0.0
    %1511 = vmatpush1.xpose.msra.mxu0 0.0
    %1512 = vmatprep.subr.mxu0 0.0
    %1513 = vmatpush1.xpose.msra.mxu0 0.0
    %1514 = vmatprep.subr.mxu0 0.0
    %1515 = vmatpush1.xpose.msra.mxu0 0.0
    %1516 = vmatprep.subr.mxu0 0.0
    %1517 = vmatpush1.xpose.msra.mxu0 0.0
    %1518 = vmatprep.subr.mxu0 0.0
    %1519 = vmatpush1.xpose.msra.mxu0 0.0
    %1520 = vmatprep.mubr.f32.mxu0 0.0
    %1521 = vmatmul.mubr.f32.gmra.mrb[0].mxu0 %v1452
    %v1522 = vpop.f32.mrb[0].mxu0
    %v1523 = vadd.f32 0.0, %v1522
    %v1524 = vpop.f32.mrb[0].mxu0
    %1525 = vdwg.mxu0
    %v1526 = vsel %vm548, %v1445, -inf
    %1527 = vmax.xlane.f32.xlu0 %v1526
    %v1528 = vpop.xlane.xlu0 %1527
    %v1529 = vsel %vm548, %v1523, -inf
    %1530 = vmax.xlane.f32.xlu0 %v1529
    %v1531 = vpop.xlane.xlu0 %1530
    %v1532 = vsub.f32 %v1445, %v1528
    %v1533 = vsub.f32 %v1523, %v1531
    %v1534 = vmul.f32 %v1532, 1.442695
    %v1535 = vpow.pop %v1534
    %v1536 = vmul.f32 %v1533, 1.442695
    %v1537 = vpow.pop %v1536
    %v1538 = vsel %vm548, %v1535, 0.0
    %1539 = vadd.xlane.f32.xlu0 %v1538
    %v1540 = vpop.xlane.xlu0 %1539
    %v1541 = vsel %vm548, %v1537, 0.0
    %1542 = vadd.xlane.f32.xlu0 %v1541
    %v1543 = vpop.xlane.xlu0 %1542
    %v1544 = vrcp.pop %v1540
    %v1545 = vmul.f32 1.0, %v1544
    %v1546 = vrcp.pop %v1543
    %v1547 = vmul.f32 1.0, %v1546
    %v1548 = vmul.f32 %v1535, %v1545
    %v1549 = vmul.f32 %v1537, %v1547
    %1550 = vrot.lane.b32.xlu0 %v537, 48
    %v1551 = vpop.permute.xlu0 %1550
    %v1554 = vsel %vm548, %v1548, 0
    %1556 = vmatprep.subr.mxu0 0.0
    %1557 = vmatpush1.msra.mxu0 %v1551
    %1558 = vmatprep.subr.mxu0 0.0
    %1559 = vmatpush1.msra.mxu0 0.0
    %1560 = vmatprep.subr.mxu0 0.0
    %1561 = vmatpush1.msra.mxu0 0.0
    %1562 = vmatprep.subr.mxu0 0.0
    %1563 = vmatpush1.msra.mxu0 0.0
    %1564 = vmatprep.subr.mxu0 0.0
    %1565 = vmatpush1.msra.mxu0 0.0
    %1566 = vmatprep.subr.mxu0 0.0
    %1567 = vmatpush1.msra.mxu0 0.0
    %1568 = vmatprep.subr.mxu0 0.0
    %1569 = vmatpush1.msra.mxu0 0.0
    %1570 = vmatprep.subr.mxu0 0.0
    %1571 = vmatpush1.msra.mxu0 0.0
    %1572 = vmatprep.subr.mxu0 0.0
    %1573 = vmatpush1.msra.mxu0 0.0
    %1574 = vmatprep.subr.mxu0 0.0
    %1575 = vmatpush1.msra.mxu0 0.0
    %1576 = vmatprep.subr.mxu0 0.0
    %1577 = vmatpush1.msra.mxu0 0.0
    %1578 = vmatprep.subr.mxu0 0.0
    %1579 = vmatpush1.msra.mxu0 0.0
    %1580 = vmatprep.subr.mxu0 0.0
    %1581 = vmatpush1.msra.mxu0 0.0
    %1582 = vmatprep.subr.mxu0 0.0
    %1583 = vmatpush1.msra.mxu0 0.0
    %1584 = vmatprep.subr.mxu0 0.0
    %1585 = vmatpush1.msra.mxu0 0.0
    %1586 = vmatprep.subr.mxu0 0.0
    %1587 = vmatpush1.msra.mxu0 0.0
    %1588 = vmatprep.subr.mxu0 0.0
    %1589 = vmatpush1.msra.mxu0 0.0
    %1590 = vmatprep.subr.mxu0 0.0
    %1591 = vmatpush1.msra.mxu0 0.0
    %1592 = vmatprep.subr.mxu0 0.0
    %1593 = vmatpush1.msra.mxu0 0.0
    %1594 = vmatprep.subr.mxu0 0.0
    %1595 = vmatpush1.msra.mxu0 0.0
    %1596 = vmatprep.subr.mxu0 0.0
    %1597 = vmatpush1.msra.mxu0 0.0
    %1598 = vmatprep.subr.mxu0 0.0
    %1599 = vmatpush1.msra.mxu0 0.0
    %1600 = vmatprep.subr.mxu0 0.0
    %1601 = vmatpush1.msra.mxu0 0.0
    %1602 = vmatprep.subr.mxu0 0.0
    %1603 = vmatpush1.msra.mxu0 0.0
    %1604 = vmatprep.subr.mxu0 0.0
    %1605 = vmatpush1.msra.mxu0 0.0
    %1606 = vmatprep.subr.mxu0 0.0
    %1607 = vmatpush1.msra.mxu0 0.0
    %1608 = vmatprep.subr.mxu0 0.0
    %1609 = vmatpush1.msra.mxu0 0.0
    %1610 = vmatprep.subr.mxu0 0.0
    %1611 = vmatpush1.msra.mxu0 0.0
    %1612 = vmatprep.subr.mxu0 0.0
    %1613 = vmatpush1.msra.mxu0 0.0
    %1614 = vmatprep.subr.mxu0 0.0
    %1615 = vmatpush1.msra.mxu0 0.0
    %1616 = vmatprep.subr.mxu0 0.0
    %1617 = vmatpush1.msra.mxu0 0.0
    %1618 = vmatprep.subr.mxu0 0.0
    %1619 = vmatpush1.msra.mxu0 0.0
    %1620 = vmatprep.mubr.f32.mxu0 0.0
    %1621 = vmatmul.mubr.f32.gmra.mrb[0].mxu0 %v1554
    %v1622 = vpop.f32.mrb[0].mxu0
    %v1623 = vadd.f32 0.0, %v1622
    %v1624 = vpop.f32.mrb[0].mxu0
    %1625 = vdwg.mxu0
    %1626 = vrot.lane.b32.xlu0 %v542, 48
    %v1627 = vpop.permute.xlu0 %1626
    %v1630 = vsel %vm548, %v1549, 0
    %1632 = vmatprep.subr.mxu0 0.0
    %1633 = vmatpush1.msra.mxu0 %v1627
    %1634 = vmatprep.subr.mxu0 0.0
    %1635 = vmatpush1.msra.mxu0 0.0
    %1636 = vmatprep.subr.mxu0 0.0
    %1637 = vmatpush1.msra.mxu0 0.0
    %1638 = vmatprep.subr.mxu0 0.0
    %1639 = vmatpush1.msra.mxu0 0.0
    %1640 = vmatprep.subr.mxu0 0.0
    %1641 = vmatpush1.msra.mxu0 0.0
    %1642 = vmatprep.subr.mxu0 0.0
    %1643 = vmatpush1.msra.mxu0 0.0
    %1644 = vmatprep.subr.mxu0 0.0
    %1645 = vmatpush1.msra.mxu0 0.0
    %1646 = vmatprep.subr.mxu0 0.0
    %1647 = vmatpush1.msra.mxu0 0.0
    %1648 = vmatprep.subr.mxu0 0.0
    %1649 = vmatpush1.msra.mxu0 0.0
    %1650 = vmatprep.subr.mxu0 0.0
    %1651 = vmatpush1.msra.mxu0 0.0
    %1652 = vmatprep.subr.mxu0 0.0
    %1653 = vmatpush1.msra.mxu0 0.0
    %1654 = vmatprep.subr.mxu0 0.0
    %1655 = vmatpush1.msra.mxu0 0.0
    %1656 = vmatprep.subr.mxu0 0.0
    %1657 = vmatpush1.msra.mxu0 0.0
    %1658 = vmatprep.subr.mxu0 0.0
    %1659 = vmatpush1.msra.mxu0 0.0
    %1660 = vmatprep.subr.mxu0 0.0
    %1661 = vmatpush1.msra.mxu0 0.0
    %1662 = vmatprep.subr.mxu0 0.0
    %1663 = vmatpush1.msra.mxu0 0.0
    %1664 = vmatprep.subr.mxu0 0.0
    %1665 = vmatpush1.msra.mxu0 0.0
    %1666 = vmatprep.subr.mxu0 0.0
    %1667 = vmatpush1.msra.mxu0 0.0
    %1668 = vmatprep.subr.mxu0 0.0
    %1669 = vmatpush1.msra.mxu0 0.0
    %1670 = vmatprep.subr.mxu0 0.0
    %1671 = vmatpush1.msra.mxu0 0.0
    %1672 = vmatprep.subr.mxu0 0.0
    %1673 = vmatpush1.msra.mxu0 0.0
    %1674 = vmatprep.subr.mxu0 0.0
    %1675 = vmatpush1.msra.mxu0 0.0
    %1676 = vmatprep.subr.mxu0 0.0
    %1677 = vmatpush1.msra.mxu0 0.0
    %1678 = vmatprep.subr.mxu0 0.0
    %1679 = vmatpush1.msra.mxu0 0.0
    %1680 = vmatprep.subr.mxu0 0.0
    %1681 = vmatpush1.msra.mxu0 0.0
    %1682 = vmatprep.subr.mxu0 0.0
    %1683 = vmatpush1.msra.mxu0 0.0
    %1684 = vmatprep.subr.mxu0 0.0
    %1685 = vmatpush1.msra.mxu0 0.0
    %1686 = vmatprep.subr.mxu0 0.0
    %1687 = vmatpush1.msra.mxu0 0.0
    %1688 = vmatprep.subr.mxu0 0.0
    %1689 = vmatpush1.msra.mxu0 0.0
    %1690 = vmatprep.subr.mxu0 0.0
    %1691 = vmatpush1.msra.mxu0 0.0
    %1692 = vmatprep.subr.mxu0 0.0
    %1693 = vmatpush1.msra.mxu0 0.0
    %1694 = vmatprep.subr.mxu0 0.0
    %1695 = vmatpush1.msra.mxu0 0.0
    %1696 = vmatprep.mubr.f32.mxu0 0.0
    %1697 = vmatmul.mubr.f32.gmra.mrb[0].mxu0 %v1630
    %v1698 = vpop.f32.mrb[0].mxu0
    %v1699 = vadd.f32 0.0, %v1698
    %v1700 = vpop.f32.mrb[0].mxu0
    %1701 = vdwg.mxu0
    %v1703 = vsel %vm548, %v1623, 0
    %v1706 = vsel %vm548, %v1699, 0
    %1708 = vmatprep.subr.mxu0 0.0
    %1709 = vmatpush1.msra.mxu0 %v405
    %1710 = vmatprep.subr.mxu0 0.0
    %1711 = vmatpush1.msra.mxu0 0.0
    %1712 = vmatprep.subr.mxu0 0.0
    %1713 = vmatpush1.msra.mxu0 0.0
    %1714 = vmatprep.subr.mxu0 0.0
    %1715 = vmatpush1.msra.mxu0 0.0
    %1716 = vmatprep.subr.mxu0 0.0
    %1717 = vmatpush1.msra.mxu0 0.0
    %1718 = vmatprep.subr.mxu0 0.0
    %1719 = vmatpush1.msra.mxu0 0.0
    %1720 = vmatprep.subr.mxu0 0.0
    %1721 = vmatpush1.msra.mxu0 0.0
    %1722 = vmatprep.subr.mxu0 0.0
    %1723 = vmatpush1.msra.mxu0 0.0
    %1724 = vmatprep.subr.mxu0 0.0
    %1725 = vmatpush1.msra.mxu0 0.0
    %1726 = vmatprep.subr.mxu0 0.0
    %1727 = vmatpush1.msra.mxu0 0.0
    %1728 = vmatprep.subr.mxu0 0.0
    %1729 = vmatpush1.msra.mxu0 0.0
    %1730 = vmatprep.subr.mxu0 0.0
    %1731 = vmatpush1.msra.mxu0 0.0
    %1732 = vmatprep.subr.mxu0 0.0
    %1733 = vmatpush1.msra.mxu0 0.0
    %1734 = vmatprep.subr.mxu0 0.0
    %1735 = vmatpush1.msra.mxu0 0.0
    %1736 = vmatprep.subr.mxu0 0.0
    %1737 = vmatpush1.msra.mxu0 0.0
    %1738 = vmatprep.subr.mxu0 0.0
    %1739 = vmatpush1.msra.mxu0 0.0
    %1740 = vmatprep.subr.mxu0 0.0
    %1741 = vmatpush1.msra.mxu0 0.0
    %1742 = vmatprep.subr.mxu0 0.0
    %1743 = vmatpush1.msra.mxu0 0.0
    %1744 = vmatprep.subr.mxu0 0.0
    %1745 = vmatpush1.msra.mxu0 0.0
    %1746 = vmatprep.subr.mxu0 0.0
    %1747 = vmatpush1.msra.mxu0 0.0
    %1748 = vmatprep.subr.mxu0 0.0
    %1749 = vmatpush1.msra.mxu0 0.0
    %1750 = vmatprep.subr.mxu0 0.0
    %1751 = vmatpush1.msra.mxu0 0.0
    %1752 = vmatprep.subr.mxu0 0.0
    %1753 = vmatpush1.msra.mxu0 0.0
    %1754 = vmatprep.subr.mxu0 0.0
    %1755 = vmatpush1.msra.mxu0 0.0
    %1756 = vmatprep.subr.mxu0 0.0
    %1757 = vmatpush1.msra.mxu0 0.0
    %1758 = vmatprep.subr.mxu0 0.0
    %1759 = vmatpush1.msra.mxu0 0.0
    %1760 = vmatprep.subr.mxu0 0.0
    %1761 = vmatpush1.msra.mxu0 0.0
    %1762 = vmatprep.subr.mxu0 0.0
    %1763 = vmatpush1.msra.mxu0 0.0
    %1764 = vmatprep.subr.mxu0 0.0
    %1765 = vmatpush1.msra.mxu0 0.0
    %1766 = vmatprep.subr.mxu0 0.0
    %1767 = vmatpush1.msra.mxu0 0.0
    %1768 = vmatprep.subr.mxu0 0.0
    %1769 = vmatpush1.msra.mxu0 0.0
    %1770 = vmatprep.subr.mxu0 0.0
    %1771 = vmatpush1.msra.mxu0 0.0
    %1772 = vmatprep.mubr.f32.mxu0 0.0
    %1773 = vmatmul.mubr.f32.gmra.mrb[0].mxu0 %v1703
    %v1774 = vpop.f32.mrb[0].mxu0
    %v1775 = vadd.f32 0.0, %v1774
    %v1776 = vpop.f32.mrb[0].mxu0
    %1777 = vmatprep.mubr.f32.mxu0 0.0
    %1778 = vmatmul.mubr.f32.gmra.mrb[0].mxu0 %v1706
    %v1779 = vpop.f32.mrb[0].mxu0
    %v1780 = vadd.f32 0.0, %v1779
    %v1781 = vpop.f32.mrb[0].mxu0
    %1782 = vdwg.mxu0
    %v1783 = vadd.f32 %v1362, %v1775
    %v1784 = vadd.f32 %v1367, %v1780
    %1785 = vrot.lane.b32.xlu0 %v537, 104
    %v1786 = vpop.permute.xlu0 %1785
    %1787 = vrot.lane.b32.xlu0 %v537, 72
    %v1788 = vpop.permute.xlu0 %1787
    %v1789 = vsel %vm548, %v1786, 0
    %v1791 = vsel %vm548, %v1788, 0
    %1793 = vmatprep.subr.mxu0 0.0
    %1794 = vmatpush1.xpose.msra.mxu0 %v1791
    %1795 = vmatprep.subr.mxu0 0.0
    %1796 = vmatpush1.xpose.msra.mxu0 0.0
    %1797 = vmatprep.subr.mxu0 0.0
    %1798 = vmatpush1.xpose.msra.mxu0 0.0
    %1799 = vmatprep.subr.mxu0 0.0
    %1800 = vmatpush1.xpose.msra.mxu0 0.0
    %1801 = vmatprep.subr.mxu0 0.0
    %1802 = vmatpush1.xpose.msra.mxu0 0.0
    %1803 = vmatprep.subr.mxu0 0.0
    %1804 = vmatpush1.xpose.msra.mxu0 0.0
    %1805 = vmatprep.subr.mxu0 0.0
    %1806 = vmatpush1.xpose.msra.mxu0 0.0
    %1807 = vmatprep.subr.mxu0 0.0
    %1808 = vmatpush1.xpose.msra.mxu0 0.0
    %1809 = vmatprep.subr.mxu0 0.0
    %1810 = vmatpush1.xpose.msra.mxu0 0.0
    %1811 = vmatprep.subr.mxu0 0.0
    %1812 = vmatpush1.xpose.msra.mxu0 0.0
    %1813 = vmatprep.subr.mxu0 0.0
    %1814 = vmatpush1.xpose.msra.mxu0 0.0
    %1815 = vmatprep.subr.mxu0 0.0
    %1816 = vmatpush1.xpose.msra.mxu0 0.0
    %1817 = vmatprep.subr.mxu0 0.0
    %1818 = vmatpush1.xpose.msra.mxu0 0.0
    %1819 = vmatprep.subr.mxu0 0.0
    %1820 = vmatpush1.xpose.msra.mxu0 0.0
    %1821 = vmatprep.subr.mxu0 0.0
    %1822 = vmatpush1.xpose.msra.mxu0 0.0
    %1823 = vmatprep.subr.mxu0 0.0
    %1824 = vmatpush1.xpose.msra.mxu0 0.0
    %1825 = vmatprep.subr.mxu0 0.0
    %1826 = vmatpush1.xpose.msra.mxu0 0.0
    %1827 = vmatprep.subr.mxu0 0.0
    %1828 = vmatpush1.xpose.msra.mxu0 0.0
    %1829 = vmatprep.subr.mxu0 0.0
    %1830 = vmatpush1.xpose.msra.mxu0 0.0
    %1831 = vmatprep.subr.mxu0 0.0
    %1832 = vmatpush1.xpose.msra.mxu0 0.0
    %1833 = vmatprep.subr.mxu0 0.0
    %1834 = vmatpush1.xpose.msra.mxu0 0.0
    %1835 = vmatprep.subr.mxu0 0.0
    %1836 = vmatpush1.xpose.msra.mxu0 0.0
    %1837 = vmatprep.subr.mxu0 0.0
    %1838 = vmatpush1.xpose.msra.mxu0 0.0
    %1839 = vmatprep.subr.mxu0 0.0
    %1840 = vmatpush1.xpose.msra.mxu0 0.0
    %1841 = vmatprep.subr.mxu0 0.0
    %1842 = vmatpush1.xpose.msra.mxu0 0.0
    %1843 = vmatprep.subr.mxu0 0.0
    %1844 = vmatpush1.xpose.msra.mxu0 0.0
    %1845 = vmatprep.subr.mxu0 0.0
    %1846 = vmatpush1.xpose.msra.mxu0 0.0
    %1847 = vmatprep.subr.mxu0 0.0
    %1848 = vmatpush1.xpose.msra.mxu0 0.0
    %1849 = vmatprep.subr.mxu0 0.0
    %1850 = vmatpush1.xpose.msra.mxu0 0.0
    %1851 = vmatprep.subr.mxu0 0.0
    %1852 = vmatpush1.xpose.msra.mxu0 0.0
    %1853 = vmatprep.subr.mxu0 0.0
    %1854 = vmatpush1.xpose.msra.mxu0 0.0
    %1855 = vmatprep.subr.mxu0 0.0
    %1856 = vmatpush1.xpose.msra.mxu0 0.0
    %1857 = vmatprep.mubr.f32.mxu0 0.0
    %1858 = vmatmul.mubr.f32.gmra.mrb[0].mxu0 %v1789
    %v1859 = vpop.f32.mrb[0].mxu0
    %v1860 = vadd.f32 0.0, %v1859
    %v1861 = vpop.f32.mrb[0].mxu0
    %1862 = vdwg.mxu0
    %1863 = vrot.lane.b32.xlu0 %v542, 104
    %v1864 = vpop.permute.xlu0 %1863
    %1865 = vrot.lane.b32.xlu0 %v542, 72
    %v1866 = vpop.permute.xlu0 %1865
    %v1867 = vsel %vm548, %v1864, 0
    %v1869 = vsel %vm548, %v1866, 0
    %1871 = vmatprep.subr.mxu0 0.0
    %1872 = vmatpush1.xpose.msra.mxu0 %v1869
    %1873 = vmatprep.subr.mxu0 0.0
    %1874 = vmatpush1.xpose.msra.mxu0 0.0
    %1875 = vmatprep.subr.mxu0 0.0
    %1876 = vmatpush1.xpose.msra.mxu0 0.0
    %1877 = vmatprep.subr.mxu0 0.0
    %1878 = vmatpush1.xpose.msra.mxu0 0.0
    %1879 = vmatprep.subr.mxu0 0.0
    %1880 = vmatpush1.xpose.msra.mxu0 0.0
    %1881 = vmatprep.subr.mxu0 0.0
    %1882 = vmatpush1.xpose.msra.mxu0 0.0
    %1883 = vmatprep.subr.mxu0 0.0
    %1884 = vmatpush1.xpose.msra.mxu0 0.0
    %1885 = vmatprep.subr.mxu0 0.0
    %1886 = vmatpush1.xpose.msra.mxu0 0.0
    %1887 = vmatprep.subr.mxu0 0.0
    %1888 = vmatpush1.xpose.msra.mxu0 0.0
    %1889 = vmatprep.subr.mxu0 0.0
    %1890 = vmatpush1.xpose.msra.mxu0 0.0
    %1891 = vmatprep.subr.mxu0 0.0
    %1892 = vmatpush1.xpose.msra.mxu0 0.0
    %1893 = vmatprep.subr.mxu0 0.0
    %1894 = vmatpush1.xpose.msra.mxu0 0.0
    %1895 = vmatprep.subr.mxu0 0.0
    %1896 = vmatpush1.xpose.msra.mxu0 0.0
    %1897 = vmatprep.subr.mxu0 0.0
    %1898 = vmatpush1.xpose.msra.mxu0 0.0
    %1899 = vmatprep.subr.mxu0 0.0
    %1900 = vmatpush1.xpose.msra.mxu0 0.0
    %1901 = vmatprep.subr.mxu0 0.0
    %1902 = vmatpush1.xpose.msra.mxu0 0.0
    %1903 = vmatprep.subr.mxu0 0.0
    %1904 = vmatpush1.xpose.msra.mxu0 0.0
    %1905 = vmatprep.subr.mxu0 0.0
    %1906 = vmatpush1.xpose.msra.mxu0 0.0
    %1907 = vmatprep.subr.mxu0 0.0
    %1908 = vmatpush1.xpose.msra.mxu0 0.0
    %1909 = vmatprep.subr.mxu0 0.0
    %1910 = vmatpush1.xpose.msra.mxu0 0.0
    %1911 = vmatprep.subr.mxu0 0.0
    %1912 = vmatpush1.xpose.msra.mxu0 0.0
    %1913 = vmatprep.subr.mxu0 0.0
    %1914 = vmatpush1.xpose.msra.mxu0 0.0
    %1915 = vmatprep.subr.mxu0 0.0
    %1916 = vmatpush1.xpose.msra.mxu0 0.0
    %1917 = vmatprep.subr.mxu0 0.0
    %1918 = vmatpush1.xpose.msra.mxu0 0.0
    %1919 = vmatprep.subr.mxu0 0.0
    %1920 = vmatpush1.xpose.msra.mxu0 0.0
    %1921 = vmatprep.subr.mxu0 0.0
    %1922 = vmatpush1.xpose.msra.mxu0 0.0
    %1923 = vmatprep.subr.mxu0 0.0
    %1924 = vmatpush1.xpose.msra.mxu0 0.0
    %1925 = vmatprep.subr.mxu0 0.0
    %1926 = vmatpush1.xpose.msra.mxu0 0.0
    %1927 = vmatprep.subr.mxu0 0.0
    %1928 = vmatpush1.xpose.msra.mxu0 0.0
    %1929 = vmatprep.subr.mxu0 0.0
    %1930 = vmatpush1.xpose.msra.mxu0 0.0
    %1931 = vmatprep.subr.mxu0 0.0
    %1932 = vmatpush1.xpose.msra.mxu0 0.0
    %1933 = vmatprep.subr.mxu0 0.0
    %1934 = vmatpush1.xpose.msra.mxu0 0.0
    %1935 = vmatprep.mubr.f32.mxu0 0.0
    %1936 = vmatmul.mubr.f32.gmra.mrb[0].mxu0 %v1867
    %v1937 = vpop.f32.mrb[0].mxu0
    %v1938 = vadd.f32 0.0, %v1937
    %v1939 = vpop.f32.mrb[0].mxu0
    %1940 = vdwg.mxu0
    %v1941 = vsel %vm548, %v1860, -inf
    %1942 = vmax.xlane.f32.xlu0 %v1941
    %v1943 = vpop.xlane.xlu0 %1942
    %v1944 = vsel %vm548, %v1938, -inf
    %1945 = vmax.xlane.f32.xlu0 %v1944
    %v1946 = vpop.xlane.xlu0 %1945
    %v1947 = vsub.f32 %v1860, %v1943
    %v1948 = vsub.f32 %v1938, %v1946
    %v1949 = vmul.f32 %v1947, 1.442695
    %v1950 = vpow.pop %v1949
    %v1951 = vmul.f32 %v1948, 1.442695
    %v1952 = vpow.pop %v1951
    %v1953 = vsel %vm548, %v1950, 0.0
    %1954 = vadd.xlane.f32.xlu0 %v1953
    %v1955 = vpop.xlane.xlu0 %1954
    %v1956 = vsel %vm548, %v1952, 0.0
    %1957 = vadd.xlane.f32.xlu0 %v1956
    %v1958 = vpop.xlane.xlu0 %1957
    %v1959 = vrcp.pop %v1955
    %v1960 = vmul.f32 1.0, %v1959
    %v1961 = vrcp.pop %v1958
    %v1962 = vmul.f32 1.0, %v1961
    %v1963 = vmul.f32 %v1950, %v1960
    %v1964 = vmul.f32 %v1952, %v1962
    %1965 = vrot.lane.b32.xlu0 %v537, 40
    %v1966 = vpop.permute.xlu0 %1965
    %v1969 = vsel %vm548, %v1963, 0
    %1971 = vmatprep.subr.mxu0 0.0
    %1972 = vmatpush1.msra.mxu0 %v1966
    %1973 = vmatprep.subr.mxu0 0.0
    %1974 = vmatpush1.msra.mxu0 0.0
    %1975 = vmatprep.subr.mxu0 0.0
    %1976 = vmatpush1.msra.mxu0 0.0
    %1977 = vmatprep.subr.mxu0 0.0
    %1978 = vmatpush1.msra.mxu0 0.0
    %1979 = vmatprep.subr.mxu0 0.0
    %1980 = vmatpush1.msra.mxu0 0.0
    %1981 = vmatprep.subr.mxu0 0.0
    %1982 = vmatpush1.msra.mxu0 0.0
    %1983 = vmatprep.subr.mxu0 0.0
    %1984 = vmatpush1.msra.mxu0 0.0
    %1985 = vmatprep.subr.mxu0 0.0
    %1986 = vmatpush1.msra.mxu0 0.0
    %1987 = vmatprep.subr.mxu0 0.0
    %1988 = vmatpush1.msra.mxu0 0.0
    %1989 = vmatprep.subr.mxu0 0.0
    %1990 = vmatpush1.msra.mxu0 0.0
    %1991 = vmatprep.subr.mxu0 0.0
    %1992 = vmatpush1.msra.mxu0 0.0
    %1993 = vmatprep.subr.mxu0 0.0
    %1994 = vmatpush1.msra.mxu0 0.0
    %1995 = vmatprep.subr.mxu0 0.0
    %1996 = vmatpush1.msra.mxu0 0.0
    %1997 = vmatprep.subr.mxu0 0.0
    %1998 = vmatpush1.msra.mxu0 0.0
    %1999 = vmatprep.subr.mxu0 0.0
    %2000 = vmatpush1.msra.mxu0 0.0
    %2001 = vmatprep.subr.mxu0 0.0
    %2002 = vmatpush1.msra.mxu0 0.0
    %2003 = vmatprep.subr.mxu0 0.0
    %2004 = vmatpush1.msra.mxu0 0.0
    %2005 = vmatprep.subr.mxu0 0.0
    %2006 = vmatpush1.msra.mxu0 0.0
    %2007 = vmatprep.subr.mxu0 0.0
    %2008 = vmatpush1.msra.mxu0 0.0
    %2009 = vmatprep.subr.mxu0 0.0
    %2010 = vmatpush1.msra.mxu0 0.0
    %2011 = vmatprep.subr.mxu0 0.0
    %2012 = vmatpush1.msra.mxu0 0.0
    %2013 = vmatprep.subr.mxu0 0.0
    %2014 = vmatpush1.msra.mxu0 0.0
    %2015 = vmatprep.subr.mxu0 0.0
    %2016 = vmatpush1.msra.mxu0 0.0
    %2017 = vmatprep.subr.mxu0 0.0
    %2018 = vmatpush1.msra.mxu0 0.0
    %2019 = vmatprep.subr.mxu0 0.0
    %2020 = vmatpush1.msra.mxu0 0.0
    %2021 = vmatprep.subr.mxu0 0.0
    %2022 = vmatpush1.msra.mxu0 0.0
    %2023 = vmatprep.subr.mxu0 0.0
    %2024 = vmatpush1.msra.mxu0 0.0
    %2025 = vmatprep.subr.mxu0 0.0
    %2026 = vmatpush1.msra.mxu0 0.0
    %2027 = vmatprep.subr.mxu0 0.0
    %2028 = vmatpush1.msra.mxu0 0.0
    %2029 = vmatprep.subr.mxu0 0.0
    %2030 = vmatpush1.msra.mxu0 0.0
    %2031 = vmatprep.subr.mxu0 0.0
    %2032 = vmatpush1.msra.mxu0 0.0
    %2033 = vmatprep.subr.mxu0 0.0
    %2034 = vmatpush1.msra.mxu0 0.0
    %2035 = vmatprep.mubr.f32.mxu0 0.0
    %2036 = vmatmul.mubr.f32.gmra.mrb[0].mxu0 %v1969
    %v2037 = vpop.f32.mrb[0].mxu0
    %v2038 = vadd.f32 0.0, %v2037
    %v2039 = vpop.f32.mrb[0].mxu0
    %2040 = vdwg.mxu0
    %2041 = vrot.lane.b32.xlu0 %v542, 40
    %v2042 = vpop.permute.xlu0 %2041
    %v2045 = vsel %vm548, %v1964, 0
    %2047 = vmatprep.subr.mxu0 0.0
    %2048 = vmatpush1.msra.mxu0 %v2042
    %2049 = vmatprep.subr.mxu0 0.0
    %2050 = vmatpush1.msra.mxu0 0.0
    %2051 = vmatprep.subr.mxu0 0.0
    %2052 = vmatpush1.msra.mxu0 0.0
    %2053 = vmatprep.subr.mxu0 0.0
    %2054 = vmatpush1.msra.mxu0 0.0
    %2055 = vmatprep.subr.mxu0 0.0
    %2056 = vmatpush1.msra.mxu0 0.0
    %2057 = vmatprep.subr.mxu0 0.0
    %2058 = vmatpush1.msra.mxu0 0.0
    %2059 = vmatprep.subr.mxu0 0.0
    %2060 = vmatpush1.msra.mxu0 0.0
    %2061 = vmatprep.subr.mxu0 0.0
    %2062 = vmatpush1.msra.mxu0 0.0
    %2063 = vmatprep.subr.mxu0 0.0
    %2064 = vmatpush1.msra.mxu0 0.0
    %2065 = vmatprep.subr.mxu0 0.0
    %2066 = vmatpush1.msra.mxu0 0.0
    %2067 = vmatprep.subr.mxu0 0.0
    %2068 = vmatpush1.msra.mxu0 0.0
    %2069 = vmatprep.subr.mxu0 0.0
    %2070 = vmatpush1.msra.mxu0 0.0
    %2071 = vmatprep.subr.mxu0 0.0
    %2072 = vmatpush1.msra.mxu0 0.0
    %2073 = vmatprep.subr.mxu0 0.0
    %2074 = vmatpush1.msra.mxu0 0.0
    %2075 = vmatprep.subr.mxu0 0.0
    %2076 = vmatpush1.msra.mxu0 0.0
    %2077 = vmatprep.subr.mxu0 0.0
    %2078 = vmatpush1.msra.mxu0 0.0
    %2079 = vmatprep.subr.mxu0 0.0
    %2080 = vmatpush1.msra.mxu0 0.0
    %2081 = vmatprep.subr.mxu0 0.0
    %2082 = vmatpush1.msra.mxu0 0.0
    %2083 = vmatprep.subr.mxu0 0.0
    %2084 = vmatpush1.msra.mxu0 0.0
    %2085 = vmatprep.subr.mxu0 0.0
    %2086 = vmatpush1.msra.mxu0 0.0
    %2087 = vmatprep.subr.mxu0 0.0
    %2088 = vmatpush1.msra.mxu0 0.0
    %2089 = vmatprep.subr.mxu0 0.0
    %2090 = vmatpush1.msra.mxu0 0.0
    %2091 = vmatprep.subr.mxu0 0.0
    %2092 = vmatpush1.msra.mxu0 0.0
    %2093 = vmatprep.subr.mxu0 0.0
    %2094 = vmatpush1.msra.mxu0 0.0
    %2095 = vmatprep.subr.mxu0 0.0
    %2096 = vmatpush1.msra.mxu0 0.0
    %2097 = vmatprep.subr.mxu0 0.0
    %2098 = vmatpush1.msra.mxu0 0.0
    %2099 = vmatprep.subr.mxu0 0.0
    %2100 = vmatpush1.msra.mxu0 0.0
    %2101 = vmatprep.subr.mxu0 0.0
    %2102 = vmatpush1.msra.mxu0 0.0
    %2103 = vmatprep.subr.mxu0 0.0
    %2104 = vmatpush1.msra.mxu0 0.0
    %2105 = vmatprep.subr.mxu0 0.0
    %2106 = vmatpush1.msra.mxu0 0.0
    %2107 = vmatprep.subr.mxu0 0.0
    %2108 = vmatpush1.msra.mxu0 0.0
    %2109 = vmatprep.subr.mxu0 0.0
    %2110 = vmatpush1.msra.mxu0 0.0
    %2111 = vmatprep.mubr.f32.mxu0 0.0
    %2112 = vmatmul.mubr.f32.gmra.mrb[0].mxu0 %v2045
    %v2113 = vpop.f32.mrb[0].mxu0
    %v2114 = vadd.f32 0.0, %v2113
    %v2115 = vpop.f32.mrb[0].mxu0
    %2116 = vdwg.mxu0
    %v2118 = vsel %vm548, %v2038, 0
    %v2121 = vsel %vm548, %v2114, 0
    %2123 = vmatprep.subr.mxu0 0.0
    %2124 = vmatpush1.msra.mxu0 %v406
    %2125 = vmatprep.subr.mxu0 0.0
    %2126 = vmatpush1.msra.mxu0 0.0
    %2127 = vmatprep.subr.mxu0 0.0
    %2128 = vmatpush1.msra.mxu0 0.0
    %2129 = vmatprep.subr.mxu0 0.0
    %2130 = vmatpush1.msra.mxu0 0.0
    %2131 = vmatprep.subr.mxu0 0.0
    %2132 = vmatpush1.msra.mxu0 0.0
    %2133 = vmatprep.subr.mxu0 0.0
    %2134 = vmatpush1.msra.mxu0 0.0
    %2135 = vmatprep.subr.mxu0 0.0
    %2136 = vmatpush1.msra.mxu0 0.0
    %2137 = vmatprep.subr.mxu0 0.0
    %2138 = vmatpush1.msra.mxu0 0.0
    %2139 = vmatprep.subr.mxu0 0.0
    %2140 = vmatpush1.msra.mxu0 0.0
    %2141 = vmatprep.subr.mxu0 0.0
    %2142 = vmatpush1.msra.mxu0 0.0
    %2143 = vmatprep.subr.mxu0 0.0
    %2144 = vmatpush1.msra.mxu0 0.0
    %2145 = vmatprep.subr.mxu0 0.0
    %2146 = vmatpush1.msra.mxu0 0.0
    %2147 = vmatprep.subr.mxu0 0.0
    %2148 = vmatpush1.msra.mxu0 0.0
    %2149 = vmatprep.subr.mxu0 0.0
    %2150 = vmatpush1.msra.mxu0 0.0
    %2151 = vmatprep.subr.mxu0 0.0
    %2152 = vmatpush1.msra.mxu0 0.0
    %2153 = vmatprep.subr.mxu0 0.0
    %2154 = vmatpush1.msra.mxu0 0.0
    %2155 = vmatprep.subr.mxu0 0.0
    %2156 = vmatpush1.msra.mxu0 0.0
    %2157 = vmatprep.subr.mxu0 0.0
    %2158 = vmatpush1.msra.mxu0 0.0
    %2159 = vmatprep.subr.mxu0 0.0
    %2160 = vmatpush1.msra.mxu0 0.0
    %2161 = vmatprep.subr.mxu0 0.0
    %2162 = vmatpush1.msra.mxu0 0.0
    %2163 = vmatprep.subr.mxu0 0.0
    %2164 = vmatpush1.msra.mxu0 0.0
    %2165 = vmatprep.subr.mxu0 0.0
    %2166 = vmatpush1.msra.mxu0 0.0
    %2167 = vmatprep.subr.mxu0 0.0
    %2168 = vmatpush1.msra.mxu0 0.0
    %2169 = vmatprep.subr.mxu0 0.0
    %2170 = vmatpush1.msra.mxu0 0.0
    %2171 = vmatprep.subr.mxu0 0.0
    %2172 = vmatpush1.msra.mxu0 0.0
    %2173 = vmatprep.subr.mxu0 0.0
    %2174 = vmatpush1.msra.mxu0 0.0
    %2175 = vmatprep.subr.mxu0 0.0
    %2176 = vmatpush1.msra.mxu0 0.0
    %2177 = vmatprep.subr.mxu0 0.0
    %2178 = vmatpush1.msra.mxu0 0.0
    %2179 = vmatprep.subr.mxu0 0.0
    %2180 = vmatpush1.msra.mxu0 0.0
    %2181 = vmatprep.subr.mxu0 0.0
    %2182 = vmatpush1.msra.mxu0 0.0
    %2183 = vmatprep.subr.mxu0 0.0
    %2184 = vmatpush1.msra.mxu0 0.0
    %2185 = vmatprep.subr.mxu0 0.0
    %2186 = vmatpush1.msra.mxu0 0.0
    %2187 = vmatprep.mubr.f32.mxu0 0.0
    %2188 = vmatmul.mubr.f32.gmra.mrb[0].mxu0 %v2118
    %v2189 = vpop.f32.mrb[0].mxu0
    %v2190 = vadd.f32 0.0, %v2189
    %v2191 = vpop.f32.mrb[0].mxu0
    %2192 = vmatprep.mubr.f32.mxu0 0.0
    %2193 = vmatmul.mubr.f32.gmra.mrb[0].mxu0 %v2121
    %v2194 = vpop.f32.mrb[0].mxu0
    %v2195 = vadd.f32 0.0, %v2194
    %v2196 = vpop.f32.mrb[0].mxu0
    %2197 = vdwg.mxu0
    %v2198 = vadd.f32 %v1783, %v2190
    %v2199 = vadd.f32 %v1784, %v2195
    %v2200 = vadd.f32 %v396, %v2198
    %v2201 = vadd.f32 %v397, %v2199
    %v2202 = vlaneseq
    %v2203 = vshrl.u32 %v2202, 7
    %v2204 = vsub.s32 2, %v2203
    %v2205 = vrot.slane %v398, %v2204
    %v2206 = vadd.f32 %v2200, %v2205
    %v2207 = vadd.f32 %v2201, %v2205
    %v2208 = vsel %vm215, %v2206, 0.0
    %2209 = vadd.xlane.f32.xlu0 %v2208
    %v2210 = vpop.xlane.xlu0 %2209
    %v2211 = vsel %vm215, %v2207, 0.0
    %2212 = vadd.xlane.f32.xlu0 %v2211
    %v2213 = vpop.xlane.xlu0 %2212
    %v2214 = vmul.f32 %v2210, %v222
    %v2215 = vmul.f32 %v2213, %v222
    %v2216 = vmul.f32 %v2206, %v2206
    %v2217 = vmul.f32 %v2207, %v2207
    %v2218 = vsel %vm215, %v2216, 0.0
    %2219 = vadd.xlane.f32.xlu0 %v2218
    %v2220 = vpop.xlane.xlu0 %2219
    %v2221 = vsel %vm215, %v2217, 0.0
    %2222 = vadd.xlane.f32.xlu0 %v2221
    %v2223 = vpop.xlane.xlu0 %2222
    %v2224 = vmul.f32 %v2220, %v222
    %v2225 = vmul.f32 %v2223, %v222
    %v2226 = vmul.f32 %v2214, %v2214
    %v2227 = vmul.f32 %v2215, %v2215
    %v2228 = vsub.f32 %v2224, %v2226
    %v2229 = vsub.f32 %v2225, %v2227
    %v2230 = vmax.f32 %v2228, 0.0
    %v2231 = vmax.f32 %v2229, 0.0
    %v2232 = vsub.f32 %v2206, %v2214
    %v2233 = vsub.f32 %v2207, %v2215
    %v2234 = vadd.f32 %v2230, 1e-05
    %v2235 = vadd.f32 %v2231, 1e-05
    %v2236 = vrsqrt.pop %v2234
    %v2237 = vrsqrt.pop %v2235
    %v2238 = vmul.f32 %v2232, %v2236
    %v2239 = vmul.f32 %v2233, %v2237
    %v2240 = vlaneseq
    %v2241 = vshrl.u32 %v2240, 7
    %v2242 = vsub.s32 3, %v2241
    %v2243 = vrot.slane %v398, %v2242
    %v2244 = vmul.f32 %v2238, %v2243
    %v2245 = vmul.f32 %v2239, %v2243
    %v2246 = vlaneseq
    %v2247 = vshrl.u32 %v2246, 7
    %v2248 = vsub.s32 4, %v2247
    %v2249 = vrot.slane %v398, %v2248
    %v2250 = vadd.f32 %v2244, %v2249
    %v2251 = vadd.f32 %v2245, %v2249
    %v2253 = vlaneseq
    %v2254 = vshrl.u32 %v2253, 7
    %v2255 = vsub.s32 0, %v2254
    %v2256 = vrot.slane %v411, %v2255
    %v2259 = vsel %vm215, %v2250, 0
    %v2262 = vsel %vm215, %v2251, 0
    %2264 = vmatprep.subr.mxu0 0.0
    %2265 = vmatpush1.msra.mxu0 %v407
    %2266 = vmatprep.subr.mxu0 0.0
    %2267 = vmatpush1.msra.mxu0 %v408
    %2268 = vmatprep.subr.mxu0 0.0
    %2269 = vmatpush1.msra.mxu0 %v409
    %2270 = vmatprep.subr.mxu0 0.0
    %2271 = vmatpush1.msra.mxu0 %v410
    %2272 = vmatprep.subr.mxu0 0.0
    %2273 = vmatpush1.msra.mxu0 0.0
    %2274 = vmatprep.subr.mxu0 0.0
    %2275 = vmatpush1.msra.mxu0 0.0
    %2276 = vmatprep.subr.mxu0 0.0
    %2277 = vmatpush1.msra.mxu0 0.0
    %2278 = vmatprep.subr.mxu0 0.0
    %2279 = vmatpush1.msra.mxu0 0.0
    %2280 = vmatprep.subr.mxu0 0.0
    %2281 = vmatpush1.msra.mxu0 0.0
    %2282 = vmatprep.subr.mxu0 0.0
    %2283 = vmatpush1.msra.mxu0 0.0
    %2284 = vmatprep.subr.mxu0 0.0
    %2285 = vmatpush1.msra.mxu0 0.0
    %2286 = vmatprep.subr.mxu0 0.0
    %2287 = vmatpush1.msra.mxu0 0.0
    %2288 = vmatprep.subr.mxu0 0.0
    %2289 = vmatpush1.msra.mxu0 0.0
    %2290 = vmatprep.subr.mxu0 0.0
    %2291 = vmatpush1.msra.mxu0 0.0
    %2292 = vmatprep.subr.mxu0 0.0
    %2293 = vmatpush1.msra.mxu0 0.0
    %2294 = vmatprep.subr.mxu0 0.0
    %2295 = vmatpush1.msra.mxu0 0.0
    %2296 = vmatprep.subr.mxu0 0.0
    %2297 = vmatpush1.msra.mxu0 0.0
    %2298 = vmatprep.subr.mxu0 0.0
    %2299 = vmatpush1.msra.mxu0 0.0
    %2300 = vmatprep.subr.mxu0 0.0
    %2301 = vmatpush1.msra.mxu0 0.0
    %2302 = vmatprep.subr.mxu0 0.0
    %2303 = vmatpush1.msra.mxu0 0.0
    %2304 = vmatprep.subr.mxu0 0.0
    %2305 = vmatpush1.msra.mxu0 0.0
    %2306 = vmatprep.subr.mxu0 0.0
    %2307 = vmatpush1.msra.mxu0 0.0
    %2308 = vmatprep.subr.mxu0 0.0
    %2309 = vmatpush1.msra.mxu0 0.0
    %2310 = vmatprep.subr.mxu0 0.0
    %2311 = vmatpush1.msra.mxu0 0.0
    %2312 = vmatprep.subr.mxu0 0.0
    %2313 = vmatpush1.msra.mxu0 0.0
    %2314 = vmatprep.subr.mxu0 0.0
    %2315 = vmatpush1.msra.mxu0 0.0
    %2316 = vmatprep.subr.mxu0 0.0
    %2317 = vmatpush1.msra.mxu0 0.0
    %2318 = vmatprep.subr.mxu0 0.0
    %2319 = vmatpush1.msra.mxu0 0.0
    %2320 = vmatprep.subr.mxu0 0.0
    %2321 = vmatpush1.msra.mxu0 0.0
    %2322 = vmatprep.subr.mxu0 0.0
    %2323 = vmatpush1.msra.mxu0 0.0
    %2324 = vmatprep.subr.mxu0 0.0
    %2325 = vmatpush1.msra.mxu0 0.0
    %2326 = vmatprep.subr.mxu0 0.0
    %2327 = vmatpush1.msra.mxu0 0.0
    %2328 = vmatprep.mubr.f32.mxu0 0.0
    %2329 = vmatmul.mubr.f32.gmra.mrb[0].mxu0 %v2259
    %v2330 = vpop.f32.mrb[0].mxu0
    %v2331 = vadd.f32 %v2256, %v2330
    %v2332 = vpop.f32.mrb[0].mxu0
    %2333 = vmatprep.mubr.f32.mxu0 0.0
    %2334 = vmatmul.mubr.f32.gmra.mrb[0].mxu0 %v2262
    %v2335 = vpop.f32.mrb[0].mxu0
    %v2336 = vadd.f32 %v2256, %v2335
    %v2337 = vpop.f32.mrb[0].mxu0
    %2338 = vdwg.mxu0
    %v2339 = vmul.f32 %v2331, 0.5
    %v2340 = vmul.f32 %v2336, 0.5
    %v2341 = vmul.f32 %v2331, 0.70710677
    %v2342 = vmul.f32 %v2336, 0.70710677
    %v2343 = verf.f32.pop %v2341
    %v2344 = verf.f32.pop %v2342
    %v2345 = vadd.f32 %v2343, 1.0
    %v2346 = vadd.f32 %v2344, 1.0
    %v2347 = vmul.f32 %v2339, %v2345
    %v2348 = vmul.f32 %v2340, %v2346
    %vm2349 = vcmask 523264
    %v2351 = vsel %vm2349, %v2347, 0
    %v2354 = vsel %vm2349, %v2348, 0
    %2356 = vmatprep.subr.mxu0 0.0
    %2357 = vmatpush1.msra.mxu0 %v412
    %2358 = vmatprep.subr.mxu0 0.0
    %2359 = vmatpush1.msra.mxu0 %v413
    %2360 = vmatprep.subr.mxu0 0.0
    %2361 = vmatpush1.msra.mxu0 %v414
    %2362 = vmatprep.subr.mxu0 0.0
    %2363 = vmatpush1.msra.mxu0 %v415
    %2364 = vmatprep.subr.mxu0 0.0
    %2365 = vmatpush1.msra.mxu0 %v416
    %2366 = vmatprep.subr.mxu0 0.0
    %2367 = vmatpush1.msra.mxu0 %v417
    %2368 = vmatprep.subr.mxu0 0.0
    %2369 = vmatpush1.msra.mxu0 %v418
    %2370 = vmatprep.subr.mxu0 0.0
    %2371 = vmatpush1.msra.mxu0 %v419
    %2372 = vmatprep.subr.mxu0 0.0
    %2373 = vmatpush1.msra.mxu0 0.0
    %2374 = vmatprep.subr.mxu0 0.0
    %2375 = vmatpush1.msra.mxu0 0.0
    %2376 = vmatprep.subr.mxu0 0.0
    %2377 = vmatpush1.msra.mxu0 0.0
    %2378 = vmatprep.subr.mxu0 0.0
    %2379 = vmatpush1.msra.mxu0 0.0
    %2380 = vmatprep.subr.mxu0 0.0
    %2381 = vmatpush1.msra.mxu0 0.0
    %2382 = vmatprep.subr.mxu0 0.0
    %2383 = vmatpush1.msra.mxu0 0.0
    %2384 = vmatprep.subr.mxu0 0.0
    %2385 = vmatpush1.msra.mxu0 0.0
    %2386 = vmatprep.subr.mxu0 0.0
    %2387 = vmatpush1.msra.mxu0 0.0
    %2388 = vmatprep.subr.mxu0 0.0
    %2389 = vmatpush1.msra.mxu0 0.0
    %2390 = vmatprep.subr.mxu0 0.0
    %2391 = vmatpush1.msra.mxu0 0.0
    %2392 = vmatprep.subr.mxu0 0.0
    %2393 = vmatpush1.msra.mxu0 0.0
    %2394 = vmatprep.subr.mxu0 0.0
    %2395 = vmatpush1.msra.mxu0 0.0
    %2396 = vmatprep.subr.mxu0 0.0
    %2397 = vmatpush1.msra.mxu0 0.0
    %2398 = vmatprep.subr.mxu0 0.0
    %2399 = vmatpush1.msra.mxu0 0.0
    %2400 = vmatprep.subr.mxu0 0.0
    %2401 = vmatpush1.msra.mxu0 0.0
    %2402 = vmatprep.subr.mxu0 0.0
    %2403 = vmatpush1.msra.mxu0 0.0
    %2404 = vmatprep.subr.mxu0 0.0
    %2405 = vmatpush1.msra.mxu0 0.0
    %2406 = vmatprep.subr.mxu0 0.0
    %2407 = vmatpush1.msra.mxu0 0.0
    %2408 = vmatprep.subr.mxu0 0.0
    %2409 = vmatpush1.msra.mxu0 0.0
    %2410 = vmatprep.subr.mxu0 0.0
    %2411 = vmatpush1.msra.mxu0 0.0
    %2412 = vmatprep.subr.mxu0 0.0
    %2413 = vmatpush1.msra.mxu0 0.0
    %2414 = vmatprep.subr.mxu0 0.0
    %2415 = vmatpush1.msra.mxu0 0.0
    %2416 = vmatprep.subr.mxu0 0.0
    %2417 = vmatpush1.msra.mxu0 0.0
    %2418 = vmatprep.subr.mxu0 0.0
    %2419 = vmatpush1.msra.mxu0 0.0
    %2420 = vmatprep.mubr.f32.mxu0 0.0
    %2421 = vmatmul.mubr.f32.gmra.mrb[0].mxu0 %v2351
    %v2422 = vpop.f32.mrb[0].mxu0
    %v2423 = vadd.f32 0.0, %v2422
    %v2424 = vpop.f32.mrb[0].mxu0
    %2425 = vmatprep.mubr.f32.mxu0 0.0
    %2426 = vmatmul.mubr.f32.gmra.mrb[0].mxu0 %v2354
    %v2427 = vpop.f32.mrb[0].mxu0
    %v2428 = vadd.f32 0.0, %v2427
    %v2429 = vpop.f32.mrb[0].mxu0
    %2430 = vdwg.mxu0
    %v2431 = vadd.f32 %v2206, %v2423
    %v2432 = vadd.f32 %v2207, %v2428
    %v2433 = vlaneseq
    %v2434 = vshrl.u32 %v2433, 7
    %v2435 = vsub.s32 5, %v2434
    %v2436 = vrot.slane %v398, %v2435
    %v2437 = vadd.f32 %v2431, %v2436
    %v2438 = vadd.f32 %v2432, %v2436
    %s2439 = scalar_lea.vmem %s6, 8
    %v2440 = vld [vmem:[%s2439] sm:$0x3f]
    %s2441 = scalar_lea.vmem %s8, 32
    %v2442 = vld [vmem:[%s2441] sm:$0xff]
    %v2443 = vld [vmem:[%s2441 + $0x8] sm:$0xff]
    %v2444 = vld [vmem:[%s2441 + $0x10] sm:$0xff]
    %v2445 = vld [vmem:[%s2441 + $0x18] sm:$0xff]
    %s2446 = scalar_lea.vmem %s9, 32
    %v2447 = vld [vmem:[%s2446] sm:$0xff]
    %v2448 = vld [vmem:[%s2446 + $0x8] sm:$0xff]
    %v2449 = vld [vmem:[%s2446 + $0x10] sm:$0xff]
    %v2450 = vld [vmem:[%s2446 + $0x18] sm:$0xff]
    %s2451 = scalar_lea.vmem %s10, 32
    %v2452 = vld [vmem:[%s2451] sm:$0xff]
    %v2453 = vld [vmem:[%s2451 + $0x8] sm:$0xff]
    %v2454 = vld [vmem:[%s2451 + $0x10] sm:$0xff]
    %v2455 = vld [vmem:[%s2451 + $0x18] sm:$0xff]
    %s2456 = scalar_lea.vmem [#allocation11], 1
    %v2457 = vld [vmem:[%s2456] sm:$0x1]
    %s2458 = scalar_lea.vmem %s11, 64
    %v2459 = vld [vmem:[%s2458] sm:$0xff]
    %v2460 = vld [vmem:[%s2458 + $0x8] sm:$0xff]
    %v2461 = vld [vmem:[%s2458 + $0x10] sm:$0xff]
    %v2462 = vld [vmem:[%s2458 + $0x18] sm:$0xff]
    %v2463 = vld [vmem:[%s2458 + $0x20] sm:$0xff]
    %v2464 = vld [vmem:[%s2458 + $0x28] sm:$0xff]
    %v2465 = vld [vmem:[%s2458 + $0x30] sm:$0xff]
    %v2466 = vld [vmem:[%s2458 + $0x38] sm:$0xff]
    %v2467 = vsel %vm215, %v2437, 0.0
    %2468 = vadd.xlane.f32.xlu0 %v2467
    %v2469 = vpop.xlane.xlu0 %2468
    %v2470 = vsel %vm215, %v2438, 0.0
    %2471 = vadd.xlane.f32.xlu0 %v2470
    %v2472 = vpop.xlane.xlu0 %2471
    %v2473 = vmul.f32 %v2469, %v222
    %v2474 = vmul.f32 %v2472, %v222
    %v2475 = vmul.f32 %v2437, %v2437
    %v2476 = vmul.f32 %v2438, %v2438
    %v2477 = vsel %vm215, %v2475, 0.0
    %2478 = vadd.xlane.f32.xlu0 %v2477
    %v2479 = vpop.xlane.xlu0 %2478
    %v2480 = vsel %vm215, %v2476, 0.0
    %2481 = vadd.xlane.f32.xlu0 %v2480
    %v2482 = vpop.xlane.xlu0 %2481
    %v2483 = vmul.f32 %v2479, %v222
    %v2484 = vmul.f32 %v2482, %v222
    %v2485 = vmul.f32 %v2473, %v2473
    %v2486 = vmul.f32 %v2474, %v2474
    %v2487 = vsub.f32 %v2483, %v2485
    %v2488 = vsub.f32 %v2484, %v2486
    %v2489 = vmax.f32 %v2487, 0.0
    %v2490 = vmax.f32 %v2488, 0.0
    %v2491 = vsub.f32 %v2437, %v2473
    %v2492 = vsub.f32 %v2438, %v2474
    %v2493 = vadd.f32 %v2489, 1e-05
    %v2494 = vadd.f32 %v2490, 1e-05
    %v2495 = vrsqrt.pop %v2493
    %v2496 = vrsqrt.pop %v2494
    %v2497 = vmul.f32 %v2491, %v2495
    %v2498 = vmul.f32 %v2492, %v2496
    %v2499 = vlaneseq
    %v2500 = vshrl.u32 %v2499, 7
    %v2501 = vsub.s32 0, %v2500
    %v2502 = vrot.slane %v2440, %v2501
    %v2503 = vmul.f32 %v2497, %v2502
    %v2504 = vmul.f32 %v2498, %v2502
    %v2505 = vlaneseq
    %v2506 = vshrl.u32 %v2505, 7
    %v2507 = vsub.s32 1, %v2506
    %v2508 = vrot.slane %v2440, %v2507
    %v2509 = vadd.f32 %v2503, %v2508
    %v2510 = vadd.f32 %v2504, %v2508
    %v2512 = vsel %vm215, %v2509, 0
    %v2515 = vsel %vm215, %v2510, 0
    %2517 = vmatprep.subr.mxu0 0.0
    %2518 = vmatpush1.msra.mxu0 %v2442
    %2519 = vmatprep.subr.mxu0 0.0
    %2520 = vmatpush1.msra.mxu0 %v2443
    %2521 = vmatprep.subr.mxu0 0.0
    %2522 = vmatpush1.msra.mxu0 %v2444
    %2523 = vmatprep.subr.mxu0 0.0
    %2524 = vmatpush1.msra.mxu0 %v2445
    %2525 = vmatprep.subr.mxu0 0.0
    %2526 = vmatpush1.msra.mxu0 0.0
    %2527 = vmatprep.subr.mxu0 0.0
    %2528 = vmatpush1.msra.mxu0 0.0
    %2529 = vmatprep.subr.mxu0 0.0
    %2530 = vmatpush1.msra.mxu0 0.0
    %2531 = vmatprep.subr.mxu0 0.0
    %2532 = vmatpush1.msra.mxu0 0.0
    %2533 = vmatprep.subr.mxu0 0.0
    %2534 = vmatpush1.msra.mxu0 0.0
    %2535 = vmatprep.subr.mxu0 0.0
    %2536 = vmatpush1.msra.mxu0 0.0
    %2537 = vmatprep.subr.mxu0 0.0
    %2538 = vmatpush1.msra.mxu0 0.0
    %2539 = vmatprep.subr.mxu0 0.0
    %2540 = vmatpush1.msra.mxu0 0.0
    %2541 = vmatprep.subr.mxu0 0.0
    %2542 = vmatpush1.msra.mxu0 0.0
    %2543 = vmatprep.subr.mxu0 0.0
    %2544 = vmatpush1.msra.mxu0 0.0
    %2545 = vmatprep.subr.mxu0 0.0
    %2546 = vmatpush1.msra.mxu0 0.0
    %2547 = vmatprep.subr.mxu0 0.0
    %2548 = vmatpush1.msra.mxu0 0.0
    %2549 = vmatprep.subr.mxu0 0.0
    %2550 = vmatpush1.msra.mxu0 0.0
    %2551 = vmatprep.subr.mxu0 0.0
    %2552 = vmatpush1.msra.mxu0 0.0
    %2553 = vmatprep.subr.mxu0 0.0
    %2554 = vmatpush1.msra.mxu0 0.0
    %2555 = vmatprep.subr.mxu0 0.0
    %2556 = vmatpush1.msra.mxu0 0.0
    %2557 = vmatprep.subr.mxu0 0.0
    %2558 = vmatpush1.msra.mxu0 0.0
    %2559 = vmatprep.subr.mxu0 0.0
    %2560 = vmatpush1.msra.mxu0 0.0
    %2561 = vmatprep.subr.mxu0 0.0
    %2562 = vmatpush1.msra.mxu0 0.0
    %2563 = vmatprep.subr.mxu0 0.0
    %2564 = vmatpush1.msra.mxu0 0.0
    %2565 = vmatprep.subr.mxu0 0.0
    %2566 = vmatpush1.msra.mxu0 0.0
    %2567 = vmatprep.subr.mxu0 0.0
    %2568 = vmatpush1.msra.mxu0 0.0
    %2569 = vmatprep.subr.mxu0 0.0
    %2570 = vmatpush1.msra.mxu0 0.0
    %2571 = vmatprep.subr.mxu0 0.0
    %2572 = vmatpush1.msra.mxu0 0.0
    %2573 = vmatprep.subr.mxu0 0.0
    %2574 = vmatpush1.msra.mxu0 0.0
    %2575 = vmatprep.subr.mxu0 0.0
    %2576 = vmatpush1.msra.mxu0 0.0
    %2577 = vmatprep.subr.mxu0 0.0
    %2578 = vmatpush1.msra.mxu0 0.0
    %2579 = vmatprep.subr.mxu0 0.0
    %2580 = vmatpush1.msra.mxu0 0.0
    %2581 = vmatprep.mubr.f32.mxu0 0.0
    %2582 = vmatmul.mubr.f32.gmra.mrb[0].mxu0 %v2512
    %v2583 = vpop.f32.mrb[0].mxu0
    %v2584 = vadd.f32 0.0, %v2583
    %v2585 = vpop.f32.mrb[0].mxu0
    %2586 = vmatprep.mubr.f32.mxu0 0.0
    %2587 = vmatmul.mubr.f32.gmra.mrb[0].mxu0 %v2515
    %v2588 = vpop.f32.mrb[0].mxu0
    %v2589 = vadd.f32 0.0, %v2588
    %v2590 = vpop.f32.mrb[0].mxu0
    %2591 = vdwg.mxu0
    %2593 = vrot.lane.b32.xlu0 %v2584, 96
    %v2594 = vpop.permute.xlu0 %2593
    %v2595 = vsel %vm548, %v2584, 0
    %v2597 = vsel %vm548, %v2594, 0
    %2599 = vmatprep.subr.mxu0 0.0
    %2600 = vmatpush1.xpose.msra.mxu0 %v2597
    %2601 = vmatprep.subr.mxu0 0.0
    %2602 = vmatpush1.xpose.msra.mxu0 0.0
    %2603 = vmatprep.subr.mxu0 0.0
    %2604 = vmatpush1.xpose.msra.mxu0 0.0
    %2605 = vmatprep.subr.mxu0 0.0
    %2606 = vmatpush1.xpose.msra.mxu0 0.0
    %2607 = vmatprep.subr.mxu0 0.0
    %2608 = vmatpush1.xpose.msra.mxu0 0.0
    %2609 = vmatprep.subr.mxu0 0.0
    %2610 = vmatpush1.xpose.msra.mxu0 0.0
    %2611 = vmatprep.subr.mxu0 0.0
    %2612 = vmatpush1.xpose.msra.mxu0 0.0
    %2613 = vmatprep.subr.mxu0 0.0
    %2614 = vmatpush1.xpose.msra.mxu0 0.0
    %2615 = vmatprep.subr.mxu0 0.0
    %2616 = vmatpush1.xpose.msra.mxu0 0.0
    %2617 = vmatprep.subr.mxu0 0.0
    %2618 = vmatpush1.xpose.msra.mxu0 0.0
    %2619 = vmatprep.subr.mxu0 0.0
    %2620 = vmatpush1.xpose.msra.mxu0 0.0
    %2621 = vmatprep.subr.mxu0 0.0
    %2622 = vmatpush1.xpose.msra.mxu0 0.0
    %2623 = vmatprep.subr.mxu0 0.0
    %2624 = vmatpush1.xpose.msra.mxu0 0.0
    %2625 = vmatprep.subr.mxu0 0.0
    %2626 = vmatpush1.xpose.msra.mxu0 0.0
    %2627 = vmatprep.subr.mxu0 0.0
    %2628 = vmatpush1.xpose.msra.mxu0 0.0
    %2629 = vmatprep.subr.mxu0 0.0
    %2630 = vmatpush1.xpose.msra.mxu0 0.0
    %2631 = vmatprep.subr.mxu0 0.0
    %2632 = vmatpush1.xpose.msra.mxu0 0.0
    %2633 = vmatprep.subr.mxu0 0.0
    %2634 = vmatpush1.xpose.msra.mxu0 0.0
    %2635 = vmatprep.subr.mxu0 0.0
    %2636 = vmatpush1.xpose.msra.mxu0 0.0
    %2637 = vmatprep.subr.mxu0 0.0
    %2638 = vmatpush1.xpose.msra.mxu0 0.0
    %2639 = vmatprep.subr.mxu0 0.0
    %2640 = vmatpush1.xpose.msra.mxu0 0.0
    %2641 = vmatprep.subr.mxu0 0.0
    %2642 = vmatpush1.xpose.msra.mxu0 0.0
    %2643 = vmatprep.subr.mxu0 0.0
    %2644 = vmatpush1.xpose.msra.mxu0 0.0
    %2645 = vmatprep.subr.mxu0 0.0
    %2646 = vmatpush1.xpose.msra.mxu0 0.0
    %2647 = vmatprep.subr.mxu0 0.0
    %2648 = vmatpush1.xpose.msra.mxu0 0.0
    %2649 = vmatprep.subr.mxu0 0.0
    %2650 = vmatpush1.xpose.msra.mxu0 0.0
    %2651 = vmatprep.subr.mxu0 0.0
    %2652 = vmatpush1.xpose.msra.mxu0 0.0
    %2653 = vmatprep.subr.mxu0 0.0
    %2654 = vmatpush1.xpose.msra.mxu0 0.0
    %2655 = vmatprep.subr.mxu0 0.0
    %2656 = vmatpush1.xpose.msra.mxu0 0.0
    %2657 = vmatprep.subr.mxu0 0.0
    %2658 = vmatpush1.xpose.msra.mxu0 0.0
    %2659 = vmatprep.subr.mxu0 0.0
    %2660 = vmatpush1.xpose.msra.mxu0 0.0
    %2661 = vmatprep.subr.mxu0 0.0
    %2662 = vmatpush1.xpose.msra.mxu0 0.0
    %2663 = vmatprep.mubr.f32.mxu0 0.0
    %2664 = vmatmul.mubr.f32.gmra.mrb[0].mxu0 %v2595
    %v2665 = vpop.f32.mrb[0].mxu0
    %v2666 = vadd.f32 0.0, %v2665
    %v2667 = vpop.f32.mrb[0].mxu0
    %2668 = vdwg.mxu0
    %2670 = vrot.lane.b32.xlu0 %v2589, 96
    %v2671 = vpop.permute.xlu0 %2670
    %v2672 = vsel %vm548, %v2589, 0
    %v2674 = vsel %vm548, %v2671, 0
    %2676 = vmatprep.subr.mxu0 0.0
    %2677 = vmatpush1.xpose.msra.mxu0 %v2674
    %2678 = vmatprep.subr.mxu0 0.0
    %2679 = vmatpush1.xpose.msra.mxu0 0.0
    %2680 = vmatprep.subr.mxu0 0.0
    %2681 = vmatpush1.xpose.msra.mxu0 0.0
    %2682 = vmatprep.subr.mxu0 0.0
    %2683 = vmatpush1.xpose.msra.mxu0 0.0
    %2684 = vmatprep.subr.mxu0 0.0
    %2685 = vmatpush1.xpose.msra.mxu0 0.0
    %2686 = vmatprep.subr.mxu0 0.0
    %2687 = vmatpush1.xpose.msra.mxu0 0.0
    %2688 = vmatprep.subr.mxu0 0.0
    %2689 = vmatpush1.xpose.msra.mxu0 0.0
    %2690 = vmatprep.subr.mxu0 0.0
    %2691 = vmatpush1.xpose.msra.mxu0 0.0
    %2692 = vmatprep.subr.mxu0 0.0
    %2693 = vmatpush1.xpose.msra.mxu0 0.0
    %2694 = vmatprep.subr.mxu0 0.0
    %2695 = vmatpush1.xpose.msra.mxu0 0.0
    %2696 = vmatprep.subr.mxu0 0.0
    %2697 = vmatpush1.xpose.msra.mxu0 0.0
    %2698 = vmatprep.subr.mxu0 0.0
    %2699 = vmatpush1.xpose.msra.mxu0 0.0
    %2700 = vmatprep.subr.mxu0 0.0
    %2701 = vmatpush1.xpose.msra.mxu0 0.0
    %2702 = vmatprep.subr.mxu0 0.0
    %2703 = vmatpush1.xpose.msra.mxu0 0.0
    %2704 = vmatprep.subr.mxu0 0.0
    %2705 = vmatpush1.xpose.msra.mxu0 0.0
    %2706 = vmatprep.subr.mxu0 0.0
    %2707 = vmatpush1.xpose.msra.mxu0 0.0
    %2708 = vmatprep.subr.mxu0 0.0
    %2709 = vmatpush1.xpose.msra.mxu0 0.0
    %2710 = vmatprep.subr.mxu0 0.0
    %2711 = vmatpush1.xpose.msra.mxu0 0.0
    %2712 = vmatprep.subr.mxu0 0.0
    %2713 = vmatpush1.xpose.msra.mxu0 0.0
    %2714 = vmatprep.subr.mxu0 0.0
    %2715 = vmatpush1.xpose.msra.mxu0 0.0
    %2716 = vmatprep.subr.mxu0 0.0
    %2717 = vmatpush1.xpose.msra.mxu0 0.0
    %2718 = vmatprep.subr.mxu0 0.0
    %2719 = vmatpush1.xpose.msra.mxu0 0.0
    %2720 = vmatprep.subr.mxu0 0.0
    %2721 = vmatpush1.xpose.msra.mxu0 0.0
    %2722 = vmatprep.subr.mxu0 0.0
    %2723 = vmatpush1.xpose.msra.mxu0 0.0
    %2724 = vmatprep.subr.mxu0 0.0
    %2725 = vmatpush1.xpose.msra.mxu0 0.0
    %2726 = vmatprep.subr.mxu0 0.0
    %2727 = vmatpush1.xpose.msra.mxu0 0.0
    %2728 = vmatprep.subr.mxu0 0.0
    %2729 = vmatpush1.xpose.msra.mxu0 0.0
    %2730 = vmatprep.subr.mxu0 0.0
    %2731 = vmatpush1.xpose.msra.mxu0 0.0
    %2732 = vmatprep.subr.mxu0 0.0
    %2733 = vmatpush1.xpose.msra.mxu0 0.0
    %2734 = vmatprep.subr.mxu0 0.0
    %2735 = vmatpush1.xpose.msra.mxu0 0.0
    %2736 = vmatprep.subr.mxu0 0.0
    %2737 = vmatpush1.xpose.msra.mxu0 0.0
    %2738 = vmatprep.subr.mxu0 0.0
    %2739 = vmatpush1.xpose.msra.mxu0 0.0
    %2740 = vmatprep.mubr.f32.mxu0 0.0
    %2741 = vmatmul.mubr.f32.gmra.mrb[0].mxu0 %v2672
    %v2742 = vpop.f32.mrb[0].mxu0
    %v2743 = vadd.f32 0.0, %v2742
    %v2744 = vpop.f32.mrb[0].mxu0
    %2745 = vdwg.mxu0
    %v2746 = vsel %vm548, %v2666, -inf
    %2747 = vmax.xlane.f32.xlu0 %v2746
    %v2748 = vpop.xlane.xlu0 %2747
    %v2749 = vsel %vm548, %v2743, -inf
    %2750 = vmax.xlane.f32.xlu0 %v2749
    %v2751 = vpop.xlane.xlu0 %2750
    %v2752 = vsub.f32 %v2666, %v2748
    %v2753 = vsub.f32 %v2743, %v2751
    %v2754 = vmul.f32 %v2752, 1.442695
    %v2755 = vpow.pop %v2754
    %v2756 = vmul.f32 %v2753, 1.442695
    %v2757 = vpow.pop %v2756
    %v2758 = vsel %vm548, %v2755, 0.0
    %2759 = vadd.xlane.f32.xlu0 %v2758
    %v2760 = vpop.xlane.xlu0 %2759
    %v2761 = vsel %vm548, %v2757, 0.0
    %2762 = vadd.xlane.f32.xlu0 %v2761
    %v2763 = vpop.xlane.xlu0 %2762
    %v2764 = vrcp.pop %v2760
    %v2765 = vmul.f32 1.0, %v2764
    %v2766 = vrcp.pop %v2763
    %v2767 = vmul.f32 1.0, %v2766
    %v2768 = vmul.f32 %v2755, %v2765
    %v2769 = vmul.f32 %v2757, %v2767
    %2770 = vrot.lane.b32.xlu0 %v2584, 64
    %v2771 = vpop.permute.xlu0 %2770
    %v2774 = vsel %vm548, %v2768, 0
    %2776 = vmatprep.subr.mxu0 0.0
    %2777 = vmatpush1.msra.mxu0 %v2771
    %2778 = vmatprep.subr.mxu0 0.0
    %2779 = vmatpush1.msra.mxu0 0.0
    %2780 = vmatprep.subr.mxu0 0.0
    %2781 = vmatpush1.msra.mxu0 0.0
    %2782 = vmatprep.subr.mxu0 0.0
    %2783 = vmatpush1.msra.mxu0 0.0
    %2784 = vmatprep.subr.mxu0 0.0
    %2785 = vmatpush1.msra.mxu0 0.0
    %2786 = vmatprep.subr.mxu0 0.0
    %2787 = vmatpush1.msra.mxu0 0.0
    %2788 = vmatprep.subr.mxu0 0.0
    %2789 = vmatpush1.msra.mxu0 0.0
    %2790 = vmatprep.subr.mxu0 0.0
    %2791 = vmatpush1.msra.mxu0 0.0
    %2792 = vmatprep.subr.mxu0 0.0
    %2793 = vmatpush1.msra.mxu0 0.0
    %2794 = vmatprep.subr.mxu0 0.0
    %2795 = vmatpush1.msra.mxu0 0.0
    %2796 = vmatprep.subr.mxu0 0.0
    %2797 = vmatpush1.msra.mxu0 0.0
    %2798 = vmatprep.subr.mxu0 0.0
    %2799 = vmatpush1.msra.mxu0 0.0
    %2800 = vmatprep.subr.mxu0 0.0
    %2801 = vmatpush1.msra.mxu0 0.0
    %2802 = vmatprep.subr.mxu0 0.0
    %2803 = vmatpush1.msra.mxu0 0.0
    %2804 = vmatprep.subr.mxu0 0.0
    %2805 = vmatpush1.msra.mxu0 0.0
    %2806 = vmatprep.subr.mxu0 0.0
    %2807 = vmatpush1.msra.mxu0 0.0
    %2808 = vmatprep.subr.mxu0 0.0
    %2809 = vmatpush1.msra.mxu0 0.0
    %2810 = vmatprep.subr.mxu0 0.0
    %2811 = vmatpush1.msra.mxu0 0.0
    %2812 = vmatprep.subr.mxu0 0.0
    %2813 = vmatpush1.msra.mxu0 0.0
    %2814 = vmatprep.subr.mxu0 0.0
    %2815 = vmatpush1.msra.mxu0 0.0
    %2816 = vmatprep.subr.mxu0 0.0
    %2817 = vmatpush1.msra.mxu0 0.0
    %2818 = vmatprep.subr.mxu0 0.0
    %2819 = vmatpush1.msra.mxu0 0.0
    %2820 = vmatprep.subr.mxu0 0.0
    %2821 = vmatpush1.msra.mxu0 0.0
    %2822 = vmatprep.subr.mxu0 0.0
    %2823 = vmatpush1.msra.mxu0 0.0
    %2824 = vmatprep.subr.mxu0 0.0
    %2825 = vmatpush1.msra.mxu0 0.0
    %2826 = vmatprep.subr.mxu0 0.0
    %2827 = vmatpush1.msra.mxu0 0.0
    %2828 = vmatprep.subr.mxu0 0.0
    %2829 = vmatpush1.msra.mxu0 0.0
    %2830 = vmatprep.subr.mxu0 0.0
    %2831 = vmatpush1.msra.mxu0 0.0
    %2832 = vmatprep.subr.mxu0 0.0
    %2833 = vmatpush1.msra.mxu0 0.0
    %2834 = vmatprep.subr.mxu0 0.0
    %2835 = vmatpush1.msra.mxu0 0.0
    %2836 = vmatprep.subr.mxu0 0.0
    %2837 = vmatpush1.msra.mxu0 0.0
    %2838 = vmatprep.subr.mxu0 0.0
    %2839 = vmatpush1.msra.mxu0 0.0
    %2840 = vmatprep.mubr.f32.mxu0 0.0
    %2841 = vmatmul.mubr.f32.gmra.mrb[0].mxu0 %v2774
    %v2842 = vpop.f32.mrb[0].mxu0
    %v2843 = vadd.f32 0.0, %v2842
    %v2844 = vpop.f32.mrb[0].mxu0
    %2845 = vdwg.mxu0
    %2846 = vrot.lane.b32.xlu0 %v2589, 64
    %v2847 = vpop.permute.xlu0 %2846
    %v2850 = vsel %vm548, %v2769, 0
    %2852 = vmatprep.subr.mxu0 0.0
    %2853 = vmatpush1.msra.mxu0 %v2847
    %2854 = vmatprep.subr.mxu0 0.0
    %2855 = vmatpush1.msra.mxu0 0.0
    %2856 = vmatprep.subr.mxu0 0.0
    %2857 = vmatpush1.msra.mxu0 0.0
    %2858 = vmatprep.subr.mxu0 0.0
    %2859 = vmatpush1.msra.mxu0 0.0
    %2860 = vmatprep.subr.mxu0 0.0
    %2861 = vmatpush1.msra.mxu0 0.0
    %2862 = vmatprep.subr.mxu0 0.0
    %2863 = vmatpush1.msra.mxu0 0.0
    %2864 = vmatprep.subr.mxu0 0.0
    %2865 = vmatpush1.msra.mxu0 0.0
    %2866 = vmatprep.subr.mxu0 0.0
    %2867 = vmatpush1.msra.mxu0 0.0
    %2868 = vmatprep.subr.mxu0 0.0
    %2869 = vmatpush1.msra.mxu0 0.0
    %2870 = vmatprep.subr.mxu0 0.0
    %2871 = vmatpush1.msra.mxu0 0.0
    %2872 = vmatprep.subr.mxu0 0.0
    %2873 = vmatpush1.msra.mxu0 0.0
    %2874 = vmatprep.subr.mxu0 0.0
    %2875 = vmatpush1.msra.mxu0 0.0
    %2876 = vmatprep.subr.mxu0 0.0
    %2877 = vmatpush1.msra.mxu0 0.0
    %2878 = vmatprep.subr.mxu0 0.0
    %2879 = vmatpush1.msra.mxu0 0.0
    %2880 = vmatprep.subr.mxu0 0.0
    %2881 = vmatpush1.msra.mxu0 0.0
    %2882 = vmatprep.subr.mxu0 0.0
    %2883 = vmatpush1.msra.mxu0 0.0
    %2884 = vmatprep.subr.mxu0 0.0
    %2885 = vmatpush1.msra.mxu0 0.0
    %2886 = vmatprep.subr.mxu0 0.0
    %2887 = vmatpush1.msra.mxu0 0.0
    %2888 = vmatprep.subr.mxu0 0.0
    %2889 = vmatpush1.msra.mxu0 0.0
    %2890 = vmatprep.subr.mxu0 0.0
    %2891 = vmatpush1.msra.mxu0 0.0
    %2892 = vmatprep.subr.mxu0 0.0
    %2893 = vmatpush1.msra.mxu0 0.0
    %2894 = vmatprep.subr.mxu0 0.0
    %2895 = vmatpush1.msra.mxu0 0.0
    %2896 = vmatprep.subr.mxu0 0.0
    %2897 = vmatpush1.msra.mxu0 0.0
    %2898 = vmatprep.subr.mxu0 0.0
    %2899 = vmatpush1.msra.mxu0 0.0
    %2900 = vmatprep.subr.mxu0 0.0
    %2901 = vmatpush1.msra.mxu0 0.0
    %2902 = vmatprep.subr.mxu0 0.0
    %2903 = vmatpush1.msra.mxu0 0.0
    %2904 = vmatprep.subr.mxu0 0.0
    %2905 = vmatpush1.msra.mxu0 0.0
    %2906 = vmatprep.subr.mxu0 0.0
    %2907 = vmatpush1.msra.mxu0 0.0
    %2908 = vmatprep.subr.mxu0 0.0
    %2909 = vmatpush1.msra.mxu0 0.0
    %2910 = vmatprep.subr.mxu0 0.0
    %2911 = vmatpush1.msra.mxu0 0.0
    %2912 = vmatprep.subr.mxu0 0.0
    %2913 = vmatpush1.msra.mxu0 0.0
    %2914 = vmatprep.subr.mxu0 0.0
    %2915 = vmatpush1.msra.mxu0 0.0
    %2916 = vmatprep.mubr.f32.mxu0 0.0
    %2917 = vmatmul.mubr.f32.gmra.mrb[0].mxu0 %v2850
    %v2918 = vpop.f32.mrb[0].mxu0
    %v2919 = vadd.f32 0.0, %v2918
    %v2920 = vpop.f32.mrb[0].mxu0
    %2921 = vdwg.mxu0
    %2922 = vrot.lane.b32.xlu0 %v2584, 120
    %v2923 = vpop.permute.xlu0 %2922
    %2924 = vrot.lane.b32.xlu0 %v2584, 88
    %v2925 = vpop.permute.xlu0 %2924
    %v2926 = vsel %vm548, %v2923, 0
    %v2928 = vsel %vm548, %v2925, 0
    %2930 = vmatprep.subr.mxu0 0.0
    %2931 = vmatpush1.xpose.msra.mxu0 %v2928
    %2932 = vmatprep.subr.mxu0 0.0
    %2933 = vmatpush1.xpose.msra.mxu0 0.0
    %2934 = vmatprep.subr.mxu0 0.0
    %2935 = vmatpush1.xpose.msra.mxu0 0.0
    %2936 = vmatprep.subr.mxu0 0.0
    %2937 = vmatpush1.xpose.msra.mxu0 0.0
    %2938 = vmatprep.subr.mxu0 0.0
    %2939 = vmatpush1.xpose.msra.mxu0 0.0
    %2940 = vmatprep.subr.mxu0 0.0
    %2941 = vmatpush1.xpose.msra.mxu0 0.0
    %2942 = vmatprep.subr.mxu0 0.0
    %2943 = vmatpush1.xpose.msra.mxu0 0.0
    %2944 = vmatprep.subr.mxu0 0.0
    %2945 = vmatpush1.xpose.msra.mxu0 0.0
    %2946 = vmatprep.subr.mxu0 0.0
    %2947 = vmatpush1.xpose.msra.mxu0 0.0
    %2948 = vmatprep.subr.mxu0 0.0
    %2949 = vmatpush1.xpose.msra.mxu0 0.0
    %2950 = vmatprep.subr.mxu0 0.0
    %2951 = vmatpush1.xpose.msra.mxu0 0.0
    %2952 = vmatprep.subr.mxu0 0.0
    %2953 = vmatpush1.xpose.msra.mxu0 0.0
    %2954 = vmatprep.subr.mxu0 0.0
    %2955 = vmatpush1.xpose.msra.mxu0 0.0
    %2956 = vmatprep.subr.mxu0 0.0
    %2957 = vmatpush1.xpose.msra.mxu0 0.0
    %2958 = vmatprep.subr.mxu0 0.0
    %2959 = vmatpush1.xpose.msra.mxu0 0.0
    %2960 = vmatprep.subr.mxu0 0.0
    %2961 = vmatpush1.xpose.msra.mxu0 0.0
    %2962 = vmatprep.subr.mxu0 0.0
    %2963 = vmatpush1.xpose.msra.mxu0 0.0
    %2964 = vmatprep.subr.mxu0 0.0
    %2965 = vmatpush1.xpose.msra.mxu0 0.0
    %2966 = vmatprep.subr.mxu0 0.0
    %2967 = vmatpush1.xpose.msra.mxu0 0.0
    %2968 = vmatprep.subr.mxu0 0.0
    %2969 = vmatpush1.xpose.msra.mxu0 0.0
    %2970 = vmatprep.subr.mxu0 0.0
    %2971 = vmatpush1.xpose.msra.mxu0 0.0
    %2972 = vmatprep.subr.mxu0 0.0
    %2973 = vmatpush1.xpose.msra.mxu0 0.0
    %2974 = vmatprep.subr.mxu0 0.0
    %2975 = vmatpush1.xpose.msra.mxu0 0.0
    %2976 = vmatprep.subr.mxu0 0.0
    %2977 = vmatpush1.xpose.msra.mxu0 0.0
    %2978 = vmatprep.subr.mxu0 0.0
    %2979 = vmatpush1.xpose.msra.mxu0 0.0
    %2980 = vmatprep.subr.mxu0 0.0
    %2981 = vmatpush1.xpose.msra.mxu0 0.0
    %2982 = vmatprep.subr.mxu0 0.0
    %2983 = vmatpush1.xpose.msra.mxu0 0.0
    %2984 = vmatprep.subr.mxu0 0.0
    %2985 = vmatpush1.xpose.msra.mxu0 0.0
    %2986 = vmatprep.subr.mxu0 0.0
    %2987 = vmatpush1.xpose.msra.mxu0 0.0
    %2988 = vmatprep.subr.mxu0 0.0
    %2989 = vmatpush1.xpose.msra.mxu0 0.0
    %2990 = vmatprep.subr.mxu0 0.0
    %2991 = vmatpush1.xpose.msra.mxu0 0.0
    %2992 = vmatprep.subr.mxu0 0.0
    %2993 = vmatpush1.xpose.msra.mxu0 0.0
    %2994 = vmatprep.mubr.f32.mxu0 0.0
    %2995 = vmatmul.mubr.f32.gmra.mrb[0].mxu0 %v2926
    %v2996 = vpop.f32.mrb[0].mxu0
    %v2997 = vadd.f32 0.0, %v2996
    %v2998 = vpop.f32.mrb[0].mxu0
    %2999 = vdwg.mxu0
    %3000 = vrot.lane.b32.xlu0 %v2589, 120
    %v3001 = vpop.permute.xlu0 %3000
    %3002 = vrot.lane.b32.xlu0 %v2589, 88
    %v3003 = vpop.permute.xlu0 %3002
    %v3004 = vsel %vm548, %v3001, 0
    %v3006 = vsel %vm548, %v3003, 0
    %3008 = vmatprep.subr.mxu0 0.0
    %3009 = vmatpush1.xpose.msra.mxu0 %v3006
    %3010 = vmatprep.subr.mxu0 0.0
    %3011 = vmatpush1.xpose.msra.mxu0 0.0
    %3012 = vmatprep.subr.mxu0 0.0
    %3013 = vmatpush1.xpose.msra.mxu0 0.0
    %3014 = vmatprep.subr.mxu0 0.0
    %3015 = vmatpush1.xpose.msra.mxu0 0.0
    %3016 = vmatprep.subr.mxu0 0.0
    %3017 = vmatpush1.xpose.msra.mxu0 0.0
    %3018 = vmatprep.subr.mxu0 0.0
    %3019 = vmatpush1.xpose.msra.mxu0 0.0
    %3020 = vmatprep.subr.mxu0 0.0
    %3021 = vmatpush1.xpose.msra.mxu0 0.0
    %3022 = vmatprep.subr.mxu0 0.0
    %3023 = vmatpush1.xpose.msra.mxu0 0.0
    %3024 = vmatprep.subr.mxu0 0.0
    %3025 = vmatpush1.xpose.msra.mxu0 0.0
    %3026 = vmatprep.subr.mxu0 0.0
    %3027 = vmatpush1.xpose.msra.mxu0 0.0
    %3028 = vmatprep.subr.mxu0 0.0
    %3029 = vmatpush1.xpose.msra.mxu0 0.0
    %3030 = vmatprep.subr.mxu0 0.0
    %3031 = vmatpush1.xpose.msra.mxu0 0.0
    %3032 = vmatprep.subr.mxu0 0.0
    %3033 = vmatpush1.xpose.msra.mxu0 0.0
    %3034 = vmatprep.subr.mxu0 0.0
    %3035 = vmatpush1.xpose.msra.mxu0 0.0
    %3036 = vmatprep.subr.mxu0 0.0
    %3037 = vmatpush1.xpose.msra.mxu0 0.0
    %3038 = vmatprep.subr.mxu0 0.0
    %3039 = vmatpush1.xpose.msra.mxu0 0.0
    %3040 = vmatprep.subr.mxu0 0.0
    %3041 = vmatpush1.xpose.msra.mxu0 0.0
    %3042 = vmatprep.subr.mxu0 0.0
    %3043 = vmatpush1.xpose.msra.mxu0 0.0
    %3044 = vmatprep.subr.mxu0 0.0
    %3045 = vmatpush1.xpose.msra.mxu0 0.0
    %3046 = vmatprep.subr.mxu0 0.0
    %3047 = vmatpush1.xpose.msra.mxu0 0.0
    %3048 = vmatprep.subr.mxu0 0.0
    %3049 = vmatpush1.xpose.msra.mxu0 0.0
    %3050 = vmatprep.subr.mxu0 0.0
    %3051 = vmatpush1.xpose.msra.mxu0 0.0
    %3052 = vmatprep.subr.mxu0 0.0
    %3053 = vmatpush1.xpose.msra.mxu0 0.0
    %3054 = vmatprep.subr.mxu0 0.0
    %3055 = vmatpush1.xpose.msra.mxu0 0.0
    %3056 = vmatprep.subr.mxu0 0.0
    %3057 = vmatpush1.xpose.msra.mxu0 0.0
    %3058 = vmatprep.subr.mxu0 0.0
    %3059 = vmatpush1.xpose.msra.mxu0 0.0
    %3060 = vmatprep.subr.mxu0 0.0
    %3061 = vmatpush1.xpose.msra.mxu0 0.0
    %3062 = vmatprep.subr.mxu0 0.0
    %3063 = vmatpush1.xpose.msra.mxu0 0.0
    %3064 = vmatprep.subr.mxu0 0.0
    %3065 = vmatpush1.xpose.msra.mxu0 0.0
    %3066 = vmatprep.subr.mxu0 0.0
    %3067 = vmatpush1.xpose.msra.mxu0 0.0
    %3068 = vmatprep.subr.mxu0 0.0
    %3069 = vmatpush1.xpose.msra.mxu0 0.0
    %3070 = vmatprep.subr.mxu0 0.0
    %3071 = vmatpush1.xpose.msra.mxu0 0.0
    %3072 = vmatprep.mubr.f32.mxu0 0.0
    %3073 = vmatmul.mubr.f32.gmra.mrb[0].mxu0 %v3004
    %v3074 = vpop.f32.mrb[0].mxu0
    %v3075 = vadd.f32 0.0, %v3074
    %v3076 = vpop.f32.mrb[0].mxu0
    %3077 = vdwg.mxu0
    %v3078 = vsel %vm548, %v2997, -inf
    %3079 = vmax.xlane.f32.xlu0 %v3078
    %v3080 = vpop.xlane.xlu0 %3079
    %v3081 = vsel %vm548, %v3075, -inf
    %3082 = vmax.xlane.f32.xlu0 %v3081
    %v3083 = vpop.xlane.xlu0 %3082
    %v3084 = vsub.f32 %v2997, %v3080
    %v3085 = vsub.f32 %v3075, %v3083
    %v3086 = vmul.f32 %v3084, 1.442695
    %v3087 = vpow.pop %v3086
    %v3088 = vmul.f32 %v3085, 1.442695
    %v3089 = vpow.pop %v3088
    %v3090 = vsel %vm548, %v3087, 0.0
    %3091 = vadd.xlane.f32.xlu0 %v3090
    %v3092 = vpop.xlane.xlu0 %3091
    %v3093 = vsel %vm548, %v3089, 0.0
    %3094 = vadd.xlane.f32.xlu0 %v3093
    %v3095 = vpop.xlane.xlu0 %3094
    %v3096 = vrcp.pop %v3092
    %v3097 = vmul.f32 1.0, %v3096
    %v3098 = vrcp.pop %v3095
    %v3099 = vmul.f32 1.0, %v3098
    %v3100 = vmul.f32 %v3087, %v3097
    %v3101 = vmul.f32 %v3089, %v3099
    %3102 = vrot.lane.b32.xlu0 %v2584, 56
    %v3103 = vpop.permute.xlu0 %3102
    %v3106 = vsel %vm548, %v3100, 0
    %3108 = vmatprep.subr.mxu0 0.0
    %3109 = vmatpush1.msra.mxu0 %v3103
    %3110 = vmatprep.subr.mxu0 0.0
    %3111 = vmatpush1.msra.mxu0 0.0
    %3112 = vmatprep.subr.mxu0 0.0
    %3113 = vmatpush1.msra.mxu0 0.0
    %3114 = vmatprep.subr.mxu0 0.0
    %3115 = vmatpush1.msra.mxu0 0.0
    %3116 = vmatprep.subr.mxu0 0.0
    %3117 = vmatpush1.msra.mxu0 0.0
    %3118 = vmatprep.subr.mxu0 0.0
    %3119 = vmatpush1.msra.mxu0 0.0
    %3120 = vmatprep.subr.mxu0 0.0
    %3121 = vmatpush1.msra.mxu0 0.0
    %3122 = vmatprep.subr.mxu0 0.0
    %3123 = vmatpush1.msra.mxu0 0.0
    %3124 = vmatprep.subr.mxu0 0.0
    %3125 = vmatpush1.msra.mxu0 0.0
    %3126 = vmatprep.subr.mxu0 0.0
    %3127 = vmatpush1.msra.mxu0 0.0
    %3128 = vmatprep.subr.mxu0 0.0
    %3129 = vmatpush1.msra.mxu0 0.0
    %3130 = vmatprep.subr.mxu0 0.0
    %3131 = vmatpush1.msra.mxu0 0.0
    %3132 = vmatprep.subr.mxu0 0.0
    %3133 = vmatpush1.msra.mxu0 0.0
    %3134 = vmatprep.subr.mxu0 0.0
    %3135 = vmatpush1.msra.mxu0 0.0
    %3136 = vmatprep.subr.mxu0 0.0
    %3137 = vmatpush1.msra.mxu0 0.0
    %3138 = vmatprep.subr.mxu0 0.0
    %3139 = vmatpush1.msra.mxu0 0.0
    %3140 = vmatprep.subr.mxu0 0.0
    %3141 = vmatpush1.msra.mxu0 0.0
    %3142 = vmatprep.subr.mxu0 0.0
    %3143 = vmatpush1.msra.mxu0 0.0
    %3144 = vmatprep.subr.mxu0 0.0
    %3145 = vmatpush1.msra.mxu0 0.0
    %3146 = vmatprep.subr.mxu0 0.0
    %3147 = vmatpush1.msra.mxu0 0.0
    %3148 = vmatprep.subr.mxu0 0.0
    %3149 = vmatpush1.msra.mxu0 0.0
    %3150 = vmatprep.subr.mxu0 0.0
    %3151 = vmatpush1.msra.mxu0 0.0
    %3152 = vmatprep.subr.mxu0 0.0
    %3153 = vmatpush1.msra.mxu0 0.0
    %3154 = vmatprep.subr.mxu0 0.0
    %3155 = vmatpush1.msra.mxu0 0.0
    %3156 = vmatprep.subr.mxu0 0.0
    %3157 = vmatpush1.msra.mxu0 0.0
    %3158 = vmatprep.subr.mxu0 0.0
    %3159 = vmatpush1.msra.mxu0 0.0
    %3160 = vmatprep.subr.mxu0 0.0
    %3161 = vmatpush1.msra.mxu0 0.0
    %3162 = vmatprep.subr.mxu0 0.0
    %3163 = vmatpush1.msra.mxu0 0.0
    %3164 = vmatprep.subr.mxu0 0.0
    %3165 = vmatpush1.msra.mxu0 0.0
    %3166 = vmatprep.subr.mxu0 0.0
    %3167 = vmatpush1.msra.mxu0 0.0
    %3168 = vmatprep.subr.mxu0 0.0
    %3169 = vmatpush1.msra.mxu0 0.0
    %3170 = vmatprep.subr.mxu0 0.0
    %3171 = vmatpush1.msra.mxu0 0.0
    %3172 = vmatprep.mubr.f32.mxu0 0.0
    %3173 = vmatmul.mubr.f32.gmra.mrb[0].mxu0 %v3106
    %v3174 = vpop.f32.mrb[0].mxu0
    %v3175 = vadd.f32 0.0, %v3174
    %v3176 = vpop.f32.mrb[0].mxu0
    %3177 = vdwg.mxu0
    %3178 = vrot.lane.b32.xlu0 %v2589, 56
    %v3179 = vpop.permute.xlu0 %3178
    %v3182 = vsel %vm548, %v3101, 0
    %3184 = vmatprep.subr.mxu0 0.0
    %3185 = vmatpush1.msra.mxu0 %v3179
    %3186 = vmatprep.subr.mxu0 0.0
    %3187 = vmatpush1.msra.mxu0 0.0
    %3188 = vmatprep.subr.mxu0 0.0
    %3189 = vmatpush1.msra.mxu0 0.0
    %3190 = vmatprep.subr.mxu0 0.0
    %3191 = vmatpush1.msra.mxu0 0.0
    %3192 = vmatprep.subr.mxu0 0.0
    %3193 = vmatpush1.msra.mxu0 0.0
    %3194 = vmatprep.subr.mxu0 0.0
    %3195 = vmatpush1.msra.mxu0 0.0
    %3196 = vmatprep.subr.mxu0 0.0
    %3197 = vmatpush1.msra.mxu0 0.0
    %3198 = vmatprep.subr.mxu0 0.0
    %3199 = vmatpush1.msra.mxu0 0.0
    %3200 = vmatprep.subr.mxu0 0.0
    %3201 = vmatpush1.msra.mxu0 0.0
    %3202 = vmatprep.subr.mxu0 0.0
    %3203 = vmatpush1.msra.mxu0 0.0
    %3204 = vmatprep.subr.mxu0 0.0
    %3205 = vmatpush1.msra.mxu0 0.0
    %3206 = vmatprep.subr.mxu0 0.0
    %3207 = vmatpush1.msra.mxu0 0.0
    %3208 = vmatprep.subr.mxu0 0.0
    %3209 = vmatpush1.msra.mxu0 0.0
    %3210 = vmatprep.subr.mxu0 0.0
    %3211 = vmatpush1.msra.mxu0 0.0
    %3212 = vmatprep.subr.mxu0 0.0
    %3213 = vmatpush1.msra.mxu0 0.0
    %3214 = vmatprep.subr.mxu0 0.0
    %3215 = vmatpush1.msra.mxu0 0.0
    %3216 = vmatprep.subr.mxu0 0.0
    %3217 = vmatpush1.msra.mxu0 0.0
    %3218 = vmatprep.subr.mxu0 0.0
    %3219 = vmatpush1.msra.mxu0 0.0
    %3220 = vmatprep.subr.mxu0 0.0
    %3221 = vmatpush1.msra.mxu0 0.0
    %3222 = vmatprep.subr.mxu0 0.0
    %3223 = vmatpush1.msra.mxu0 0.0
    %3224 = vmatprep.subr.mxu0 0.0
    %3225 = vmatpush1.msra.mxu0 0.0
    %3226 = vmatprep.subr.mxu0 0.0
    %3227 = vmatpush1.msra.mxu0 0.0
    %3228 = vmatprep.subr.mxu0 0.0
    %3229 = vmatpush1.msra.mxu0 0.0
    %3230 = vmatprep.subr.mxu0 0.0
    %3231 = vmatpush1.msra.mxu0 0.0
    %3232 = vmatprep.subr.mxu0 0.0
    %3233 = vmatpush1.msra.mxu0 0.0
    %3234 = vmatprep.subr.mxu0 0.0
    %3235 = vmatpush1.msra.mxu0 0.0
    %3236 = vmatprep.subr.mxu0 0.0
    %3237 = vmatpush1.msra.mxu0 0.0
    %3238 = vmatprep.subr.mxu0 0.0
    %3239 = vmatpush1.msra.mxu0 0.0
    %3240 = vmatprep.subr.mxu0 0.0
    %3241 = vmatpush1.msra.mxu0 0.0
    %3242 = vmatprep.subr.mxu0 0.0
    %3243 = vmatpush1.msra.mxu0 0.0
    %3244 = vmatprep.subr.mxu0 0.0
    %3245 = vmatpush1.msra.mxu0 0.0
    %3246 = vmatprep.subr.mxu0 0.0
    %3247 = vmatpush1.msra.mxu0 0.0
    %3248 = vmatprep.mubr.f32.mxu0 0.0
    %3249 = vmatmul.mubr.f32.gmra.mrb[0].mxu0 %v3182
    %v3250 = vpop.f32.mrb[0].mxu0
    %v3251 = vadd.f32 0.0, %v3250
    %v3252 = vpop.f32.mrb[0].mxu0
    %3253 = vdwg.mxu0
    %v3255 = vsel %vm548, %v3175, 0
    %v3258 = vsel %vm548, %v3251, 0
    %3260 = vmatprep.subr.mxu0 0.0
    %3261 = vmatpush1.msra.mxu0 %v2448
    %3262 = vmatprep.subr.mxu0 0.0
    %3263 = vmatpush1.msra.mxu0 0.0
    %3264 = vmatprep.subr.mxu0 0.0
    %3265 = vmatpush1.msra.mxu0 0.0
    %3266 = vmatprep.subr.mxu0 0.0
    %3267 = vmatpush1.msra.mxu0 0.0
    %3268 = vmatprep.subr.mxu0 0.0
    %3269 = vmatpush1.msra.mxu0 0.0
    %3270 = vmatprep.subr.mxu0 0.0
    %3271 = vmatpush1.msra.mxu0 0.0
    %3272 = vmatprep.subr.mxu0 0.0
    %3273 = vmatpush1.msra.mxu0 0.0
    %3274 = vmatprep.subr.mxu0 0.0
    %3275 = vmatpush1.msra.mxu0 0.0
    %3276 = vmatprep.subr.mxu0 0.0
    %3277 = vmatpush1.msra.mxu0 0.0
    %3278 = vmatprep.subr.mxu0 0.0
    %3279 = vmatpush1.msra.mxu0 0.0
    %3280 = vmatprep.subr.mxu0 0.0
    %3281 = vmatpush1.msra.mxu0 0.0
    %3282 = vmatprep.subr.mxu0 0.0
    %3283 = vmatpush1.msra.mxu0 0.0
    %3284 = vmatprep.subr.mxu0 0.0
    %3285 = vmatpush1.msra.mxu0 0.0
    %3286 = vmatprep.subr.mxu0 0.0
    %3287 = vmatpush1.msra.mxu0 0.0
    %3288 = vmatprep.subr.mxu0 0.0
    %3289 = vmatpush1.msra.mxu0 0.0
    %3290 = vmatprep.subr.mxu0 0.0
    %3291 = vmatpush1.msra.mxu0 0.0
    %3292 = vmatprep.subr.mxu0 0.0
    %3293 = vmatpush1.msra.mxu0 0.0
    %3294 = vmatprep.subr.mxu0 0.0
    %3295 = vmatpush1.msra.mxu0 0.0
    %3296 = vmatprep.subr.mxu0 0.0
    %3297 = vmatpush1.msra.mxu0 0.0
    %3298 = vmatprep.subr.mxu0 0.0
    %3299 = vmatpush1.msra.mxu0 0.0
    %3300 = vmatprep.subr.mxu0 0.0
    %3301 = vmatpush1.msra.mxu0 0.0
    %3302 = vmatprep.subr.mxu0 0.0
    %3303 = vmatpush1.msra.mxu0 0.0
    %3304 = vmatprep.subr.mxu0 0.0
    %3305 = vmatpush1.msra.mxu0 0.0
    %3306 = vmatprep.subr.mxu0 0.0
    %3307 = vmatpush1.msra.mxu0 0.0
    %3308 = vmatprep.subr.mxu0 0.0
    %3309 = vmatpush1.msra.mxu0 0.0
    %3310 = vmatprep.subr.mxu0 0.0
    %3311 = vmatpush1.msra.mxu0 0.0
    %3312 = vmatprep.subr.mxu0 0.0
    %3313 = vmatpush1.msra.mxu0 0.0
    %3314 = vmatprep.subr.mxu0 0.0
    %3315 = vmatpush1.msra.mxu0 0.0
    %3316 = vmatprep.subr.mxu0 0.0
    %3317 = vmatpush1.msra.mxu0 0.0
    %3318 = vmatprep.subr.mxu0 0.0
    %3319 = vmatpush1.msra.mxu0 0.0
    %3320 = vmatprep.subr.mxu0 0.0
    %3321 = vmatpush1.msra.mxu0 0.0
    %3322 = vmatprep.subr.mxu0 0.0
    %3323 = vmatpush1.msra.mxu0 0.0
    %3324 = vmatprep.mubr.f32.mxu0 0.0
    %3325 = vmatmul.mubr.f32.gmra.mrb[0].mxu0 %v3255
    %v3326 = vpop.f32.mrb[0].mxu0
    %v3327 = vadd.f32 0.0, %v3326
    %v3328 = vpop.f32.mrb[0].mxu0
    %3329 = vmatprep.mubr.f32.mxu0 0.0
    %3330 = vmatmul.mubr.f32.gmra.mrb[0].mxu0 %v3258
    %v3331 = vpop.f32.mrb[0].mxu0
    %v3332 = vadd.f32 0.0, %v3331
    %v3333 = vpop.f32.mrb[0].mxu0
    %3334 = vdwg.mxu0
    %v3336 = vsel %vm548, %v2843, 0
    %v3339 = vsel %vm548, %v2919, 0
    %3341 = vmatprep.subr.mxu0 0.0
    %3342 = vmatpush1.msra.mxu0 %v2447
    %3343 = vmatprep.subr.mxu0 0.0
    %3344 = vmatpush1.msra.mxu0 0.0
    %3345 = vmatprep.subr.mxu0 0.0
    %3346 = vmatpush1.msra.mxu0 0.0
    %3347 = vmatprep.subr.mxu0 0.0
    %3348 = vmatpush1.msra.mxu0 0.0
    %3349 = vmatprep.subr.mxu0 0.0
    %3350 = vmatpush1.msra.mxu0 0.0
    %3351 = vmatprep.subr.mxu0 0.0
    %3352 = vmatpush1.msra.mxu0 0.0
    %3353 = vmatprep.subr.mxu0 0.0
    %3354 = vmatpush1.msra.mxu0 0.0
    %3355 = vmatprep.subr.mxu0 0.0
    %3356 = vmatpush1.msra.mxu0 0.0
    %3357 = vmatprep.subr.mxu0 0.0
    %3358 = vmatpush1.msra.mxu0 0.0
    %3359 = vmatprep.subr.mxu0 0.0
    %3360 = vmatpush1.msra.mxu0 0.0
    %3361 = vmatprep.subr.mxu0 0.0
    %3362 = vmatpush1.msra.mxu0 0.0
    %3363 = vmatprep.subr.mxu0 0.0
    %3364 = vmatpush1.msra.mxu0 0.0
    %3365 = vmatprep.subr.mxu0 0.0
    %3366 = vmatpush1.msra.mxu0 0.0
    %3367 = vmatprep.subr.mxu0 0.0
    %3368 = vmatpush1.msra.mxu0 0.0
    %3369 = vmatprep.subr.mxu0 0.0
    %3370 = vmatpush1.msra.mxu0 0.0
    %3371 = vmatprep.subr.mxu0 0.0
    %3372 = vmatpush1.msra.mxu0 0.0
    %3373 = vmatprep.subr.mxu0 0.0
    %3374 = vmatpush1.msra.mxu0 0.0
    %3375 = vmatprep.subr.mxu0 0.0
    %3376 = vmatpush1.msra.mxu0 0.0
    %3377 = vmatprep.subr.mxu0 0.0
    %3378 = vmatpush1.msra.mxu0 0.0
    %3379 = vmatprep.subr.mxu0 0.0
    %3380 = vmatpush1.msra.mxu0 0.0
    %3381 = vmatprep.subr.mxu0 0.0
    %3382 = vmatpush1.msra.mxu0 0.0
    %3383 = vmatprep.subr.mxu0 0.0
    %3384 = vmatpush1.msra.mxu0 0.0
    %3385 = vmatprep.subr.mxu0 0.0
    %3386 = vmatpush1.msra.mxu0 0.0
    %3387 = vmatprep.subr.mxu0 0.0
    %3388 = vmatpush1.msra.mxu0 0.0
    %3389 = vmatprep.subr.mxu0 0.0
    %3390 = vmatpush1.msra.mxu0 0.0
    %3391 = vmatprep.subr.mxu0 0.0
    %3392 = vmatpush1.msra.mxu0 0.0
    %3393 = vmatprep.subr.mxu0 0.0
    %3394 = vmatpush1.msra.mxu0 0.0
    %3395 = vmatprep.subr.mxu0 0.0
    %3396 = vmatpush1.msra.mxu0 0.0
    %3397 = vmatprep.subr.mxu0 0.0
    %3398 = vmatpush1.msra.mxu0 0.0
    %3399 = vmatprep.subr.mxu0 0.0
    %3400 = vmatpush1.msra.mxu0 0.0
    %3401 = vmatprep.subr.mxu0 0.0
    %3402 = vmatpush1.msra.mxu0 0.0
    %3403 = vmatprep.subr.mxu0 0.0
    %3404 = vmatpush1.msra.mxu0 0.0
    %3405 = vmatprep.mubr.f32.mxu0 0.0
    %3406 = vmatmul.mubr.f32.gmra.mrb[0].mxu0 %v3336
    %v3407 = vpop.f32.mrb[0].mxu0
    %v3408 = vadd.f32 %v3327, %v3407
    %v3409 = vpop.f32.mrb[0].mxu0
    %3410 = vmatprep.mubr.f32.mxu0 0.0
    %3411 = vmatmul.mubr.f32.gmra.mrb[0].mxu0 %v3339
    %v3412 = vpop.f32.mrb[0].mxu0
    %v3413 = vadd.f32 %v3332, %v3412
    %v3414 = vpop.f32.mrb[0].mxu0
    %3415 = vdwg.mxu0
    %3416 = vrot.lane.b32.xlu0 %v2584, 112
    %v3417 = vpop.permute.xlu0 %3416
    %3418 = vrot.lane.b32.xlu0 %v2584, 80
    %v3419 = vpop.permute.xlu0 %3418
    %v3420 = vsel %vm548, %v3417, 0
    %v3422 = vsel %vm548, %v3419, 0
    %3424 = vmatprep.subr.mxu0 0.0
    %3425 = vmatpush1.xpose.msra.mxu0 %v3422
    %3426 = vmatprep.subr.mxu0 0.0
    %3427 = vmatpush1.xpose.msra.mxu0 0.0
    %3428 = vmatprep.subr.mxu0 0.0
    %3429 = vmatpush1.xpose.msra.mxu0 0.0
    %3430 = vmatprep.subr.mxu0 0.0
    %3431 = vmatpush1.xpose.msra.mxu0 0.0
    %3432 = vmatprep.subr.mxu0 0.0
    %3433 = vmatpush1.xpose.msra.mxu0 0.0
    %3434 = vmatprep.subr.mxu0 0.0
    %3435 = vmatpush1.xpose.msra.mxu0 0.0
    %3436 = vmatprep.subr.mxu0 0.0
    %3437 = vmatpush1.xpose.msra.mxu0 0.0
    %3438 = vmatprep.subr.mxu0 0.0
    %3439 = vmatpush1.xpose.msra.mxu0 0.0
    %3440 = vmatprep.subr.mxu0 0.0
    %3441 = vmatpush1.xpose.msra.mxu0 0.0
    %3442 = vmatprep.subr.mxu0 0.0
    %3443 = vmatpush1.xpose.msra.mxu0 0.0
    %3444 = vmatprep.subr.mxu0 0.0
    %3445 = vmatpush1.xpose.msra.mxu0 0.0
    %3446 = vmatprep.subr.mxu0 0.0
    %3447 = vmatpush1.xpose.msra.mxu0 0.0
    %3448 = vmatprep.subr.mxu0 0.0
    %3449 = vmatpush1.xpose.msra.mxu0 0.0
    %3450 = vmatprep.subr.mxu0 0.0
    %3451 = vmatpush1.xpose.msra.mxu0 0.0
    %3452 = vmatprep.subr.mxu0 0.0
    %3453 = vmatpush1.xpose.msra.mxu0 0.0
    %3454 = vmatprep.subr.mxu0 0.0
    %3455 = vmatpush1.xpose.msra.mxu0 0.0
    %3456 = vmatprep.subr.mxu0 0.0
    %3457 = vmatpush1.xpose.msra.mxu0 0.0
    %3458 = vmatprep.subr.mxu0 0.0
    %3459 = vmatpush1.xpose.msra.mxu0 0.0
    %3460 = vmatprep.subr.mxu0 0.0
    %3461 = vmatpush1.xpose.msra.mxu0 0.0
    %3462 = vmatprep.subr.mxu0 0.0
    %3463 = vmatpush1.xpose.msra.mxu0 0.0
    %3464 = vmatprep.subr.mxu0 0.0
    %3465 = vmatpush1.xpose.msra.mxu0 0.0
    %3466 = vmatprep.subr.mxu0 0.0
    %3467 = vmatpush1.xpose.msra.mxu0 0.0
    %3468 = vmatprep.subr.mxu0 0.0
    %3469 = vmatpush1.xpose.msra.mxu0 0.0
    %3470 = vmatprep.subr.mxu0 0.0
    %3471 = vmatpush1.xpose.msra.mxu0 0.0
    %3472 = vmatprep.subr.mxu0 0.0
    %3473 = vmatpush1.xpose.msra.mxu0 0.0
    %3474 = vmatprep.subr.mxu0 0.0
    %3475 = vmatpush1.xpose.msra.mxu0 0.0
    %3476 = vmatprep.subr.mxu0 0.0
    %3477 = vmatpush1.xpose.msra.mxu0 0.0
    %3478 = vmatprep.subr.mxu0 0.0
    %3479 = vmatpush1.xpose.msra.mxu0 0.0
    %3480 = vmatprep.subr.mxu0 0.0
    %3481 = vmatpush1.xpose.msra.mxu0 0.0
    %3482 = vmatprep.subr.mxu0 0.0
    %3483 = vmatpush1.xpose.msra.mxu0 0.0
    %3484 = vmatprep.subr.mxu0 0.0
    %3485 = vmatpush1.xpose.msra.mxu0 0.0
    %3486 = vmatprep.subr.mxu0 0.0
    %3487 = vmatpush1.xpose.msra.mxu0 0.0
    %3488 = vmatprep.mubr.f32.mxu0 0.0
    %3489 = vmatmul.mubr.f32.gmra.mrb[0].mxu0 %v3420
    %v3490 = vpop.f32.mrb[0].mxu0
    %v3491 = vadd.f32 0.0, %v3490
    %v3492 = vpop.f32.mrb[0].mxu0
    %3493 = vdwg.mxu0
    %3494 = vrot.lane.b32.xlu0 %v2589, 112
    %v3495 = vpop.permute.xlu0 %3494
    %3496 = vrot.lane.b32.xlu0 %v2589, 80
    %v3497 = vpop.permute.xlu0 %3496
    %v3498 = vsel %vm548, %v3495, 0
    %v3500 = vsel %vm548, %v3497, 0
    %3502 = vmatprep.subr.mxu0 0.0
    %3503 = vmatpush1.xpose.msra.mxu0 %v3500
    %3504 = vmatprep.subr.mxu0 0.0
    %3505 = vmatpush1.xpose.msra.mxu0 0.0
    %3506 = vmatprep.subr.mxu0 0.0
    %3507 = vmatpush1.xpose.msra.mxu0 0.0
    %3508 = vmatprep.subr.mxu0 0.0
    %3509 = vmatpush1.xpose.msra.mxu0 0.0
    %3510 = vmatprep.subr.mxu0 0.0
    %3511 = vmatpush1.xpose.msra.mxu0 0.0
    %3512 = vmatprep.subr.mxu0 0.0
    %3513 = vmatpush1.xpose.msra.mxu0 0.0
    %3514 = vmatprep.subr.mxu0 0.0
    %3515 = vmatpush1.xpose.msra.mxu0 0.0
    %3516 = vmatprep.subr.mxu0 0.0
    %3517 = vmatpush1.xpose.msra.mxu0 0.0
    %3518 = vmatprep.subr.mxu0 0.0
    %3519 = vmatpush1.xpose.msra.mxu0 0.0
    %3520 = vmatprep.subr.mxu0 0.0
    %3521 = vmatpush1.xpose.msra.mxu0 0.0
    %3522 = vmatprep.subr.mxu0 0.0
    %3523 = vmatpush1.xpose.msra.mxu0 0.0
    %3524 = vmatprep.subr.mxu0 0.0
    %3525 = vmatpush1.xpose.msra.mxu0 0.0
    %3526 = vmatprep.subr.mxu0 0.0
    %3527 = vmatpush1.xpose.msra.mxu0 0.0
    %3528 = vmatprep.subr.mxu0 0.0
    %3529 = vmatpush1.xpose.msra.mxu0 0.0
    %3530 = vmatprep.subr.mxu0 0.0
    %3531 = vmatpush1.xpose.msra.mxu0 0.0
    %3532 = vmatprep.subr.mxu0 0.0
    %3533 = vmatpush1.xpose.msra.mxu0 0.0
    %3534 = vmatprep.subr.mxu0 0.0
    %3535 = vmatpush1.xpose.msra.mxu0 0.0
    %3536 = vmatprep.subr.mxu0 0.0
    %3537 = vmatpush1.xpose.msra.mxu0 0.0
    %3538 = vmatprep.subr.mxu0 0.0
    %3539 = vmatpush1.xpose.msra.mxu0 0.0
    %3540 = vmatprep.subr.mxu0 0.0
    %3541 = vmatpush1.xpose.msra.mxu0 0.0
    %3542 = vmatprep.subr.mxu0 0.0
    %3543 = vmatpush1.xpose.msra.mxu0 0.0
    %3544 = vmatprep.subr.mxu0 0.0
    %3545 = vmatpush1.xpose.msra.mxu0 0.0
    %3546 = vmatprep.subr.mxu0 0.0
    %3547 = vmatpush1.xpose.msra.mxu0 0.0
    %3548 = vmatprep.subr.mxu0 0.0
    %3549 = vmatpush1.xpose.msra.mxu0 0.0
    %3550 = vmatprep.subr.mxu0 0.0
    %3551 = vmatpush1.xpose.msra.mxu0 0.0
    %3552 = vmatprep.subr.mxu0 0.0
    %3553 = vmatpush1.xpose.msra.mxu0 0.0
    %3554 = vmatprep.subr.mxu0 0.0
    %3555 = vmatpush1.xpose.msra.mxu0 0.0
    %3556 = vmatprep.subr.mxu0 0.0
    %3557 = vmatpush1.xpose.msra.mxu0 0.0
    %3558 = vmatprep.subr.mxu0 0.0
    %3559 = vmatpush1.xpose.msra.mxu0 0.0
    %3560 = vmatprep.subr.mxu0 0.0
    %3561 = vmatpush1.xpose.msra.mxu0 0.0
    %3562 = vmatprep.subr.mxu0 0.0
    %3563 = vmatpush1.xpose.msra.mxu0 0.0
    %3564 = vmatprep.subr.mxu0 0.0
    %3565 = vmatpush1.xpose.msra.mxu0 0.0
    %3566 = vmatprep.mubr.f32.mxu0 0.0
    %3567 = vmatmul.mubr.f32.gmra.mrb[0].mxu0 %v3498
    %v3568 = vpop.f32.mrb[0].mxu0
    %v3569 = vadd.f32 0.0, %v3568
    %v3570 = vpop.f32.mrb[0].mxu0
    %3571 = vdwg.mxu0
    %v3572 = vsel %vm548, %v3491, -inf
    %3573 = vmax.xlane.f32.xlu0 %v3572
    %v3574 = vpop.xlane.xlu0 %3573
    %v3575 = vsel %vm548, %v3569, -inf
    %3576 = vmax.xlane.f32.xlu0 %v3575
    %v3577 = vpop.xlane.xlu0 %3576
    %v3578 = vsub.f32 %v3491, %v3574
    %v3579 = vsub.f32 %v3569, %v3577
    %v3580 = vmul.f32 %v3578, 1.442695
    %v3581 = vpow.pop %v3580
    %v3582 = vmul.f32 %v3579, 1.442695
    %v3583 = vpow.pop %v3582
    %v3584 = vsel %vm548, %v3581, 0.0
    %3585 = vadd.xlane.f32.xlu0 %v3584
    %v3586 = vpop.xlane.xlu0 %3585
    %v3587 = vsel %vm548, %v3583, 0.0
    %3588 = vadd.xlane.f32.xlu0 %v3587
    %v3589 = vpop.xlane.xlu0 %3588
    %v3590 = vrcp.pop %v3586
    %v3591 = vmul.f32 1.0, %v3590
    %v3592 = vrcp.pop %v3589
    %v3593 = vmul.f32 1.0, %v3592
    %v3594 = vmul.f32 %v3581, %v3591
    %v3595 = vmul.f32 %v3583, %v3593
    %3596 = vrot.lane.b32.xlu0 %v2584, 48
    %v3597 = vpop.permute.xlu0 %3596
    %v3600 = vsel %vm548, %v3594, 0
    %3602 = vmatprep.subr.mxu0 0.0
    %3603 = vmatpush1.msra.mxu0 %v3597
    %3604 = vmatprep.subr.mxu0 0.0
    %3605 = vmatpush1.msra.mxu0 0.0
    %3606 = vmatprep.subr.mxu0 0.0
    %3607 = vmatpush1.msra.mxu0 0.0
    %3608 = vmatprep.subr.mxu0 0.0
    %3609 = vmatpush1.msra.mxu0 0.0
    %3610 = vmatprep.subr.mxu0 0.0
    %3611 = vmatpush1.msra.mxu0 0.0
    %3612 = vmatprep.subr.mxu0 0.0
    %3613 = vmatpush1.msra.mxu0 0.0
    %3614 = vmatprep.subr.mxu0 0.0
    %3615 = vmatpush1.msra.mxu0 0.0
    %3616 = vmatprep.subr.mxu0 0.0
    %3617 = vmatpush1.msra.mxu0 0.0
    %3618 = vmatprep.subr.mxu0 0.0
    %3619 = vmatpush1.msra.mxu0 0.0
    %3620 = vmatprep.subr.mxu0 0.0
    %3621 = vmatpush1.msra.mxu0 0.0
    %3622 = vmatprep.subr.mxu0 0.0
    %3623 = vmatpush1.msra.mxu0 0.0
    %3624 = vmatprep.subr.mxu0 0.0
    %3625 = vmatpush1.msra.mxu0 0.0
    %3626 = vmatprep.subr.mxu0 0.0
    %3627 = vmatpush1.msra.mxu0 0.0
    %3628 = vmatprep.subr.mxu0 0.0
    %3629 = vmatpush1.msra.mxu0 0.0
    %3630 = vmatprep.subr.mxu0 0.0
    %3631 = vmatpush1.msra.mxu0 0.0
    %3632 = vmatprep.subr.mxu0 0.0
    %3633 = vmatpush1.msra.mxu0 0.0
    %3634 = vmatprep.subr.mxu0 0.0
    %3635 = vmatpush1.msra.mxu0 0.0
    %3636 = vmatprep.subr.mxu0 0.0
    %3637 = vmatpush1.msra.mxu0 0.0
    %3638 = vmatprep.subr.mxu0 0.0
    %3639 = vmatpush1.msra.mxu0 0.0
    %3640 = vmatprep.subr.mxu0 0.0
    %3641 = vmatpush1.msra.mxu0 0.0
    %3642 = vmatprep.subr.mxu0 0.0
    %3643 = vmatpush1.msra.mxu0 0.0
    %3644 = vmatprep.subr.mxu0 0.0
    %3645 = vmatpush1.msra.mxu0 0.0
    %3646 = vmatprep.subr.mxu0 0.0
    %3647 = vmatpush1.msra.mxu0 0.0
    %3648 = vmatprep.subr.mxu0 0.0
    %3649 = vmatpush1.msra.mxu0 0.0
    %3650 = vmatprep.subr.mxu0 0.0
    %3651 = vmatpush1.msra.mxu0 0.0
    %3652 = vmatprep.subr.mxu0 0.0
    %3653 = vmatpush1.msra.mxu0 0.0
    %3654 = vmatprep.subr.mxu0 0.0
    %3655 = vmatpush1.msra.mxu0 0.0
    %3656 = vmatprep.subr.mxu0 0.0
    %3657 = vmatpush1.msra.mxu0 0.0
    %3658 = vmatprep.subr.mxu0 0.0
    %3659 = vmatpush1.msra.mxu0 0.0
    %3660 = vmatprep.subr.mxu0 0.0
    %3661 = vmatpush1.msra.mxu0 0.0
    %3662 = vmatprep.subr.mxu0 0.0
    %3663 = vmatpush1.msra.mxu0 0.0
    %3664 = vmatprep.subr.mxu0 0.0
    %3665 = vmatpush1.msra.mxu0 0.0
    %3666 = vmatprep.mubr.f32.mxu0 0.0
    %3667 = vmatmul.mubr.f32.gmra.mrb[0].mxu0 %v3600
    %v3668 = vpop.f32.mrb[0].mxu0
    %v3669 = vadd.f32 0.0, %v3668
    %v3670 = vpop.f32.mrb[0].mxu0
    %3671 = vdwg.mxu0
    %3672 = vrot.lane.b32.xlu0 %v2589, 48
    %v3673 = vpop.permute.xlu0 %3672
    %v3676 = vsel %vm548, %v3595, 0
    %3678 = vmatprep.subr.mxu0 0.0
    %3679 = vmatpush1.msra.mxu0 %v3673
    %3680 = vmatprep.subr.mxu0 0.0
    %3681 = vmatpush1.msra.mxu0 0.0
    %3682 = vmatprep.subr.mxu0 0.0
    %3683 = vmatpush1.msra.mxu0 0.0
    %3684 = vmatprep.subr.mxu0 0.0
    %3685 = vmatpush1.msra.mxu0 0.0
    %3686 = vmatprep.subr.mxu0 0.0
    %3687 = vmatpush1.msra.mxu0 0.0
    %3688 = vmatprep.subr.mxu0 0.0
    %3689 = vmatpush1.msra.mxu0 0.0
    %3690 = vmatprep.subr.mxu0 0.0
    %3691 = vmatpush1.msra.mxu0 0.0
    %3692 = vmatprep.subr.mxu0 0.0
    %3693 = vmatpush1.msra.mxu0 0.0
    %3694 = vmatprep.subr.mxu0 0.0
    %3695 = vmatpush1.msra.mxu0 0.0
    %3696 = vmatprep.subr.mxu0 0.0
    %3697 = vmatpush1.msra.mxu0 0.0
    %3698 = vmatprep.subr.mxu0 0.0
    %3699 = vmatpush1.msra.mxu0 0.0
    %3700 = vmatprep.subr.mxu0 0.0
    %3701 = vmatpush1.msra.mxu0 0.0
    %3702 = vmatprep.subr.mxu0 0.0
    %3703 = vmatpush1.msra.mxu0 0.0
    %3704 = vmatprep.subr.mxu0 0.0
    %3705 = vmatpush1.msra.mxu0 0.0
    %3706 = vmatprep.subr.mxu0 0.0
    %3707 = vmatpush1.msra.mxu0 0.0
    %3708 = vmatprep.subr.mxu0 0.0
    %3709 = vmatpush1.msra.mxu0 0.0
    %3710 = vmatprep.subr.mxu0 0.0
    %3711 = vmatpush1.msra.mxu0 0.0
    %3712 = vmatprep.subr.mxu0 0.0
    %3713 = vmatpush1.msra.mxu0 0.0
    %3714 = vmatprep.subr.mxu0 0.0
    %3715 = vmatpush1.msra.mxu0 0.0
    %3716 = vmatprep.subr.mxu0 0.0
    %3717 = vmatpush1.msra.mxu0 0.0
    %3718 = vmatprep.subr.mxu0 0.0
    %3719 = vmatpush1.msra.mxu0 0.0
    %3720 = vmatprep.subr.mxu0 0.0
    %3721 = vmatpush1.msra.mxu0 0.0
    %3722 = vmatprep.subr.mxu0 0.0
    %3723 = vmatpush1.msra.mxu0 0.0
    %3724 = vmatprep.subr.mxu0 0.0
    %3725 = vmatpush1.msra.mxu0 0.0
    %3726 = vmatprep.subr.mxu0 0.0
    %3727 = vmatpush1.msra.mxu0 0.0
    %3728 = vmatprep.subr.mxu0 0.0
    %3729 = vmatpush1.msra.mxu0 0.0
    %3730 = vmatprep.subr.mxu0 0.0
    %3731 = vmatpush1.msra.mxu0 0.0
    %3732 = vmatprep.subr.mxu0 0.0
    %3733 = vmatpush1.msra.mxu0 0.0
    %3734 = vmatprep.subr.mxu0 0.0
    %3735 = vmatpush1.msra.mxu0 0.0
    %3736 = vmatprep.subr.mxu0 0.0
    %3737 = vmatpush1.msra.mxu0 0.0
    %3738 = vmatprep.subr.mxu0 0.0
    %3739 = vmatpush1.msra.mxu0 0.0
    %3740 = vmatprep.subr.mxu0 0.0
    %3741 = vmatpush1.msra.mxu0 0.0
    %3742 = vmatprep.mubr.f32.mxu0 0.0
    %3743 = vmatmul.mubr.f32.gmra.mrb[0].mxu0 %v3676
    %v3744 = vpop.f32.mrb[0].mxu0
    %v3745 = vadd.f32 0.0, %v3744
    %v3746 = vpop.f32.mrb[0].mxu0
    %3747 = vdwg.mxu0
    %v3749 = vsel %vm548, %v3669, 0
    %v3752 = vsel %vm548, %v3745, 0
    %3754 = vmatprep.subr.mxu0 0.0
    %3755 = vmatpush1.msra.mxu0 %v2449
    %3756 = vmatprep.subr.mxu0 0.0
    %3757 = vmatpush1.msra.mxu0 0.0
    %3758 = vmatprep.subr.mxu0 0.0
    %3759 = vmatpush1.msra.mxu0 0.0
    %3760 = vmatprep.subr.mxu0 0.0
    %3761 = vmatpush1.msra.mxu0 0.0
    %3762 = vmatprep.subr.mxu0 0.0
    %3763 = vmatpush1.msra.mxu0 0.0
    %3764 = vmatprep.subr.mxu0 0.0
    %3765 = vmatpush1.msra.mxu0 0.0
    %3766 = vmatprep.subr.mxu0 0.0
    %3767 = vmatpush1.msra.mxu0 0.0
    %3768 = vmatprep.subr.mxu0 0.0
    %3769 = vmatpush1.msra.mxu0 0.0
    %3770 = vmatprep.subr.mxu0 0.0
    %3771 = vmatpush1.msra.mxu0 0.0
    %3772 = vmatprep.subr.mxu0 0.0
    %3773 = vmatpush1.msra.mxu0 0.0
    %3774 = vmatprep.subr.mxu0 0.0
    %3775 = vmatpush1.msra.mxu0 0.0
    %3776 = vmatprep.subr.mxu0 0.0
    %3777 = vmatpush1.msra.mxu0 0.0
    %3778 = vmatprep.subr.mxu0 0.0
    %3779 = vmatpush1.msra.mxu0 0.0
    %3780 = vmatprep.subr.mxu0 0.0
    %3781 = vmatpush1.msra.mxu0 0.0
    %3782 = vmatprep.subr.mxu0 0.0
    %3783 = vmatpush1.msra.mxu0 0.0
    %3784 = vmatprep.subr.mxu0 0.0
    %3785 = vmatpush1.msra.mxu0 0.0
    %3786 = vmatprep.subr.mxu0 0.0
    %3787 = vmatpush1.msra.mxu0 0.0
    %3788 = vmatprep.subr.mxu0 0.0
    %3789 = vmatpush1.msra.mxu0 0.0
    %3790 = vmatprep.subr.mxu0 0.0
    %3791 = vmatpush1.msra.mxu0 0.0
    %3792 = vmatprep.subr.mxu0 0.0
    %3793 = vmatpush1.msra.mxu0 0.0
    %3794 = vmatprep.subr.mxu0 0.0
    %3795 = vmatpush1.msra.mxu0 0.0
    %3796 = vmatprep.subr.mxu0 0.0
    %3797 = vmatpush1.msra.mxu0 0.0
    %3798 = vmatprep.subr.mxu0 0.0
    %3799 = vmatpush1.msra.mxu0 0.0
    %3800 = vmatprep.subr.mxu0 0.0
    %3801 = vmatpush1.msra.mxu0 0.0
    %3802 = vmatprep.subr.mxu0 0.0
    %3803 = vmatpush1.msra.mxu0 0.0
    %3804 = vmatprep.subr.mxu0 0.0
    %3805 = vmatpush1.msra.mxu0 0.0
    %3806 = vmatprep.subr.mxu0 0.0
    %3807 = vmatpush1.msra.mxu0 0.0
    %3808 = vmatprep.subr.mxu0 0.0
    %3809 = vmatpush1.msra.mxu0 0.0
    %3810 = vmatprep.subr.mxu0 0.0
    %3811 = vmatpush1.msra.mxu0 0.0
    %3812 = vmatprep.subr.mxu0 0.0
    %3813 = vmatpush1.msra.mxu0 0.0
    %3814 = vmatprep.subr.mxu0 0.0
    %3815 = vmatpush1.msra.mxu0 0.0
    %3816 = vmatprep.subr.mxu0 0.0
    %3817 = vmatpush1.msra.mxu0 0.0
    %3818 = vmatprep.mubr.f32.mxu0 0.0
    %3819 = vmatmul.mubr.f32.gmra.mrb[0].mxu0 %v3749
    %v3820 = vpop.f32.mrb[0].mxu0
    %v3821 = vadd.f32 0.0, %v3820
    %v3822 = vpop.f32.mrb[0].mxu0
    %3823 = vmatprep.mubr.f32.mxu0 0.0
    %3824 = vmatmul.mubr.f32.gmra.mrb[0].mxu0 %v3752
    %v3825 = vpop.f32.mrb[0].mxu0
    %v3826 = vadd.f32 0.0, %v3825
    %v3827 = vpop.f32.mrb[0].mxu0
    %3828 = vdwg.mxu0
    %v3829 = vadd.f32 %v3408, %v3821
    %v3830 = vadd.f32 %v3413, %v3826
    %3831 = vrot.lane.b32.xlu0 %v2584, 104
    %v3832 = vpop.permute.xlu0 %3831
    %3833 = vrot.lane.b32.xlu0 %v2584, 72
    %v3834 = vpop.permute.xlu0 %3833
    %v3835 = vsel %vm548, %v3832, 0
    %v3837 = vsel %vm548, %v3834, 0
    %3839 = vmatprep.subr.mxu0 0.0
    %3840 = vmatpush1.xpose.msra.mxu0 %v3837
    %3841 = vmatprep.subr.mxu0 0.0
    %3842 = vmatpush1.xpose.msra.mxu0 0.0
    %3843 = vmatprep.subr.mxu0 0.0
    %3844 = vmatpush1.xpose.msra.mxu0 0.0
    %3845 = vmatprep.subr.mxu0 0.0
    %3846 = vmatpush1.xpose.msra.mxu0 0.0
    %3847 = vmatprep.subr.mxu0 0.0
    %3848 = vmatpush1.xpose.msra.mxu0 0.0
    %3849 = vmatprep.subr.mxu0 0.0
    %3850 = vmatpush1.xpose.msra.mxu0 0.0
    %3851 = vmatprep.subr.mxu0 0.0
    %3852 = vmatpush1.xpose.msra.mxu0 0.0
    %3853 = vmatprep.subr.mxu0 0.0
    %3854 = vmatpush1.xpose.msra.mxu0 0.0
    %3855 = vmatprep.subr.mxu0 0.0
    %3856 = vmatpush1.xpose.msra.mxu0 0.0
    %3857 = vmatprep.subr.mxu0 0.0
    %3858 = vmatpush1.xpose.msra.mxu0 0.0
    %3859 = vmatprep.subr.mxu0 0.0
    %3860 = vmatpush1.xpose.msra.mxu0 0.0
    %3861 = vmatprep.subr.mxu0 0.0
    %3862 = vmatpush1.xpose.msra.mxu0 0.0
    %3863 = vmatprep.subr.mxu0 0.0
    %3864 = vmatpush1.xpose.msra.mxu0 0.0
    %3865 = vmatprep.subr.mxu0 0.0
    %3866 = vmatpush1.xpose.msra.mxu0 0.0
    %3867 = vmatprep.subr.mxu0 0.0
    %3868 = vmatpush1.xpose.msra.mxu0 0.0
    %3869 = vmatprep.subr.mxu0 0.0
    %3870 = vmatpush1.xpose.msra.mxu0 0.0
    %3871 = vmatprep.subr.mxu0 0.0
    %3872 = vmatpush1.xpose.msra.mxu0 0.0
    %3873 = vmatprep.subr.mxu0 0.0
    %3874 = vmatpush1.xpose.msra.mxu0 0.0
    %3875 = vmatprep.subr.mxu0 0.0
    %3876 = vmatpush1.xpose.msra.mxu0 0.0
    %3877 = vmatprep.subr.mxu0 0.0
    %3878 = vmatpush1.xpose.msra.mxu0 0.0
    %3879 = vmatprep.subr.mxu0 0.0
    %3880 = vmatpush1.xpose.msra.mxu0 0.0
    %3881 = vmatprep.subr.mxu0 0.0
    %3882 = vmatpush1.xpose.msra.mxu0 0.0
    %3883 = vmatprep.subr.mxu0 0.0
    %3884 = vmatpush1.xpose.msra.mxu0 0.0
    %3885 = vmatprep.subr.mxu0 0.0
    %3886 = vmatpush1.xpose.msra.mxu0 0.0
    %3887 = vmatprep.subr.mxu0 0.0
    %3888 = vmatpush1.xpose.msra.mxu0 0.0
    %3889 = vmatprep.subr.mxu0 0.0
    %3890 = vmatpush1.xpose.msra.mxu0 0.0
    %3891 = vmatprep.subr.mxu0 0.0
    %3892 = vmatpush1.xpose.msra.mxu0 0.0
    %3893 = vmatprep.subr.mxu0 0.0
    %3894 = vmatpush1.xpose.msra.mxu0 0.0
    %3895 = vmatprep.subr.mxu0 0.0
    %3896 = vmatpush1.xpose.msra.mxu0 0.0
    %3897 = vmatprep.subr.mxu0 0.0
    %3898 = vmatpush1.xpose.msra.mxu0 0.0
    %3899 = vmatprep.subr.mxu0 0.0
    %3900 = vmatpush1.xpose.msra.mxu0 0.0
    %3901 = vmatprep.subr.mxu0 0.0
    %3902 = vmatpush1.xpose.msra.mxu0 0.0
    %3903 = vmatprep.mubr.f32.mxu0 0.0
    %3904 = vmatmul.mubr.f32.gmra.mrb[0].mxu0 %v3835
    %v3905 = vpop.f32.mrb[0].mxu0
    %v3906 = vadd.f32 0.0, %v3905
    %v3907 = vpop.f32.mrb[0].mxu0
    %3908 = vdwg.mxu0
    %3909 = vrot.lane.b32.xlu0 %v2589, 104
    %v3910 = vpop.permute.xlu0 %3909
    %3911 = vrot.lane.b32.xlu0 %v2589, 72
    %v3912 = vpop.permute.xlu0 %3911
    %v3913 = vsel %vm548, %v3910, 0
    %v3915 = vsel %vm548, %v3912, 0
    %3917 = vmatprep.subr.mxu0 0.0
    %3918 = vmatpush1.xpose.msra.mxu0 %v3915
    %3919 = vmatprep.subr.mxu0 0.0
    %3920 = vmatpush1.xpose.msra.mxu0 0.0
    %3921 = vmatprep.subr.mxu0 0.0
    %3922 = vmatpush1.xpose.msra.mxu0 0.0
    %3923 = vmatprep.subr.mxu0 0.0
    %3924 = vmatpush1.xpose.msra.mxu0 0.0
    %3925 = vmatprep.subr.mxu0 0.0
    %3926 = vmatpush1.xpose.msra.mxu0 0.0
    %3927 = vmatprep.subr.mxu0 0.0
    %3928 = vmatpush1.xpose.msra.mxu0 0.0
    %3929 = vmatprep.subr.mxu0 0.0
    %3930 = vmatpush1.xpose.msra.mxu0 0.0
    %3931 = vmatprep.subr.mxu0 0.0
    %3932 = vmatpush1.xpose.msra.mxu0 0.0
    %3933 = vmatprep.subr.mxu0 0.0
    %3934 = vmatpush1.xpose.msra.mxu0 0.0
    %3935 = vmatprep.subr.mxu0 0.0
    %3936 = vmatpush1.xpose.msra.mxu0 0.0
    %3937 = vmatprep.subr.mxu0 0.0
    %3938 = vmatpush1.xpose.msra.mxu0 0.0
    %3939 = vmatprep.subr.mxu0 0.0
    %3940 = vmatpush1.xpose.msra.mxu0 0.0
    %3941 = vmatprep.subr.mxu0 0.0
    %3942 = vmatpush1.xpose.msra.mxu0 0.0
    %3943 = vmatprep.subr.mxu0 0.0
    %3944 = vmatpush1.xpose.msra.mxu0 0.0
    %3945 = vmatprep.subr.mxu0 0.0
    %3946 = vmatpush1.xpose.msra.mxu0 0.0
    %3947 = vmatprep.subr.mxu0 0.0
    %3948 = vmatpush1.xpose.msra.mxu0 0.0
    %3949 = vmatprep.subr.mxu0 0.0
    %3950 = vmatpush1.xpose.msra.mxu0 0.0
    %3951 = vmatprep.subr.mxu0 0.0
    %3952 = vmatpush1.xpose.msra.mxu0 0.0
    %3953 = vmatprep.subr.mxu0 0.0
    %3954 = vmatpush1.xpose.msra.mxu0 0.0
    %3955 = vmatprep.subr.mxu0 0.0
    %3956 = vmatpush1.xpose.msra.mxu0 0.0
    %3957 = vmatprep.subr.mxu0 0.0
    %3958 = vmatpush1.xpose.msra.mxu0 0.0
    %3959 = vmatprep.subr.mxu0 0.0
    %3960 = vmatpush1.xpose.msra.mxu0 0.0
    %3961 = vmatprep.subr.mxu0 0.0
    %3962 = vmatpush1.xpose.msra.mxu0 0.0
    %3963 = vmatprep.subr.mxu0 0.0
    %3964 = vmatpush1.xpose.msra.mxu0 0.0
    %3965 = vmatprep.subr.mxu0 0.0
    %3966 = vmatpush1.xpose.msra.mxu0 0.0
    %3967 = vmatprep.subr.mxu0 0.0
    %3968 = vmatpush1.xpose.msra.mxu0 0.0
    %3969 = vmatprep.subr.mxu0 0.0
    %3970 = vmatpush1.xpose.msra.mxu0 0.0
    %3971 = vmatprep.subr.mxu0 0.0
    %3972 = vmatpush1.xpose.msra.mxu0 0.0
    %3973 = vmatprep.subr.mxu0 0.0
    %3974 = vmatpush1.xpose.msra.mxu0 0.0
    %3975 = vmatprep.subr.mxu0 0.0
    %3976 = vmatpush1.xpose.msra.mxu0 0.0
    %3977 = vmatprep.subr.mxu0 0.0
    %3978 = vmatpush1.xpose.msra.mxu0 0.0
    %3979 = vmatprep.subr.mxu0 0.0
    %3980 = vmatpush1.xpose.msra.mxu0 0.0
    %3981 = vmatprep.mubr.f32.mxu0 0.0
    %3982 = vmatmul.mubr.f32.gmra.mrb[0].mxu0 %v3913
    %v3983 = vpop.f32.mrb[0].mxu0
    %v3984 = vadd.f32 0.0, %v3983
    %v3985 = vpop.f32.mrb[0].mxu0
    %3986 = vdwg.mxu0
    %v3987 = vsel %vm548, %v3906, -inf
    %3988 = vmax.xlane.f32.xlu0 %v3987
    %v3989 = vpop.xlane.xlu0 %3988
    %v3990 = vsel %vm548, %v3984, -inf
    %3991 = vmax.xlane.f32.xlu0 %v3990
    %v3992 = vpop.xlane.xlu0 %3991
    %v3993 = vsub.f32 %v3906, %v3989
    %v3994 = vsub.f32 %v3984, %v3992
    %v3995 = vmul.f32 %v3993, 1.442695
    %v3996 = vpow.pop %v3995
    %v3997 = vmul.f32 %v3994, 1.442695
    %v3998 = vpow.pop %v3997
    %v3999 = vsel %vm548, %v3996, 0.0
    %4000 = vadd.xlane.f32.xlu0 %v3999
    %v4001 = vpop.xlane.xlu0 %4000
    %v4002 = vsel %vm548, %v3998, 0.0
    %4003 = vadd.xlane.f32.xlu0 %v4002
    %v4004 = vpop.xlane.xlu0 %4003
    %v4005 = vrcp.pop %v4001
    %v4006 = vmul.f32 1.0, %v4005
    %v4007 = vrcp.pop %v4004
    %v4008 = vmul.f32 1.0, %v4007
    %v4009 = vmul.f32 %v3996, %v4006
    %v4010 = vmul.f32 %v3998, %v4008
    %4011 = vrot.lane.b32.xlu0 %v2584, 40
    %v4012 = vpop.permute.xlu0 %4011
    %v4015 = vsel %vm548, %v4009, 0
    %4017 = vmatprep.subr.mxu0 0.0
    %4018 = vmatpush1.msra.mxu0 %v4012
    %4019 = vmatprep.subr.mxu0 0.0
    %4020 = vmatpush1.msra.mxu0 0.0
    %4021 = vmatprep.subr.mxu0 0.0
    %4022 = vmatpush1.msra.mxu0 0.0
    %4023 = vmatprep.subr.mxu0 0.0
    %4024 = vmatpush1.msra.mxu0 0.0
    %4025 = vmatprep.subr.mxu0 0.0
    %4026 = vmatpush1.msra.mxu0 0.0
    %4027 = vmatprep.subr.mxu0 0.0
    %4028 = vmatpush1.msra.mxu0 0.0
    %4029 = vmatprep.subr.mxu0 0.0
    %4030 = vmatpush1.msra.mxu0 0.0
    %4031 = vmatprep.subr.mxu0 0.0
    %4032 = vmatpush1.msra.mxu0 0.0
    %4033 = vmatprep.subr.mxu0 0.0
    %4034 = vmatpush1.msra.mxu0 0.0
    %4035 = vmatprep.subr.mxu0 0.0
    %4036 = vmatpush1.msra.mxu0 0.0
    %4037 = vmatprep.subr.mxu0 0.0
    %4038 = vmatpush1.msra.mxu0 0.0
    %4039 = vmatprep.subr.mxu0 0.0
    %4040 = vmatpush1.msra.mxu0 0.0
    %4041 = vmatprep.subr.mxu0 0.0
    %4042 = vmatpush1.msra.mxu0 0.0
    %4043 = vmatprep.subr.mxu0 0.0
    %4044 = vmatpush1.msra.mxu0 0.0
    %4045 = vmatprep.subr.mxu0 0.0
    %4046 = vmatpush1.msra.mxu0 0.0
    %4047 = vmatprep.subr.mxu0 0.0
    %4048 = vmatpush1.msra.mxu0 0.0
    %4049 = vmatprep.subr.mxu0 0.0
    %4050 = vmatpush1.msra.mxu0 0.0
    %4051 = vmatprep.subr.mxu0 0.0
    %4052 = vmatpush1.msra.mxu0 0.0
    %4053 = vmatprep.subr.mxu0 0.0
    %4054 = vmatpush1.msra.mxu0 0.0
    %4055 = vmatprep.subr.mxu0 0.0
    %4056 = vmatpush1.msra.mxu0 0.0
    %4057 = vmatprep.subr.mxu0 0.0
    %4058 = vmatpush1.msra.mxu0 0.0
    %4059 = vmatprep.subr.mxu0 0.0
    %4060 = vmatpush1.msra.mxu0 0.0
    %4061 = vmatprep.subr.mxu0 0.0
    %4062 = vmatpush1.msra.mxu0 0.0
    %4063 = vmatprep.subr.mxu0 0.0
    %4064 = vmatpush1.msra.mxu0 0.0
    %4065 = vmatprep.subr.mxu0 0.0
    %4066 = vmatpush1.msra.mxu0 0.0
    %4067 = vmatprep.subr.mxu0 0.0
    %4068 = vmatpush1.msra.mxu0 0.0
    %4069 = vmatprep.subr.mxu0 0.0
    %4070 = vmatpush1.msra.mxu0 0.0
    %4071 = vmatprep.subr.mxu0 0.0
    %4072 = vmatpush1.msra.mxu0 0.0
    %4073 = vmatprep.subr.mxu0 0.0
    %4074 = vmatpush1.msra.mxu0 0.0
    %4075 = vmatprep.subr.mxu0 0.0
    %4076 = vmatpush1.msra.mxu0 0.0
    %4077 = vmatprep.subr.mxu0 0.0
    %4078 = vmatpush1.msra.mxu0 0.0
    %4079 = vmatprep.subr.mxu0 0.0
    %4080 = vmatpush1.msra.mxu0 0.0
    %4081 = vmatprep.mubr.f32.mxu0 0.0
    %4082 = vmatmul.mubr.f32.gmra.mrb[0].mxu0 %v4015
    %v4083 = vpop.f32.mrb[0].mxu0
    %v4084 = vadd.f32 0.0, %v4083
    %v4085 = vpop.f32.mrb[0].mxu0
    %4086 = vdwg.mxu0
    %4087 = vrot.lane.b32.xlu0 %v2589, 40
    %v4088 = vpop.permute.xlu0 %4087
    %v4091 = vsel %vm548, %v4010, 0
    %4093 = vmatprep.subr.mxu0 0.0
    %4094 = vmatpush1.msra.mxu0 %v4088
    %4095 = vmatprep.subr.mxu0 0.0
    %4096 = vmatpush1.msra.mxu0 0.0
    %4097 = vmatprep.subr.mxu0 0.0
    %4098 = vmatpush1.msra.mxu0 0.0
    %4099 = vmatprep.subr.mxu0 0.0
    %4100 = vmatpush1.msra.mxu0 0.0
    %4101 = vmatprep.subr.mxu0 0.0
    %4102 = vmatpush1.msra.mxu0 0.0
    %4103 = vmatprep.subr.mxu0 0.0
    %4104 = vmatpush1.msra.mxu0 0.0
    %4105 = vmatprep.subr.mxu0 0.0
    %4106 = vmatpush1.msra.mxu0 0.0
    %4107 = vmatprep.subr.mxu0 0.0
    %4108 = vmatpush1.msra.mxu0 0.0
    %4109 = vmatprep.subr.mxu0 0.0
    %4110 = vmatpush1.msra.mxu0 0.0
    %4111 = vmatprep.subr.mxu0 0.0
    %4112 = vmatpush1.msra.mxu0 0.0
    %4113 = vmatprep.subr.mxu0 0.0
    %4114 = vmatpush1.msra.mxu0 0.0
    %4115 = vmatprep.subr.mxu0 0.0
    %4116 = vmatpush1.msra.mxu0 0.0
    %4117 = vmatprep.subr.mxu0 0.0
    %4118 = vmatpush1.msra.mxu0 0.0
    %4119 = vmatprep.subr.mxu0 0.0
    %4120 = vmatpush1.msra.mxu0 0.0
    %4121 = vmatprep.subr.mxu0 0.0
    %4122 = vmatpush1.msra.mxu0 0.0
    %4123 = vmatprep.subr.mxu0 0.0
    %4124 = vmatpush1.msra.mxu0 0.0
    %4125 = vmatprep.subr.mxu0 0.0
    %4126 = vmatpush1.msra.mxu0 0.0
    %4127 = vmatprep.subr.mxu0 0.0
    %4128 = vmatpush1.msra.mxu0 0.0
    %4129 = vmatprep.subr.mxu0 0.0
    %4130 = vmatpush1.msra.mxu0 0.0
    %4131 = vmatprep.subr.mxu0 0.0
    %4132 = vmatpush1.msra.mxu0 0.0
    %4133 = vmatprep.subr.mxu0 0.0
    %4134 = vmatpush1.msra.mxu0 0.0
    %4135 = vmatprep.subr.mxu0 0.0
    %4136 = vmatpush1.msra.mxu0 0.0
    %4137 = vmatprep.subr.mxu0 0.0
    %4138 = vmatpush1.msra.mxu0 0.0
    %4139 = vmatprep.subr.mxu0 0.0
    %4140 = vmatpush1.msra.mxu0 0.0
    %4141 = vmatprep.subr.mxu0 0.0
    %4142 = vmatpush1.msra.mxu0 0.0
    %4143 = vmatprep.subr.mxu0 0.0
    %4144 = vmatpush1.msra.mxu0 0.0
    %4145 = vmatprep.subr.mxu0 0.0
    %4146 = vmatpush1.msra.mxu0 0.0
    %4147 = vmatprep.subr.mxu0 0.0
    %4148 = vmatpush1.msra.mxu0 0.0
    %4149 = vmatprep.subr.mxu0 0.0
    %4150 = vmatpush1.msra.mxu0 0.0
    %4151 = vmatprep.subr.mxu0 0.0
    %4152 = vmatpush1.msra.mxu0 0.0
    %4153 = vmatprep.subr.mxu0 0.0
    %4154 = vmatpush1.msra.mxu0 0.0
    %4155 = vmatprep.subr.mxu0 0.0
    %4156 = vmatpush1.msra.mxu0 0.0
    %4157 = vmatprep.mubr.f32.mxu0 0.0
    %4158 = vmatmul.mubr.f32.gmra.mrb[0].mxu0 %v4091
    %v4159 = vpop.f32.mrb[0].mxu0
    %v4160 = vadd.f32 0.0, %v4159
    %v4161 = vpop.f32.mrb[0].mxu0
    %4162 = vdwg.mxu0
    %v4164 = vsel %vm548, %v4084, 0
    %v4167 = vsel %vm548, %v4160, 0
    %4169 = vmatprep.subr.mxu0 0.0
    %4170 = vmatpush1.msra.mxu0 %v2450
    %4171 = vmatprep.subr.mxu0 0.0
    %4172 = vmatpush1.msra.mxu0 0.0
    %4173 = vmatprep.subr.mxu0 0.0
    %4174 = vmatpush1.msra.mxu0 0.0
    %4175 = vmatprep.subr.mxu0 0.0
    %4176 = vmatpush1.msra.mxu0 0.0
    %4177 = vmatprep.subr.mxu0 0.0
    %4178 = vmatpush1.msra.mxu0 0.0
    %4179 = vmatprep.subr.mxu0 0.0
    %4180 = vmatpush1.msra.mxu0 0.0
    %4181 = vmatprep.subr.mxu0 0.0
    %4182 = vmatpush1.msra.mxu0 0.0
    %4183 = vmatprep.subr.mxu0 0.0
    %4184 = vmatpush1.msra.mxu0 0.0
    %4185 = vmatprep.subr.mxu0 0.0
    %4186 = vmatpush1.msra.mxu0 0.0
    %4187 = vmatprep.subr.mxu0 0.0
    %4188 = vmatpush1.msra.mxu0 0.0
    %4189 = vmatprep.subr.mxu0 0.0
    %4190 = vmatpush1.msra.mxu0 0.0
    %4191 = vmatprep.subr.mxu0 0.0
    %4192 = vmatpush1.msra.mxu0 0.0
    %4193 = vmatprep.subr.mxu0 0.0
    %4194 = vmatpush1.msra.mxu0 0.0
    %4195 = vmatprep.subr.mxu0 0.0
    %4196 = vmatpush1.msra.mxu0 0.0
    %4197 = vmatprep.subr.mxu0 0.0
    %4198 = vmatpush1.msra.mxu0 0.0
    %4199 = vmatprep.subr.mxu0 0.0
    %4200 = vmatpush1.msra.mxu0 0.0
    %4201 = vmatprep.subr.mxu0 0.0
    %4202 = vmatpush1.msra.mxu0 0.0
    %4203 = vmatprep.subr.mxu0 0.0
    %4204 = vmatpush1.msra.mxu0 0.0
    %4205 = vmatprep.subr.mxu0 0.0
    %4206 = vmatpush1.msra.mxu0 0.0
    %4207 = vmatprep.subr.mxu0 0.0
    %4208 = vmatpush1.msra.mxu0 0.0
    %4209 = vmatprep.subr.mxu0 0.0
    %4210 = vmatpush1.msra.mxu0 0.0
    %4211 = vmatprep.subr.mxu0 0.0
    %4212 = vmatpush1.msra.mxu0 0.0
    %4213 = vmatprep.subr.mxu0 0.0
    %4214 = vmatpush1.msra.mxu0 0.0
    %4215 = vmatprep.subr.mxu0 0.0
    %4216 = vmatpush1.msra.mxu0 0.0
    %4217 = vmatprep.subr.mxu0 0.0
    %4218 = vmatpush1.msra.mxu0 0.0
    %4219 = vmatprep.subr.mxu0 0.0
    %4220 = vmatpush1.msra.mxu0 0.0
    %4221 = vmatprep.subr.mxu0 0.0
    %4222 = vmatpush1.msra.mxu0 0.0
    %4223 = vmatprep.subr.mxu0 0.0
    %4224 = vmatpush1.msra.mxu0 0.0
    %4225 = vmatprep.subr.mxu0 0.0
    %4226 = vmatpush1.msra.mxu0 0.0
    %4227 = vmatprep.subr.mxu0 0.0
    %4228 = vmatpush1.msra.mxu0 0.0
    %4229 = vmatprep.subr.mxu0 0.0
    %4230 = vmatpush1.msra.mxu0 0.0
    %4231 = vmatprep.subr.mxu0 0.0
    %4232 = vmatpush1.msra.mxu0 0.0
    %4233 = vmatprep.mubr.f32.mxu0 0.0
    %4234 = vmatmul.mubr.f32.gmra.mrb[0].mxu0 %v4164
    %v4235 = vpop.f32.mrb[0].mxu0
    %v4236 = vadd.f32 0.0, %v4235
    %v4237 = vpop.f32.mrb[0].mxu0
    %4238 = vmatprep.mubr.f32.mxu0 0.0
    %4239 = vmatmul.mubr.f32.gmra.mrb[0].mxu0 %v4167
    %v4240 = vpop.f32.mrb[0].mxu0
    %v4241 = vadd.f32 0.0, %v4240
    %v4242 = vpop.f32.mrb[0].mxu0
    %4243 = vdwg.mxu0
    %v4244 = vadd.f32 %v3829, %v4236
    %v4245 = vadd.f32 %v3830, %v4241
    %v4246 = vadd.f32 %v2437, %v4244
    %v4247 = vadd.f32 %v2438, %v4245
    %v4248 = vlaneseq
    %v4249 = vshrl.u32 %v4248, 7
    %v4250 = vsub.s32 2, %v4249
    %v4251 = vrot.slane %v2440, %v4250
    %v4252 = vadd.f32 %v4246, %v4251
    %v4253 = vadd.f32 %v4247, %v4251
    %v4254 = vsel %vm215, %v4252, 0.0
    %4255 = vadd.xlane.f32.xlu0 %v4254
    %v4256 = vpop.xlane.xlu0 %4255
    %v4257 = vsel %vm215, %v4253, 0.0
    %4258 = vadd.xlane.f32.xlu0 %v4257
    %v4259 = vpop.xlane.xlu0 %4258
    %v4260 = vmul.f32 %v4256, %v222
    %v4261 = vmul.f32 %v4259, %v222
    %v4262 = vmul.f32 %v4252, %v4252
    %v4263 = vmul.f32 %v4253, %v4253
    %v4264 = vsel %vm215, %v4262, 0.0
    %4265 = vadd.xlane.f32.xlu0 %v4264
    %v4266 = vpop.xlane.xlu0 %4265
    %v4267 = vsel %vm215, %v4263, 0.0
    %4268 = vadd.xlane.f32.xlu0 %v4267
    %v4269 = vpop.xlane.xlu0 %4268
    %v4270 = vmul.f32 %v4266, %v222
    %v4271 = vmul.f32 %v4269, %v222
    %v4272 = vmul.f32 %v4260, %v4260
    %v4273 = vmul.f32 %v4261, %v4261
    %v4274 = vsub.f32 %v4270, %v4272
    %v4275 = vsub.f32 %v4271, %v4273
    %v4276 = vmax.f32 %v4274, 0.0
    %v4277 = vmax.f32 %v4275, 0.0
    %v4278 = vsub.f32 %v4252, %v4260
    %v4279 = vsub.f32 %v4253, %v4261
    %v4280 = vadd.f32 %v4276, 1e-05
    %v4281 = vadd.f32 %v4277, 1e-05
    %v4282 = vrsqrt.pop %v4280
    %v4283 = vrsqrt.pop %v4281
    %v4284 = vmul.f32 %v4278, %v4282
    %v4285 = vmul.f32 %v4279, %v4283
    %v4286 = vlaneseq
    %v4287 = vshrl.u32 %v4286, 7
    %v4288 = vsub.s32 3, %v4287
    %v4289 = vrot.slane %v2440, %v4288
    %v4290 = vmul.f32 %v4284, %v4289
    %v4291 = vmul.f32 %v4285, %v4289
    %v4292 = vlaneseq
    %v4293 = vshrl.u32 %v4292, 7
    %v4294 = vsub.s32 4, %v4293
    %v4295 = vrot.slane %v2440, %v4294
    %v4296 = vadd.f32 %v4290, %v4295
    %v4297 = vadd.f32 %v4291, %v4295
    %v4299 = vlaneseq
    %v4300 = vshrl.u32 %v4299, 7
    %v4301 = vsub.s32 0, %v4300
    %v4302 = vrot.slane %v2457, %v4301
    %v4305 = vsel %vm215, %v4296, 0
    %v4308 = vsel %vm215, %v4297, 0
    %4310 = vmatprep.subr.mxu0 0.0
    %4311 = vmatpush1.msra.mxu0 %v2452
    %4312 = vmatprep.subr.mxu0 0.0
    %4313 = vmatpush1.msra.mxu0 %v2453
    %4314 = vmatprep.subr.mxu0 0.0
    %4315 = vmatpush1.msra.mxu0 %v2454
    %4316 = vmatprep.subr.mxu0 0.0
    %4317 = vmatpush1.msra.mxu0 %v2455
    %4318 = vmatprep.subr.mxu0 0.0
    %4319 = vmatpush1.msra.mxu0 0.0
    %4320 = vmatprep.subr.mxu0 0.0
    %4321 = vmatpush1.msra.mxu0 0.0
    %4322 = vmatprep.subr.mxu0 0.0
    %4323 = vmatpush1.msra.mxu0 0.0
    %4324 = vmatprep.subr.mxu0 0.0
    %4325 = vmatpush1.msra.mxu0 0.0
    %4326 = vmatprep.subr.mxu0 0.0
    %4327 = vmatpush1.msra.mxu0 0.0
    %4328 = vmatprep.subr.mxu0 0.0
    %4329 = vmatpush1.msra.mxu0 0.0
    %4330 = vmatprep.subr.mxu0 0.0
    %4331 = vmatpush1.msra.mxu0 0.0
    %4332 = vmatprep.subr.mxu0 0.0
    %4333 = vmatpush1.msra.mxu0 0.0
    %4334 = vmatprep.subr.mxu0 0.0
    %4335 = vmatpush1.msra.mxu0 0.0
    %4336 = vmatprep.subr.mxu0 0.0
    %4337 = vmatpush1.msra.mxu0 0.0
    %4338 = vmatprep.subr.mxu0 0.0
    %4339 = vmatpush1.msra.mxu0 0.0
    %4340 = vmatprep.subr.mxu0 0.0
    %4341 = vmatpush1.msra.mxu0 0.0
    %4342 = vmatprep.subr.mxu0 0.0
    %4343 = vmatpush1.msra.mxu0 0.0
    %4344 = vmatprep.subr.mxu0 0.0
    %4345 = vmatpush1.msra.mxu0 0.0
    %4346 = vmatprep.subr.mxu0 0.0
    %4347 = vmatpush1.msra.mxu0 0.0
    %4348 = vmatprep.subr.mxu0 0.0
    %4349 = vmatpush1.msra.mxu0 0.0
    %4350 = vmatprep.subr.mxu0 0.0
    %4351 = vmatpush1.msra.mxu0 0.0
    %4352 = vmatprep.subr.mxu0 0.0
    %4353 = vmatpush1.msra.mxu0 0.0
    %4354 = vmatprep.subr.mxu0 0.0
    %4355 = vmatpush1.msra.mxu0 0.0
    %4356 = vmatprep.subr.mxu0 0.0
    %4357 = vmatpush1.msra.mxu0 0.0
    %4358 = vmatprep.subr.mxu0 0.0
    %4359 = vmatpush1.msra.mxu0 0.0
    %4360 = vmatprep.subr.mxu0 0.0
    %4361 = vmatpush1.msra.mxu0 0.0
    %4362 = vmatprep.subr.mxu0 0.0
    %4363 = vmatpush1.msra.mxu0 0.0
    %4364 = vmatprep.subr.mxu0 0.0
    %4365 = vmatpush1.msra.mxu0 0.0
    %4366 = vmatprep.subr.mxu0 0.0
    %4367 = vmatpush1.msra.mxu0 0.0
    %4368 = vmatprep.subr.mxu0 0.0
    %4369 = vmatpush1.msra.mxu0 0.0
    %4370 = vmatprep.subr.mxu0 0.0
    %4371 = vmatpush1.msra.mxu0 0.0
    %4372 = vmatprep.subr.mxu0 0.0
    %4373 = vmatpush1.msra.mxu0 0.0
    %4374 = vmatprep.mubr.f32.mxu0 0.0
    %4375 = vmatmul.mubr.f32.gmra.mrb[0].mxu0 %v4305
    %v4376 = vpop.f32.mrb[0].mxu0
    %v4377 = vadd.f32 %v4302, %v4376
    %v4378 = vpop.f32.mrb[0].mxu0
    %4379 = vmatprep.mubr.f32.mxu0 0.0
    %4380 = vmatmul.mubr.f32.gmra.mrb[0].mxu0 %v4308
    %v4381 = vpop.f32.mrb[0].mxu0
    %v4382 = vadd.f32 %v4302, %v4381
    %v4383 = vpop.f32.mrb[0].mxu0
    %4384 = vdwg.mxu0
    %v4385 = vmul.f32 %v4377, 0.5
    %v4386 = vmul.f32 %v4382, 0.5
    %v4387 = vmul.f32 %v4377, 0.70710677
    %v4388 = vmul.f32 %v4382, 0.70710677
    %v4389 = verf.f32.pop %v4387
    %v4390 = verf.f32.pop %v4388
    %v4391 = vadd.f32 %v4389, 1.0
    %v4392 = vadd.f32 %v4390, 1.0
    %v4393 = vmul.f32 %v4385, %v4391
    %v4394 = vmul.f32 %v4386, %v4392
    %v4396 = vsel %vm2349, %v4393, 0
    %v4399 = vsel %vm2349, %v4394, 0
    %4401 = vmatprep.subr.mxu0 0.0
    %4402 = vmatpush1.msra.mxu0 %v2459
    %4403 = vmatprep.subr.mxu0 0.0
    %4404 = vmatpush1.msra.mxu0 %v2460
    %4405 = vmatprep.subr.mxu0 0.0
    %4406 = vmatpush1.msra.mxu0 %v2461
    %4407 = vmatprep.subr.mxu0 0.0
    %4408 = vmatpush1.msra.mxu0 %v2462
    %4409 = vmatprep.subr.mxu0 0.0
    %4410 = vmatpush1.msra.mxu0 %v2463
    %4411 = vmatprep.subr.mxu0 0.0
    %4412 = vmatpush1.msra.mxu0 %v2464
    %4413 = vmatprep.subr.mxu0 0.0
    %4414 = vmatpush1.msra.mxu0 %v2465
    %4415 = vmatprep.subr.mxu0 0.0
    %4416 = vmatpush1.msra.mxu0 %v2466
    %4417 = vmatprep.subr.mxu0 0.0
    %4418 = vmatpush1.msra.mxu0 0.0
    %4419 = vmatprep.subr.mxu0 0.0
    %4420 = vmatpush1.msra.mxu0 0.0
    %4421 = vmatprep.subr.mxu0 0.0
    %4422 = vmatpush1.msra.mxu0 0.0
    %4423 = vmatprep.subr.mxu0 0.0
    %4424 = vmatpush1.msra.mxu0 0.0
    %4425 = vmatprep.subr.mxu0 0.0
    %4426 = vmatpush1.msra.mxu0 0.0
    %4427 = vmatprep.subr.mxu0 0.0
    %4428 = vmatpush1.msra.mxu0 0.0
    %4429 = vmatprep.subr.mxu0 0.0
    %4430 = vmatpush1.msra.mxu0 0.0
    %4431 = vmatprep.subr.mxu0 0.0
    %4432 = vmatpush1.msra.mxu0 0.0
    %4433 = vmatprep.subr.mxu0 0.0
    %4434 = vmatpush1.msra.mxu0 0.0
    %4435 = vmatprep.subr.mxu0 0.0
    %4436 = vmatpush1.msra.mxu0 0.0
    %4437 = vmatprep.subr.mxu0 0.0
    %4438 = vmatpush1.msra.mxu0 0.0
    %4439 = vmatprep.subr.mxu0 0.0
    %4440 = vmatpush1.msra.mxu0 0.0
    %4441 = vmatprep.subr.mxu0 0.0
    %4442 = vmatpush1.msra.mxu0 0.0
    %4443 = vmatprep.subr.mxu0 0.0
    %4444 = vmatpush1.msra.mxu0 0.0
    %4445 = vmatprep.subr.mxu0 0.0
    %4446 = vmatpush1.msra.mxu0 0.0
    %4447 = vmatprep.subr.mxu0 0.0
    %4448 = vmatpush1.msra.mxu0 0.0
    %4449 = vmatprep.subr.mxu0 0.0
    %4450 = vmatpush1.msra.mxu0 0.0
    %4451 = vmatprep.subr.mxu0 0.0
    %4452 = vmatpush1.msra.mxu0 0.0
    %4453 = vmatprep.subr.mxu0 0.0
    %4454 = vmatpush1.msra.mxu0 0.0
    %4455 = vmatprep.subr.mxu0 0.0
    %4456 = vmatpush1.msra.mxu0 0.0
    %4457 = vmatprep.subr.mxu0 0.0
    %4458 = vmatpush1.msra.mxu0 0.0
    %4459 = vmatprep.subr.mxu0 0.0
    %4460 = vmatpush1.msra.mxu0 0.0
    %4461 = vmatprep.subr.mxu0 0.0
    %4462 = vmatpush1.msra.mxu0 0.0
    %4463 = vmatprep.subr.mxu0 0.0
    %4464 = vmatpush1.msra.mxu0 0.0
    %4465 = vmatprep.mubr.f32.mxu0 0.0
    %4466 = vmatmul.mubr.f32.gmra.mrb[0].mxu0 %v4396
    %v4467 = vpop.f32.mrb[0].mxu0
    %v4468 = vadd.f32 0.0, %v4467
    %v4469 = vpop.f32.mrb[0].mxu0
    %4470 = vmatprep.mubr.f32.mxu0 0.0
    %4471 = vmatmul.mubr.f32.gmra.mrb[0].mxu0 %v4399
    %v4472 = vpop.f32.mrb[0].mxu0
    %v4473 = vadd.f32 0.0, %v4472
    %v4474 = vpop.f32.mrb[0].mxu0
    %4475 = vdwg.mxu0
    %v4476 = vadd.f32 %v4252, %v4468
    %v4477 = vadd.f32 %v4253, %v4473
    %v4478 = vlaneseq
    %v4479 = vshrl.u32 %v4478, 7
    %v4480 = vsub.s32 5, %v4479
    %v4481 = vrot.slane %v2440, %v4480
    %v4482 = vadd.f32 %v4476, %v4481
    %v4483 = vadd.f32 %v4477, %v4481
    %v4484 = vsel %vm215, %v4482, 0.0
    %4485 = vadd.xlane.f32.xlu0 %v4484
    %v4486 = vpop.xlane.xlu0 %4485
    %v4487 = vsel %vm215, %v4483, 0.0
    %4488 = vadd.xlane.f32.xlu0 %v4487
    %v4489 = vpop.xlane.xlu0 %4488
    %v4490 = vmul.f32 %v4486, %v222
    %v4491 = vmul.f32 %v4489, %v222
    %v4492 = vmul.f32 %v4482, %v4482
    %v4493 = vmul.f32 %v4483, %v4483
    %v4494 = vsel %vm215, %v4492, 0.0
    %4495 = vadd.xlane.f32.xlu0 %v4494
    %v4496 = vpop.xlane.xlu0 %4495
    %v4497 = vsel %vm215, %v4493, 0.0
    %4498 = vadd.xlane.f32.xlu0 %v4497
    %v4499 = vpop.xlane.xlu0 %4498
    %v4500 = vmul.f32 %v4496, %v222
    %v4501 = vmul.f32 %v4499, %v222
    %v4502 = vmul.f32 %v4490, %v4490
    %v4503 = vmul.f32 %v4491, %v4491
    %v4504 = vsub.f32 %v4500, %v4502
    %v4505 = vsub.f32 %v4501, %v4503
    %v4506 = vmax.f32 %v4504, 0.0
    %v4507 = vmax.f32 %v4505, 0.0
    %v4508 = vsub.f32 %v4482, %v4490
    %v4509 = vsub.f32 %v4483, %v4491
    %v4510 = vadd.f32 %v4506, 1e-05
    %v4511 = vadd.f32 %v4507, 1e-05
    %v4512 = vrsqrt.pop %v4510
    %v4513 = vrsqrt.pop %v4511
    %v4514 = vmul.f32 %v4508, %v4512
    %v4515 = vmul.f32 %v4509, %v4513
    %v4516 = vlaneseq
    %v4517 = vshrl.u32 %v4516, 7
    %v4518 = vsub.s32 3, %v4517
    %v4519 = vrot.slane %v261, %v4518
    %v4520 = vmul.f32 %v4514, %v4519
    %v4521 = vmul.f32 %v4515, %v4519
    %v4522 = vlaneseq
    %v4523 = vshrl.u32 %v4522, 7
    %v4524 = vsub.s32 4, %v4523
    %v4525 = vrot.slane %v261, %v4524
    %v4526 = vadd.f32 %v4520, %v4525
    %v4527 = vadd.f32 %v4521, %v4525
    %v4528 = vld [vmem:[#allocation13] sm:$0xff]
    %v4529 = vld [vmem:[#allocation13 + $0x8] sm:$0xff]
    %v4530 = vld [vmem:[#allocation13 + $0x10] sm:$0xff]
    %v4531 = vsel %vm215, %v4526, 0.0
    %4532 = vadd.xlane.f32.xlu0 %v4531
    %v4533 = vpop.xlane.xlu0 %4532
    %v4534 = vsel %vm215, %v4527, 0.0
    %4535 = vadd.xlane.f32.xlu0 %v4534
    %v4536 = vpop.xlane.xlu0 %4535
    %v4537 = vrot.slane %v4533, 4
    %v4538 = vadd.f32 %v4533, %v4537
    %v4539 = vrot.slane %v4538, 2
    %v4540 = vadd.f32 %v4538, %v4539
    %v4541 = vrot.slane %v4540, 1
    %v4542 = vadd.f32 %v4540, %v4541
    %v4543 = vrot.slane %v4536, 4
    %v4544 = vadd.f32 %v4536, %v4543
    %v4545 = vrot.slane %v4544, 2
    %v4546 = vadd.f32 %v4544, %v4545
    %v4547 = vrot.slane %v4546, 1
    %v4548 = vadd.f32 %v4546, %v4547
    %v4549 = vmul.f32 %v4526, %v4526
    %v4550 = vmul.f32 %v4527, %v4527
    %v4551 = vsel %vm215, %v4549, 0.0
    %4552 = vadd.xlane.f32.xlu0 %v4551
    %v4553 = vpop.xlane.xlu0 %4552
    %v4554 = vsel %vm215, %v4550, 0.0
    %4555 = vadd.xlane.f32.xlu0 %v4554
    %v4556 = vpop.xlane.xlu0 %4555
    %v4557 = vrot.slane %v4553, 4
    %v4558 = vadd.f32 %v4553, %v4557
    %v4559 = vrot.slane %v4558, 2
    %v4560 = vadd.f32 %v4558, %v4559
    %v4561 = vrot.slane %v4560, 1
    %v4562 = vadd.f32 %v4560, %v4561
    %v4563 = vrot.slane %v4556, 4
    %v4564 = vadd.f32 %v4556, %v4563
    %v4565 = vrot.slane %v4564, 2
    %v4566 = vadd.f32 %v4564, %v4565
    %v4567 = vrot.slane %v4566, 1
    %v4568 = vadd.f32 %v4566, %v4567
    %v4569 = vmul.f32 %v4542, 0.00390625
    %v4570 = vmul.f32 %v4548, 0.00390625
    %v4571 = vmul.f32 %v4562, 0.00390625
    %v4572 = vmul.f32 %v4568, 0.00390625
    %v4573 = vmul.f32 %v4569, %v4569
    %v4574 = vmul.f32 %v4570, %v4570
    %v4575 = vsub.f32 %v4571, %v4573
    %v4576 = vsub.f32 %v4572, %v4574
    %v4577 = vmax.f32 %v4575, 0.0
    %v4578 = vmax.f32 %v4576, 0.0
    %v4579 = vsub.f32 %v4526, %v4569
    %v4580 = vsub.f32 %v4527, %v4570
    %v4581 = vadd.f32 %v4577, 1e-05
    %v4582 = vadd.f32 %v4578, 1e-05
    %v4583 = vrsqrt.pop %v4581
    %v4584 = vrsqrt.pop %v4582
    %v4585 = vmul.f32 %v4579, %v4583
    %v4586 = vmul.f32 %v4580, %v4584
    %v4587 = vmul.f32 %v4585, %v4528
    %v4588 = vmul.f32 %v4586, %v4528
    %v4589 = vadd.f32 %v4587, %v4529
    %v4590 = vadd.f32 %v4588, %v4529
    %v4591 = vmul.f32 %v4589, %v4530
    %v4592 = vmul.f32 %v4590, %v4530
    %v4593 = vsel %vm215, %v4591, 0.0
    %4594 = vadd.xlane.f32.xlu0 %v4593
    %v4595 = vpop.xlane.xlu0 %4594
    %v4596 = vsel %vm215, %v4592, 0.0
    %4597 = vadd.xlane.f32.xlu0 %v4596
    %v4598 = vpop.xlane.xlu0 %4597
    %v4601 = vlaneseq
    %v4602 = vand.u32 %v4601, 127
    %v4603 = vlaneseq
    %v4604 = vshrl.u32 %v4603, 7
    %v4605 = vsub.s32 %v4602, %v4604
    %v4606 = vrot.slane %v4595, %v4605
    %v4607 = vlaneseq
    %v4608 = vshrl.u32 %v4607, 7
    %v4609 = vsub.s32 %v4602, %v4608
    %v4610 = vrot.slane %v4598, %v4609
    %vm4611 = vcmask 1041409
    %v4612 = vsel %vm4611, %v4610, %v4606
    %v4614 = vsel %vm137, %v4612, 0.0
    %4615 = vadd.xlane.f32.xlu0 %v4614
    %v4616 = vpop.xlane.xlu0 %4615
    %s4617 = sld [smem:[#allocation2]]
    %v4618 = vstv %s4617
    %v4619 = vadd.f32 %v4616, %v4618
    %vm4620 = vcmask 1024
    %4621 = vst.msk [vmem:[%s14] sm:$0x3] %vm4620, %v4619
    // Predicated region
    $region86: #{tpu_custom_call.1} parent=1 // pred_check
      _
    $region87: #{tpu_custom_call.1} parent=1 // pred_check_branch
      %4623 = sbr.rel (0) target = $region89
    $region88: #{tpu_custom_call.1} parent=1 // pred_region
      _
    $region89: #{tpu_custom_call.1} parent=1 // pred_fallthru
      _
    // Predicated region
    $region90: #{tpu_custom_call.1} parent=1 // pred_check
      _
    $region91: #{tpu_custom_call.1} parent=1 // pred_check_branch
      %4625 = sbr.rel (0) target = $region93
    $region92: #{tpu_custom_call.1} parent=1 // pred_region
      _
    $region93: #{tpu_custom_call.1} parent=1 // pred_fallthru
      _
    %4626 = vsyncpa [#allocation4], 1
    %4627 = vsyncpa [#allocation6], 1
    %4628 = vsyncpa [#allocation9], 1
    %4629 = vsyncpa [#allocation12], 1

</llo_original>
